<compile_context>
chip_gen: v7x
topology: tpu7x:2x2x1
jax: 0.10.0
libtpu: 0.0.40
codegen_flags: <defaults>
</compile_context>

<pallas_src>
import functools

import jax
import jax.numpy as jnp
from jax import lax
from jax.experimental import pallas as pl
from jax.experimental.pallas import tpu as pltpu

NEG_SLOPE = 0.01
CIN = 3
CIN_PAD = 8   # zero-pad the 3 input channels to a full sublane tile for conv1's matmul


def _leaky_relu(x):
    return jnp.where(x > 0, x, NEG_SLOPE * x)


def _feat_kernel(x_ref, w1_ref, b1_ref, w2_ref, b2_ref, w3a_ref, w3b_ref, b3_ref,
                 o_ref):
    Bt = o_ref.shape[0]          # batch elements per grid step (static)
    N = o_ref.shape[2]           # points per batch element    (static)
    R = x_ref.shape[0]           # Bt * N rows in this slab

    x = x_ref[...]                                               # (R, CIN_PAD)

    # Hoisted per-batch sequence-boundary masks (built once, reused by all convs).
    pos = lax.broadcasted_iota(jnp.int32, (R, 1), 0)
    is_first = functools.reduce(jnp.logical_or,
                                [pos == b * N for b in range(Bt)])
    is_last = functools.reduce(jnp.logical_or,
                               [pos == b * N + (N - 1) for b in range(Bt)])
    not_first = jnp.where(is_first, 0.0, 1.0)                    # (R, 1) f32
    not_last = jnp.where(is_last, 0.0, 1.0)                      # (R, 1) f32

    def shift_down(v):   # row l holds v[l-1]; first row of each batch element -> 0
        return pltpu.roll(v, shift=1, axis=0) * not_first

    def shift_up(v):     # row l holds v[l+1]; last row of each batch element -> 0
        return pltpu.roll(v, shift=R - 1, axis=0) * not_last     # roll by -1, non-neg shift

    def conv_taps(v_dn, v, v_up, w_ref):
        # y[l] = v[l-1] @ w[0] + v[l] @ w[1] + v[l+1] @ w[2]   (zero padded ends)
        return (jnp.dot(v_dn, w_ref[0], preferred_element_type=jnp.float32)
                + jnp.dot(v, w_ref[1], preferred_element_type=jnp.float32)
                + jnp.dot(v_up, w_ref[2], preferred_element_type=jnp.float32))

    x_dn, x_up = shift_down(x), shift_up(x)
    x1 = _leaky_relu(conv_taps(x_dn, x, x_up, w1_ref) + b1_ref[...])        # (R, 64)

    x1_dn, x1_up = shift_down(x1), shift_up(x1)     # reused by conv2 AND conv3a
    x2 = _leaky_relu(conv_taps(x1_dn, x1, x1_up, w2_ref) + b2_ref[...])     # (R, 128)

    x2_dn, x2_up = shift_down(x2), shift_up(x2)
    # conv3 over cat([x1, x2], channels) == conv3a(x1) + conv3b(x2): no (R,192) concat.
    x3 = _leaky_relu(conv_taps(x1_dn, x1, x1_up, w3a_ref)
                     + conv_taps(x2_dn, x2, x2_up, w3b_ref)
                     + b3_ref[...])                                         # (R, 256)

    # Write the output already transposed to NCL: (Bt, 256, N) with N on lanes.
    for b in range(Bt):          # Bt is a small static Python int
        o_ref[b] = jnp.transpose(x3[b * N:(b + 1) * N, :], (1, 0))


def _pick_batch_tile(batch, n_points, max_rows=1024):
    """Largest divisor of `batch` whose slab (Bt*N rows) stays within max_rows."""
    bt = 1
    for cand in range(2, batch + 1):
        if batch % cand == 0 and cand * n_points <= max_rows:
            bt = cand
    return bt


def pose_refine_net_feat(x_ncl, params):
    """x_ncl: (B, 3, N) float32 (PyTorch NCL). Returns (B, 256, N) float32 (NCL)."""
    w1, b1, w2, b2, w3a, w3b, b3 = params
    B, c_in, N = x_ncl.shape
    if c_in != CIN:
        raise ValueError(f"expected {CIN} input channels, got {c_in}")
    if N % 8 != 0:
        # e.g. DenseFusion's num_points=500: zero-pad the points axis to a multiple
        # of 8 (zero rows keep the k=3 halo correct) and slice the output back.
        raise ValueError("N must be a multiple of 8; zero-pad the points axis first.")

    bt = _pick_batch_tile(B, N)
    R = bt * N

    # (B, 3, N) -> (B*N, CIN_PAD): points on sublanes, zero-padded channels on lanes.
    x_rows = jnp.transpose(x_ncl, (0, 2, 1)).astype(jnp.float32).reshape(B * N, CIN)
    x_rows = jnp.pad(x_rows, ((0, 0), (0, CIN_PAD - CIN)))

    out = pl.pallas_call(
        _feat_kernel,
        out_shape=jax.ShapeDtypeStruct((B, 256, N), jnp.float32),
        grid_spec=pltpu.PrefetchScalarGridSpec(
            num_scalar_prefetch=0,
            grid=(B // bt,),
            in_specs=[
                pl.BlockSpec((R, CIN_PAD), lambda i: (i, 0)),
                pl.BlockSpec((3, CIN_PAD, 64), lambda i: (0, 0, 0)),
                pl.BlockSpec((1, 64), lambda i: (0, 0)),
                pl.BlockSpec((3, 64, 128), lambda i: (0, 0, 0)),
                pl.BlockSpec((1, 128), lambda i: (0, 0)),
                pl.BlockSpec((3, 64, 256), lambda i: (0, 0, 0)),
                pl.BlockSpec((3, 128, 256), lambda i: (0, 0, 0)),
                pl.BlockSpec((1, 256), lambda i: (0, 0)),
            ],
            out_specs=pl.BlockSpec((bt, 256, N), lambda i: (i, 0, 0)),
        ),
        # NOTE: for very large N (or v7x's 64 MiB VMEM) add a parallel N-tile grid
        # axis with a 1-row halo; at <=1024 rows/step the slab fits comfortably.
        compiler_params=pltpu.CompilerParams(dimension_semantics=("parallel",)),
    )(x_rows, w1, b1, w2, b2, w3a, w3b, b3)

    return out   # already (B, 256, N) NCL — no wrapper-side transpose of the output.


def init_params(key):
    """Deterministic PyTorch-style (kaiming-uniform-ish) Conv1d init.

    Returns torch-layout weights (Cout, Cin, K) for the reference and kernel-layout
    params for the Pallas call: w as (K, Cin, Cout) with conv1's Cin zero-padded
    3->8 and conv3 split into its x1-part (Cin=64) and x2-part (Cin=128);
    biases as (1, Cout).
    """
    keys = jax.random.split(key, 3)

    def conv_init(k, c_out, c_in, ksize):
        kw, kb = jax.random.split(k)
        bound = 1.0 / jnp.sqrt(float(c_in * ksize))
        w = jax.random.uniform(kw, (c_out, c_in, ksize), jnp.float32, -bound, bound)
        b = jax.random.uniform(kb, (c_out,), jnp.float32, -bound, bound)
        return w, b

    w1_t, b1 = conv_init(keys[0], 64, 3, 3)
    w2_t, b2 = conv_init(keys[1], 128, 64, 3)
    w3_t, b3 = conv_init(keys[2], 256, 192, 3)
    torch_params = (w1_t, b1, w2_t, b2, w3_t, b3)

    w1_k = jnp.pad(jnp.transpose(w1_t, (2, 1, 0)),
                   ((0, 0), (0, CIN_PAD - CIN), (0, 0)))       # (3, 8, 64)
    w2_k = jnp.transpose(w2_t, (2, 1, 0))                      # (3, 64, 128)
    w3_k = jnp.transpose(w3_t, (2, 1, 0))                      # (3, 192, 256)
    kernel_params = (
        w1_k, b1[None, :],
        w2_k, b2[None, :],
        w3_k[:, :64, :],      # conv3 weights acting on x1 channels
        w3_k[:, 64:, :],      # conv3 weights acting on x2 channels
        b3[None, :],
    )
    return torch_params, kernel_params


def _conv1d_ref(x_ncl, w_oik, b):
    y = lax.conv_general_dilated(
        x_ncl, w_oik, window_strides=(1,), padding=((1, 1),),
        dimension_numbers=("NCH", "OIH", "NCH"),
        precision=lax.Precision.HIGHEST)
    return y + b[None, :, None]


def reference_forward(x_ncl, torch_params):
    w1, b1, w2, b2, w3, b3 = torch_params
    lrelu = lambda v: jnp.where(v > 0, v, NEG_SLOPE * v)
    x1 = lrelu(_conv1d_ref(x_ncl, w1, b1))
    x2 = lrelu(_conv1d_ref(x1, w2, b2))
    pf = jnp.concatenate([x1, x2], axis=1)
    return lrelu(_conv1d_ref(pf, w3, b3))


if __name__ == "__main__":
    key = jax.random.PRNGKey(0)
    k_params, k_x = jax.random.split(key)
    torch_params, kernel_params = init_params(k_params)

    B, N = 2, 128
    x = jax.random.normal(k_x, (B, 3, N), dtype=jnp.float32)   # (B, C=3, N) NCL

    y = jax.block_until_ready(pose_refine_net_feat(x, kernel_params))
    assert y.shape == (B, 256, N), y.shape

    y_ref = jax.block_until_ready(reference_forward(x, torch_params))
    # The in-kernel matmuls run at the TPU's default contraction precision (bf16
    # MXU passes with f32 accumulation), so compare against the HIGHEST-precision
    # f32 reference with a bf16-aware tolerance.
    err = float(jnp.max(jnp.abs(y - y_ref)))
    assert jnp.allclose(y, y_ref, rtol=2e-2, atol=5e-3), err
    print("KERNEL_OK")
</pallas_src>

<mosaic_0001>
module attributes {stable_mosaic.version = 11 : i64} {
  func.func @_feat_kernel(%arg0: i32, %arg1: memref<256x8xf32, #tpu.memory_space<vmem>>, %arg2: memref<3x8x64xf32, #tpu.memory_space<vmem>>, %arg3: memref<1x64xf32, #tpu.memory_space<vmem>>, %arg4: memref<3x64x128xf32, #tpu.memory_space<vmem>>, %arg5: memref<1x128xf32, #tpu.memory_space<vmem>>, %arg6: memref<3x64x256xf32, #tpu.memory_space<vmem>>, %arg7: memref<3x128x256xf32, #tpu.memory_space<vmem>>, %arg8: memref<1x256xf32, #tpu.memory_space<vmem>>, %arg9: memref<2x256x128xf32, #tpu.memory_space<vmem>>) attributes {dimension_semantics = [#tpu.dimension_semantics<parallel>], iteration_bounds = array<i64: 1>, scalar_prefetch = 0 : i64, scratch_operands = 0 : i64, tpu.core_type = #tpu.core_type<tc>, window_params = [{transform_indices = @transform_0, window_bounds = array<i64: 256, 8>}, {pipeline_mode = #tpu.pipeline_mode<synchronous>, transform_indices = @transform_1, window_bounds = array<i64: 3, 8, 64>}, {pipeline_mode = #tpu.pipeline_mode<synchronous>, transform_indices = @transform_2, window_bounds = array<i64: 1, 64>}, {pipeline_mode = #tpu.pipeline_mode<synchronous>, transform_indices = @transform_3, window_bounds = array<i64: 3, 64, 128>}, {pipeline_mode = #tpu.pipeline_mode<synchronous>, transform_indices = @transform_4, window_bounds = array<i64: 1, 128>}, {pipeline_mode = #tpu.pipeline_mode<synchronous>, transform_indices = @transform_5, window_bounds = array<i64: 3, 64, 256>}, {pipeline_mode = #tpu.pipeline_mode<synchronous>, transform_indices = @transform_6, window_bounds = array<i64: 3, 128, 256>}, {pipeline_mode = #tpu.pipeline_mode<synchronous>, transform_indices = @transform_7, window_bounds = array<i64: 1, 256>}, {transform_indices = @transform_8, window_bounds = array<i64: 2, 256, 128>}]} {
    %c0 = arith.constant 0 : index
    %c0_0 = arith.constant 0 : index
    %0 = vector.load %arg1[%c0, %c0_0] : memref<256x8xf32, #tpu.memory_space<vmem>>, vector<256x8xf32>
    %1 = tpu.iota {dimensions = array<i32: 0>} : vector<256x1xi32>
    %c0_i32 = arith.constant 0 : i32
    %2 = vector.broadcast %c0_i32 : i32 to vector<256x1xi32>
    %3 = arith.cmpi eq, %1, %2 : vector<256x1xi32>
    %c128_i32 = arith.constant 128 : i32
    %4 = vector.broadcast %c128_i32 : i32 to vector<256x1xi32>
    %5 = arith.cmpi eq, %1, %4 : vector<256x1xi32>
    %6 = arith.ori %3, %5 : vector<256x1xi1>
    %c127_i32 = arith.constant 127 : i32
    %7 = vector.broadcast %c127_i32 : i32 to vector<256x1xi32>
    %8 = arith.cmpi eq, %1, %7 : vector<256x1xi32>
    %c255_i32 = arith.constant 255 : i32
    %9 = vector.broadcast %c255_i32 : i32 to vector<256x1xi32>
    %10 = arith.cmpi eq, %1, %9 : vector<256x1xi32>
    %11 = arith.ori %8, %10 : vector<256x1xi1>
    %cst = arith.constant 0.000000e+00 : f32
    %cst_1 = arith.constant 1.000000e+00 : f32
    %12 = vector.broadcast %cst : f32 to vector<256x1xf32>
    %13 = vector.broadcast %cst_1 : f32 to vector<256x1xf32>
    %14 = arith.select %6, %12, %13 : vector<256x1xi1>, vector<256x1xf32>
    %cst_2 = arith.constant 0.000000e+00 : f32
    %cst_3 = arith.constant 1.000000e+00 : f32
    %15 = vector.broadcast %cst_2 : f32 to vector<256x1xf32>
    %16 = vector.broadcast %cst_3 : f32 to vector<256x1xf32>
    %17 = arith.select %11, %15, %16 : vector<256x1xi1>, vector<256x1xf32>
    %c1_i32 = arith.constant 1 : i32
    %18 = tpu.dynamic_rotate %0 by %c1_i32 dim 0 : vector<256x8xf32>, i32 -> vector<256x8xf32>
    %19 = vector.broadcast %14 : vector<256x1xf32> to vector<256x8xf32>
    %20 = arith.mulf %18, %19 : vector<256x8xf32>
    %c255_i32_4 = arith.constant 255 : i32
    %21 = tpu.dynamic_rotate %0 by %c255_i32_4 dim 0 : vector<256x8xf32>, i32 -> vector<256x8xf32>
    %22 = vector.broadcast %17 : vector<256x1xf32> to vector<256x8xf32>
    %23 = arith.mulf %21, %22 : vector<256x8xf32>
    %c0_5 = arith.constant 0 : index
    %c0_6 = arith.constant 0 : index
    %c0_7 = arith.constant 0 : index
    %24 = vector.load %arg2[%c0_5, %c0_6, %c0_7] : memref<3x8x64xf32, #tpu.memory_space<vmem>>, vector<1x8x64xf32>
    %25 = vector.shape_cast %24 : vector<1x8x64xf32> to vector<8x64xf32>
    %cst_8 = arith.constant dense<0.000000e+00> : vector<256x64xf32>
    %26 = tpu.matmul %20, %25, %cst_8 {dimension_numbers = #tpu.dot_dimension_numbers<[1], [0], [0], [1], [0, 0, 1, 1], [], []>} : vector<256x8xf32>, vector<8x64xf32>, vector<256x64xf32> -> vector<256x64xf32>
    %c1 = arith.constant 1 : index
    %c0_9 = arith.constant 0 : index
    %c0_10 = arith.constant 0 : index
    %27 = vector.load %arg2[%c1, %c0_9, %c0_10] : memref<3x8x64xf32, #tpu.memory_space<vmem>>, vector<1x8x64xf32>
    %28 = vector.shape_cast %27 : vector<1x8x64xf32> to vector<8x64xf32>
    %cst_11 = arith.constant dense<0.000000e+00> : vector<256x64xf32>
    %29 = tpu.matmul %0, %28, %cst_11 {dimension_numbers = #tpu.dot_dimension_numbers<[1], [0], [0], [1], [0, 0, 1, 1], [], []>} : vector<256x8xf32>, vector<8x64xf32>, vector<256x64xf32> -> vector<256x64xf32>
    %30 = arith.addf %26, %29 : vector<256x64xf32>
    %c2 = arith.constant 2 : index
    %c0_12 = arith.constant 0 : index
    %c0_13 = arith.constant 0 : index
    %31 = vector.load %arg2[%c2, %c0_12, %c0_13] : memref<3x8x64xf32, #tpu.memory_space<vmem>>, vector<1x8x64xf32>
    %32 = vector.shape_cast %31 : vector<1x8x64xf32> to vector<8x64xf32>
    %cst_14 = arith.constant dense<0.000000e+00> : vector<256x64xf32>
    %33 = tpu.matmul %23, %32, %cst_14 {dimension_numbers = #tpu.dot_dimension_numbers<[1], [0], [0], [1], [0, 0, 1, 1], [], []>} : vector<256x8xf32>, vector<8x64xf32>, vector<256x64xf32> -> vector<256x64xf32>
    %34 = arith.addf %30, %33 : vector<256x64xf32>
    %c0_15 = arith.constant 0 : index
    %c0_16 = arith.constant 0 : index
    %35 = vector.load %arg3[%c0_15, %c0_16] : memref<1x64xf32, #tpu.memory_space<vmem>>, vector<1x64xf32>
    %36 = vector.broadcast %35 : vector<1x64xf32> to vector<256x64xf32>
    %37 = arith.addf %34, %36 : vector<256x64xf32>
    %cst_17 = arith.constant 0.000000e+00 : f32
    %38 = vector.broadcast %cst_17 : f32 to vector<256x64xf32>
    %39 = arith.cmpf ogt, %37, %38 : vector<256x64xf32>
    %cst_18 = arith.constant 0.00999999977 : f32
    %40 = vector.broadcast %cst_18 : f32 to vector<256x64xf32>
    %41 = arith.mulf %40, %37 : vector<256x64xf32>
    %42 = arith.select %39, %37, %41 : vector<256x64xi1>, vector<256x64xf32>
    %c1_i32_19 = arith.constant 1 : i32
    %43 = tpu.dynamic_rotate %42 by %c1_i32_19 dim 0 : vector<256x64xf32>, i32 -> vector<256x64xf32>
    %44 = vector.broadcast %14 : vector<256x1xf32> to vector<256x64xf32>
    %45 = arith.mulf %43, %44 : vector<256x64xf32>
    %c255_i32_20 = arith.constant 255 : i32
    %46 = tpu.dynamic_rotate %42 by %c255_i32_20 dim 0 : vector<256x64xf32>, i32 -> vector<256x64xf32>
    %47 = vector.broadcast %17 : vector<256x1xf32> to vector<256x64xf32>
    %48 = arith.mulf %46, %47 : vector<256x64xf32>
    %c0_21 = arith.constant 0 : index
    %c0_22 = arith.constant 0 : index
    %c0_23 = arith.constant 0 : index
    %49 = vector.load %arg4[%c0_21, %c0_22, %c0_23] : memref<3x64x128xf32, #tpu.memory_space<vmem>>, vector<1x64x128xf32>
    %50 = vector.shape_cast %49 : vector<1x64x128xf32> to vector<64x128xf32>
    %cst_24 = arith.constant dense<0.000000e+00> : vector<256x128xf32>
    %51 = tpu.matmul %45, %50, %cst_24 {dimension_numbers = #tpu.dot_dimension_numbers<[1], [0], [0], [1], [0, 0, 1, 1], [], []>} : vector<256x64xf32>, vector<64x128xf32>, vector<256x128xf32> -> vector<256x128xf32>
    %c1_25 = arith.constant 1 : index
    %c0_26 = arith.constant 0 : index
    %c0_27 = arith.constant 0 : index
    %52 = vector.load %arg4[%c1_25, %c0_26, %c0_27] : memref<3x64x128xf32, #tpu.memory_space<vmem>>, vector<1x64x128xf32>
    %53 = vector.shape_cast %52 : vector<1x64x128xf32> to vector<64x128xf32>
    %cst_28 = arith.constant dense<0.000000e+00> : vector<256x128xf32>
    %54 = tpu.matmul %42, %53, %cst_28 {dimension_numbers = #tpu.dot_dimension_numbers<[1], [0], [0], [1], [0, 0, 1, 1], [], []>} : vector<256x64xf32>, vector<64x128xf32>, vector<256x128xf32> -> vector<256x128xf32>
    %55 = arith.addf %51, %54 : vector<256x128xf32>
    %c2_29 = arith.constant 2 : index
    %c0_30 = arith.constant 0 : index
    %c0_31 = arith.constant 0 : index
    %56 = vector.load %arg4[%c2_29, %c0_30, %c0_31] : memref<3x64x128xf32, #tpu.memory_space<vmem>>, vector<1x64x128xf32>
    %57 = vector.shape_cast %56 : vector<1x64x128xf32> to vector<64x128xf32>
    %cst_32 = arith.constant dense<0.000000e+00> : vector<256x128xf32>
    %58 = tpu.matmul %48, %57, %cst_32 {dimension_numbers = #tpu.dot_dimension_numbers<[1], [0], [0], [1], [0, 0, 1, 1], [], []>} : vector<256x64xf32>, vector<64x128xf32>, vector<256x128xf32> -> vector<256x128xf32>
    %59 = arith.addf %55, %58 : vector<256x128xf32>
    %c0_33 = arith.constant 0 : index
    %c0_34 = arith.constant 0 : index
    %60 = vector.load %arg5[%c0_33, %c0_34] : memref<1x128xf32, #tpu.memory_space<vmem>>, vector<1x128xf32>
    %61 = vector.broadcast %60 : vector<1x128xf32> to vector<256x128xf32>
    %62 = arith.addf %59, %61 : vector<256x128xf32>
    %cst_35 = arith.constant 0.000000e+00 : f32
    %63 = vector.broadcast %cst_35 : f32 to vector<256x128xf32>
    %64 = arith.cmpf ogt, %62, %63 : vector<256x128xf32>
    %cst_36 = arith.constant 0.00999999977 : f32
    %65 = vector.broadcast %cst_36 : f32 to vector<256x128xf32>
    %66 = arith.mulf %65, %62 : vector<256x128xf32>
    %67 = arith.select %64, %62, %66 : vector<256x128xi1>, vector<256x128xf32>
    %c1_i32_37 = arith.constant 1 : i32
    %68 = tpu.dynamic_rotate %67 by %c1_i32_37 dim 0 : vector<256x128xf32>, i32 -> vector<256x128xf32>
    %69 = vector.broadcast %14 : vector<256x1xf32> to vector<256x128xf32>
    %70 = arith.mulf %68, %69 : vector<256x128xf32>
    %c255_i32_38 = arith.constant 255 : i32
    %71 = tpu.dynamic_rotate %67 by %c255_i32_38 dim 0 : vector<256x128xf32>, i32 -> vector<256x128xf32>
    %72 = vector.broadcast %17 : vector<256x1xf32> to vector<256x128xf32>
    %73 = arith.mulf %71, %72 : vector<256x128xf32>
    %c0_39 = arith.constant 0 : index
    %c0_40 = arith.constant 0 : index
    %c0_41 = arith.constant 0 : index
    %74 = vector.load %arg6[%c0_39, %c0_40, %c0_41] : memref<3x64x256xf32, #tpu.memory_space<vmem>>, vector<1x64x256xf32>
    %75 = vector.shape_cast %74 : vector<1x64x256xf32> to vector<64x256xf32>
    %cst_42 = arith.constant dense<0.000000e+00> : vector<256x256xf32>
    %76 = tpu.matmul %45, %75, %cst_42 {dimension_numbers = #tpu.dot_dimension_numbers<[1], [0], [0], [1], [0, 0, 1, 1], [], []>} : vector<256x64xf32>, vector<64x256xf32>, vector<256x256xf32> -> vector<256x256xf32>
    %c1_43 = arith.constant 1 : index
    %c0_44 = arith.constant 0 : index
    %c0_45 = arith.constant 0 : index
    %77 = vector.load %arg6[%c1_43, %c0_44, %c0_45] : memref<3x64x256xf32, #tpu.memory_space<vmem>>, vector<1x64x256xf32>
    %78 = vector.shape_cast %77 : vector<1x64x256xf32> to vector<64x256xf32>
    %cst_46 = arith.constant dense<0.000000e+00> : vector<256x256xf32>
    %79 = tpu.matmul %42, %78, %cst_46 {dimension_numbers = #tpu.dot_dimension_numbers<[1], [0], [0], [1], [0, 0, 1, 1], [], []>} : vector<256x64xf32>, vector<64x256xf32>, vector<256x256xf32> -> vector<256x256xf32>
    %80 = arith.addf %76, %79 : vector<256x256xf32>
    %c2_47 = arith.constant 2 : index
    %c0_48 = arith.constant 0 : index
    %c0_49 = arith.constant 0 : index
    %81 = vector.load %arg6[%c2_47, %c0_48, %c0_49] : memref<3x64x256xf32, #tpu.memory_space<vmem>>, vector<1x64x256xf32>
    %82 = vector.shape_cast %81 : vector<1x64x256xf32> to vector<64x256xf32>
    %cst_50 = arith.constant dense<0.000000e+00> : vector<256x256xf32>
    %83 = tpu.matmul %48, %82, %cst_50 {dimension_numbers = #tpu.dot_dimension_numbers<[1], [0], [0], [1], [0, 0, 1, 1], [], []>} : vector<256x64xf32>, vector<64x256xf32>, vector<256x256xf32> -> vector<256x256xf32>
    %84 = arith.addf %80, %83 : vector<256x256xf32>
    %c0_51 = arith.constant 0 : index
    %c0_52 = arith.constant 0 : index
    %c0_53 = arith.constant 0 : index
    %85 = vector.load %arg7[%c0_51, %c0_52, %c0_53] : memref<3x128x256xf32, #tpu.memory_space<vmem>>, vector<1x128x256xf32>
    %86 = vector.shape_cast %85 : vector<1x128x256xf32> to vector<128x256xf32>
    %cst_54 = arith.constant dense<0.000000e+00> : vector<256x256xf32>
    %87 = tpu.matmul %70, %86, %cst_54 {dimension_numbers = #tpu.dot_dimension_numbers<[1], [0], [0], [1], [0, 0, 1, 1], [], []>} : vector<256x128xf32>, vector<128x256xf32>, vector<256x256xf32> -> vector<256x256xf32>
    %c1_55 = arith.constant 1 : index
    %c0_56 = arith.constant 0 : index
    %c0_57 = arith.constant 0 : index
    %88 = vector.load %arg7[%c1_55, %c0_56, %c0_57] : memref<3x128x256xf32, #tpu.memory_space<vmem>>, vector<1x128x256xf32>
    %89 = vector.shape_cast %88 : vector<1x128x256xf32> to vector<128x256xf32>
    %cst_58 = arith.constant dense<0.000000e+00> : vector<256x256xf32>
    %90 = tpu.matmul %67, %89, %cst_58 {dimension_numbers = #tpu.dot_dimension_numbers<[1], [0], [0], [1], [0, 0, 1, 1], [], []>} : vector<256x128xf32>, vector<128x256xf32>, vector<256x256xf32> -> vector<256x256xf32>
    %91 = arith.addf %87, %90 : vector<256x256xf32>
    %c2_59 = arith.constant 2 : index
    %c0_60 = arith.constant 0 : index
    %c0_61 = arith.constant 0 : index
    %92 = vector.load %arg7[%c2_59, %c0_60, %c0_61] : memref<3x128x256xf32, #tpu.memory_space<vmem>>, vector<1x128x256xf32>
    %93 = vector.shape_cast %92 : vector<1x128x256xf32> to vector<128x256xf32>
    %cst_62 = arith.constant dense<0.000000e+00> : vector<256x256xf32>
    %94 = tpu.matmul %73, %93, %cst_62 {dimension_numbers = #tpu.dot_dimension_numbers<[1], [0], [0], [1], [0, 0, 1, 1], [], []>} : vector<256x128xf32>, vector<128x256xf32>, vector<256x256xf32> -> vector<256x256xf32>
    %95 = arith.addf %91, %94 : vector<256x256xf32>
    %96 = arith.addf %84, %95 : vector<256x256xf32>
    %c0_63 = arith.constant 0 : index
    %c0_64 = arith.constant 0 : index
    %97 = vector.load %arg8[%c0_63, %c0_64] : memref<1x256xf32, #tpu.memory_space<vmem>>, vector<1x256xf32>
    %98 = vector.broadcast %97 : vector<1x256xf32> to vector<256x256xf32>
    %99 = arith.addf %96, %98 : vector<256x256xf32>
    %cst_65 = arith.constant 0.000000e+00 : f32
    %100 = vector.broadcast %cst_65 : f32 to vector<256x256xf32>
    %101 = arith.cmpf ogt, %99, %100 : vector<256x256xf32>
    %cst_66 = arith.constant 0.00999999977 : f32
    %102 = vector.broadcast %cst_66 : f32 to vector<256x256xf32>
    %103 = arith.mulf %102, %99 : vector<256x256xf32>
    %104 = arith.select %101, %99, %103 : vector<256x256xi1>, vector<256x256xf32>
    %105 = vector.extract_strided_slice %104 {offsets = [0, 0], sizes = [128, 256], strides = [1, 1]} : vector<256x256xf32> to vector<128x256xf32>
    %106 = tpu.transpose %105, [1, 0] : vector<128x256xf32> -> vector<256x128xf32>
    %c0_67 = arith.constant 0 : index
    %c0_68 = arith.constant 0 : index
    %c0_69 = arith.constant 0 : index
    %107 = vector.load %arg9[%c0_67, %c0_68, %c0_69] : memref<2x256x128xf32, #tpu.memory_space<vmem>>, vector<1x256x128xf32>
    %108 = vector.shape_cast %107 : vector<1x256x128xf32> to vector<256x128xf32>
    %109 = vector.shape_cast %106 : vector<256x128xf32> to vector<1x256x128xf32>
    tpu.vector_store %arg9[%c0_67, %c0_68, %c0_69], %109 {strides = array<i32>} : memref<2x256x128xf32, #tpu.memory_space<vmem>>, vector<1x256x128xf32>,
    %110 = vector.extract_strided_slice %104 {offsets = [128, 0], sizes = [128, 256], strides = [1, 1]} : vector<256x256xf32> to vector<128x256xf32>
    %111 = tpu.transpose %110, [1, 0] : vector<128x256xf32> -> vector<256x128xf32>
    %c1_70 = arith.constant 1 : index
    %c0_71 = arith.constant 0 : index
    %c0_72 = arith.constant 0 : index
    %112 = vector.load %arg9[%c1_70, %c0_71, %c0_72] : memref<2x256x128xf32, #tpu.memory_space<vmem>>, vector<1x256x128xf32>
    %113 = vector.shape_cast %112 : vector<1x256x128xf32> to vector<256x128xf32>
    %114 = vector.shape_cast %111 : vector<256x128xf32> to vector<1x256x128xf32>
    tpu.vector_store %arg9[%c1_70, %c0_71, %c0_72], %114 {strides = array<i32>} : memref<2x256x128xf32, #tpu.memory_space<vmem>>, vector<1x256x128xf32>,
    return
  }
  func.func @transform_0(%arg0: i32) -> (i32, i32) {
    %c0_i32 = arith.constant 0 : i32
    %c0_i32_0 = arith.constant 0 : i32
    return %arg0, %c0_i32 : i32, i32
  }
  func.func @transform_1(%arg0: i32) -> (i32, i32, i32) {
    %c0_i32 = arith.constant 0 : i32
    %c0_i32_0 = arith.constant 0 : i32
    %c0_i32_1 = arith.constant 0 : i32
    %c0_i32_2 = arith.constant 0 : i32
    return %c0_i32, %c0_i32_0, %c0_i32_1 : i32, i32, i32
  }
  func.func @transform_2(%arg0: i32) -> (i32, i32) {
    %c0_i32 = arith.constant 0 : i32
    %c0_i32_0 = arith.constant 0 : i32
    %c0_i32_1 = arith.constant 0 : i32
    return %c0_i32, %c0_i32_0 : i32, i32
  }
  func.func @transform_3(%arg0: i32) -> (i32, i32, i32) {
    %c0_i32 = arith.constant 0 : i32
    %c0_i32_0 = arith.constant 0 : i32
    %c0_i32_1 = arith.constant 0 : i32
    %c0_i32_2 = arith.constant 0 : i32
    return %c0_i32, %c0_i32_0, %c0_i32_1 : i32, i32, i32
  }
  func.func @transform_4(%arg0: i32) -> (i32, i32) {
    %c0_i32 = arith.constant 0 : i32
    %c0_i32_0 = arith.constant 0 : i32
    %c0_i32_1 = arith.constant 0 : i32
    return %c0_i32, %c0_i32_0 : i32, i32
  }
  func.func @transform_5(%arg0: i32) -> (i32, i32, i32) {
    %c0_i32 = arith.constant 0 : i32
    %c0_i32_0 = arith.constant 0 : i32
    %c0_i32_1 = arith.constant 0 : i32
    %c0_i32_2 = arith.constant 0 : i32
    return %c0_i32, %c0_i32_0, %c0_i32_1 : i32, i32, i32
  }
  func.func @transform_6(%arg0: i32) -> (i32, i32, i32) {
    %c0_i32 = arith.constant 0 : i32
    %c0_i32_0 = arith.constant 0 : i32
    %c0_i32_1 = arith.constant 0 : i32
    %c0_i32_2 = arith.constant 0 : i32
    return %c0_i32, %c0_i32_0, %c0_i32_1 : i32, i32, i32
  }
  func.func @transform_7(%arg0: i32) -> (i32, i32) {
    %c0_i32 = arith.constant 0 : i32
    %c0_i32_0 = arith.constant 0 : i32
    %c0_i32_1 = arith.constant 0 : i32
    return %c0_i32, %c0_i32_0 : i32, i32
  }
  func.func @transform_8(%arg0: i32) -> (i32, i32, i32) {
    %c0_i32 = arith.constant 0 : i32
    %c0_i32_0 = arith.constant 0 : i32
    %c0_i32_1 = arith.constant 0 : i32
    return %arg0, %c0_i32, %c0_i32_0 : i32, i32, i32
  }
}

</mosaic_0001>

<llo_original>
// kernel: tpu_custom_call.1
$region0: #{tpu_custom_call.1}
  #allocation0 [shape = 'u32[]', space=smem, size = 0x4, offset = 0x4, fixed_abs, tag = 'smem constant byte address 0x4 - core index']
  #allocation1 [shape = 'u32[144,128]{1,0:T(1,128)}', space=vmem, size = 0x12000, scoped, tag = 'internal scratch']
  %s0 = inlined_call_operand.vmem [shape: f32[256,8], index: 0, kind: input, shape index: {}]
  %s1 = inlined_call_operand.vmem [shape: f32[3,8,64], index: 1, kind: input, shape index: {}]
  %s2 = inlined_call_operand.vmem [shape: f32[1,64], index: 2, kind: input, shape index: {}]
  %s3 = inlined_call_operand.vmem [shape: f32[3,64,128], index: 3, kind: input, shape index: {}]
  %s4 = inlined_call_operand.vmem [shape: f32[1,128], index: 4, kind: input, shape index: {}]
  %s5 = inlined_call_operand.hbm [shape: f32[3,64,256], index: 5, kind: input, shape index: {}]
  %s6 = inlined_call_operand.hbm [shape: f32[3,128,256], index: 6, kind: input, shape index: {}]
  %s7 = inlined_call_operand.vmem [shape: f32[1,256], index: 7, kind: input, shape index: {}]
  %s8 = inlined_call_operand.hbm [shape: f32[2,256,128], index: 8, kind: output, shape index: {}]
  %s9 = sld [smem:[#allocation0]]
  $region50: #{tpu_custom_call.1} parent=0
    _
  %s11 = ssub.s32 1, %s9
  %s12 = scalar_select 0, %s11, %s9
  $region1: #{tpu_custom_call.1} parent=0
    #allocation2 [shape = 'u8[196608]{0}', space=vmem, size = 0x30000, scoped, tag = 'input window, operand 5, single buffered']
    #allocation3 [shape = 's32[1]{0}', space=sflag, size = 0x4, scoped, tag = 'scoped memory for tpu_custom_call.1']
    #allocation4 [shape = 's32[1]{0}', space=sflag, size = 0x4, scoped, tag = 'scoped memory for tpu_custom_call.1']
    #allocation5 [shape = 'u8[393216]{0}', space=vmem, size = 0x60000, scoped, tag = 'input window, operand 6, single buffered']
    #allocation6 [shape = 's32[1]{0}', space=sflag, size = 0x4, scoped, tag = 'scoped memory for tpu_custom_call.1']
    #allocation7 [shape = 'u8[262144]{0}', space=vmem, size = 0x40000, scoped, tag = 'output window, operand 0, single buffered']
    %13 = vsyncpa [#allocation3], 0
    %14 = vsyncpa [#allocation6], 0
    %15 = vsyncpa [#allocation4], 0
    // Predicated region
    $region2: #{tpu_custom_call.1} parent=1 // pred_check
      _
    $region3: #{tpu_custom_call.1} parent=1 // pred_check_branch
      %17 = sbr.rel (0) target = $region5
    $region4: #{tpu_custom_call.1} parent=1 // pred_region
      _
    $region5: #{tpu_custom_call.1} parent=1 // pred_fallthru
      _
    // Predicated region
    $region6: #{tpu_custom_call.1} parent=1 // pred_check
      _
    $region7: #{tpu_custom_call.1} parent=1 // pred_check_branch
      %19 = sbr.rel (0) target = $region9
    $region8: #{tpu_custom_call.1} parent=1 // pred_region
      _
    $region9: #{tpu_custom_call.1} parent=1 // pred_fallthru
      _
    // Predicated region
    $region10: #{tpu_custom_call.1} parent=1 // pred_check
      _
    $region11: #{tpu_custom_call.1} parent=1 // pred_check_branch
      %21 = sbr.rel (0) target = $region13
    $region12: #{tpu_custom_call.1} parent=1 // pred_region
      _
    $region13: #{tpu_custom_call.1} parent=1 // pred_fallthru
      _
    // Predicated region
    $region14: #{tpu_custom_call.1} parent=1 // pred_check
      _
    $region15: #{tpu_custom_call.1} parent=1 // pred_check_branch
      %23 = sbr.rel (0) target = $region17
    $region16: #{tpu_custom_call.1} parent=1 // pred_region
      _
    $region17: #{tpu_custom_call.1} parent=1 // pred_fallthru
      _
    // Predicated region
    $region18: #{tpu_custom_call.1} parent=1 // pred_check
      _
    $region19: #{tpu_custom_call.1} parent=1 // pred_check_branch
      %25 = sbr.rel (0) target = $region21
    $region20: #{tpu_custom_call.1} parent=1 // pred_region
      _
    $region21: #{tpu_custom_call.1} parent=1 // pred_fallthru
      _
    // Predicated region
    $region22: #{tpu_custom_call.1} parent=1 // pred_check
      _
    $region23: #{tpu_custom_call.1} parent=1 // pred_check_branch
      %27 = sbr.rel (0) target = $region25
    $region24: #{tpu_custom_call.1} parent=1 // pred_region
      %s29 = ssub.s32 6144, 6144
      %30 = vsyncadd [#allocation3], %s29
      %s31 = sshll.u32 [#allocation2], 4
      %s32 = int_to_ptr.vmem [resolvable:$true] %s31
      %37 = dma.hbm_to_vmem [thread:$0]  %s5, 6144, %s32, [#allocation3], 256, 256, 16
    $region25: #{tpu_custom_call.1} parent=1 // pred_fallthru
      _
    // Predicated region
    $region26: #{tpu_custom_call.1} parent=1 // pred_check
      _
    $region27: #{tpu_custom_call.1} parent=1 // pred_check_branch
      %39 = sbr.rel (0) target = $region29
    $region28: #{tpu_custom_call.1} parent=1 // pred_region
      %s41 = ssub.s32 12288, 12288
      %42 = vsyncadd [#allocation6], %s41
      %s43 = sshll.u32 [#allocation5], 4
      %s44 = int_to_ptr.vmem [resolvable:$true] %s43
      %49 = dma.hbm_to_vmem [thread:$0]  %s6, 12288, %s44, [#allocation6], 256, 256, 16
    $region29: #{tpu_custom_call.1} parent=1 // pred_fallthru
      _
    // Predicated region
    $region30: #{tpu_custom_call.1} parent=1 // pred_check
      _
    $region31: #{tpu_custom_call.1} parent=1 // pred_check_branch
      %51 = sbr.rel (0) target = $region33
    $region32: #{tpu_custom_call.1} parent=1 // pred_region
      _
    $region33: #{tpu_custom_call.1} parent=1 // pred_fallthru
      _
    // Predicated region
    $region34: #{tpu_custom_call.1} parent=1 // pred_check
      _
    $region35: #{tpu_custom_call.1} parent=1 // pred_check_branch
      %53 = sbr.rel (0) target = $region37
    $region36: #{tpu_custom_call.1} parent=1 // pred_region
      %54 = dma.done [#allocation3], 6144
    $region37: #{tpu_custom_call.1} parent=1 // pred_fallthru
      _
    // Predicated region
    $region38: #{tpu_custom_call.1} parent=1 // pred_check
      _
    $region39: #{tpu_custom_call.1} parent=1 // pred_check_branch
      %56 = sbr.rel (0) target = $region41
    $region40: #{tpu_custom_call.1} parent=1 // pred_region
      %57 = dma.done [#allocation6], 12288
    $region41: #{tpu_custom_call.1} parent=1 // pred_fallthru
      _
    %v58 = vld [vmem:[%s0] sm:$0xff]
    %v59 = vld [vmem:[%s0 + $0x8] sm:$0xff]
    %v60 = vld [vmem:[%s0 + $0x10] sm:$0xff]
    %v61 = vld [vmem:[%s0 + $0x18] sm:$0xff]
    %v62 = vld [vmem:[%s0 + $0x20] sm:$0xff]
    %v63 = vld [vmem:[%s0 + $0x28] sm:$0xff]
    %v64 = vld [vmem:[%s0 + $0x30] sm:$0xff]
    %v65 = vld [vmem:[%s0 + $0x38] sm:$0xff]
    %v66 = vld [vmem:[%s0 + $0x40] sm:$0xff]
    %v67 = vld [vmem:[%s0 + $0x48] sm:$0xff]
    %v68 = vld [vmem:[%s0 + $0x50] sm:$0xff]
    %v69 = vld [vmem:[%s0 + $0x58] sm:$0xff]
    %v70 = vld [vmem:[%s0 + $0x60] sm:$0xff]
    %v71 = vld [vmem:[%s0 + $0x68] sm:$0xff]
    %v72 = vld [vmem:[%s0 + $0x70] sm:$0xff]
    %v73 = vld [vmem:[%s0 + $0x78] sm:$0xff]
    %v74 = vld [vmem:[%s0 + $0x80] sm:$0xff]
    %v75 = vld [vmem:[%s0 + $0x88] sm:$0xff]
    %v76 = vld [vmem:[%s0 + $0x90] sm:$0xff]
    %v77 = vld [vmem:[%s0 + $0x98] sm:$0xff]
    %v78 = vld [vmem:[%s0 + $0xa0] sm:$0xff]
    %v79 = vld [vmem:[%s0 + $0xa8] sm:$0xff]
    %v80 = vld [vmem:[%s0 + $0xb0] sm:$0xff]
    %v81 = vld [vmem:[%s0 + $0xb8] sm:$0xff]
    %v82 = vld [vmem:[%s0 + $0xc0] sm:$0xff]
    %v83 = vld [vmem:[%s0 + $0xc8] sm:$0xff]
    %v84 = vld [vmem:[%s0 + $0xd0] sm:$0xff]
    %v85 = vld [vmem:[%s0 + $0xd8] sm:$0xff]
    %v86 = vld [vmem:[%s0 + $0xe0] sm:$0xff]
    %v87 = vld [vmem:[%s0 + $0xe8] sm:$0xff]
    %v88 = vld [vmem:[%s0 + $0xf0] sm:$0xff]
    %v89 = vld [vmem:[%s0 + $0xf8] sm:$0xff]
    %v90 = vlaneseq
    %v91 = vshrl.u32 %v90, 7
    %v92 = vadd.s32 %v91, 8
    %v93 = vadd.s32 %v91, 16
    %v94 = vadd.s32 %v91, 24
    %v95 = vadd.s32 %v91, 32
    %v96 = vadd.s32 %v91, 40
    %v97 = vadd.s32 %v91, 48
    %v98 = vadd.s32 %v91, 56
    %v99 = vadd.s32 %v91, 64
    %v100 = vadd.s32 %v91, 72
    %v101 = vadd.s32 %v91, 80
    %v102 = vadd.s32 %v91, 88
    %v103 = vadd.s32 %v91, 96
    %v104 = vadd.s32 %v91, 104
    %v105 = vadd.s32 %v91, 112
    %v106 = vadd.s32 %v91, 120
    %v107 = vadd.s32 %v91, 128
    %v108 = vadd.s32 %v91, 136
    %v109 = vadd.s32 %v91, 144
    %v110 = vadd.s32 %v91, 152
    %v111 = vadd.s32 %v91, 160
    %v112 = vadd.s32 %v91, 168
    %v113 = vadd.s32 %v91, 176
    %v114 = vadd.s32 %v91, 184
    %v115 = vadd.s32 %v91, 192
    %v116 = vadd.s32 %v91, 200
    %v117 = vadd.s32 %v91, 208
    %v118 = vadd.s32 %v91, 216
    %v119 = vadd.s32 %v91, 224
    %v120 = vadd.s32 %v91, 232
    %v121 = vadd.s32 %v91, 240
    %v122 = vadd.s32 %v91, 248
    %vm123 = vcmp.eq.s32.totalorder %v91, 0
    %vm124 = vcmp.eq.s32.totalorder %v92, 0
    %vm125 = vcmp.eq.s32.totalorder %v93, 0
    %vm126 = vcmp.eq.s32.totalorder %v94, 0
    %vm127 = vcmp.eq.s32.totalorder %v95, 0
    %vm128 = vcmp.eq.s32.totalorder %v96, 0
    %vm129 = vcmp.eq.s32.totalorder %v97, 0
    %vm130 = vcmp.eq.s32.totalorder %v98, 0
    %vm131 = vcmp.eq.s32.totalorder %v99, 0
    %vm132 = vcmp.eq.s32.totalorder %v100, 0
    %vm133 = vcmp.eq.s32.totalorder %v101, 0
    %vm134 = vcmp.eq.s32.totalorder %v102, 0
    %vm135 = vcmp.eq.s32.totalorder %v103, 0
    %vm136 = vcmp.eq.s32.totalorder %v104, 0
    %vm137 = vcmp.eq.s32.totalorder %v105, 0
    %vm138 = vcmp.eq.s32.totalorder %v106, 0
    %vm139 = vcmp.eq.s32.totalorder %v107, 0
    %vm140 = vcmp.eq.s32.totalorder %v108, 0
    %vm141 = vcmp.eq.s32.totalorder %v109, 0
    %vm142 = vcmp.eq.s32.totalorder %v110, 0
    %vm143 = vcmp.eq.s32.totalorder %v111, 0
    %vm144 = vcmp.eq.s32.totalorder %v112, 0
    %vm145 = vcmp.eq.s32.totalorder %v113, 0
    %vm146 = vcmp.eq.s32.totalorder %v114, 0
    %vm147 = vcmp.eq.s32.totalorder %v115, 0
    %vm148 = vcmp.eq.s32.totalorder %v116, 0
    %vm149 = vcmp.eq.s32.totalorder %v117, 0
    %vm150 = vcmp.eq.s32.totalorder %v118, 0
    %vm151 = vcmp.eq.s32.totalorder %v119, 0
    %vm152 = vcmp.eq.s32.totalorder %v120, 0
    %vm153 = vcmp.eq.s32.totalorder %v121, 0
    %vm154 = vcmp.eq.s32.totalorder %v122, 0
    %vm155 = vcmp.eq.s32.totalorder %v91, 128
    %vm156 = vcmp.eq.s32.totalorder %v92, 128
    %vm157 = vcmp.eq.s32.totalorder %v93, 128
    %vm158 = vcmp.eq.s32.totalorder %v94, 128
    %vm159 = vcmp.eq.s32.totalorder %v95, 128
    %vm160 = vcmp.eq.s32.totalorder %v96, 128
    %vm161 = vcmp.eq.s32.totalorder %v97, 128
    %vm162 = vcmp.eq.s32.totalorder %v98, 128
    %vm163 = vcmp.eq.s32.totalorder %v99, 128
    %vm164 = vcmp.eq.s32.totalorder %v100, 128
    %vm165 = vcmp.eq.s32.totalorder %v101, 128
    %vm166 = vcmp.eq.s32.totalorder %v102, 128
    %vm167 = vcmp.eq.s32.totalorder %v103, 128
    %vm168 = vcmp.eq.s32.totalorder %v104, 128
    %vm169 = vcmp.eq.s32.totalorder %v105, 128
    %vm170 = vcmp.eq.s32.totalorder %v106, 128
    %vm171 = vcmp.eq.s32.totalorder %v107, 128
    %vm172 = vcmp.eq.s32.totalorder %v108, 128
    %vm173 = vcmp.eq.s32.totalorder %v109, 128
    %vm174 = vcmp.eq.s32.totalorder %v110, 128
    %vm175 = vcmp.eq.s32.totalorder %v111, 128
    %vm176 = vcmp.eq.s32.totalorder %v112, 128
    %vm177 = vcmp.eq.s32.totalorder %v113, 128
    %vm178 = vcmp.eq.s32.totalorder %v114, 128
    %vm179 = vcmp.eq.s32.totalorder %v115, 128
    %vm180 = vcmp.eq.s32.totalorder %v116, 128
    %vm181 = vcmp.eq.s32.totalorder %v117, 128
    %vm182 = vcmp.eq.s32.totalorder %v118, 128
    %vm183 = vcmp.eq.s32.totalorder %v119, 128
    %vm184 = vcmp.eq.s32.totalorder %v120, 128
    %vm185 = vcmp.eq.s32.totalorder %v121, 128
    %vm186 = vcmp.eq.s32.totalorder %v122, 128
    %vm187 = vmor %vm123, %vm155
    %vm188 = vmor %vm124, %vm156
    %vm189 = vmor %vm125, %vm157
    %vm190 = vmor %vm126, %vm158
    %vm191 = vmor %vm127, %vm159
    %vm192 = vmor %vm128, %vm160
    %vm193 = vmor %vm129, %vm161
    %vm194 = vmor %vm130, %vm162
    %vm195 = vmor %vm131, %vm163
    %vm196 = vmor %vm132, %vm164
    %vm197 = vmor %vm133, %vm165
    %vm198 = vmor %vm134, %vm166
    %vm199 = vmor %vm135, %vm167
    %vm200 = vmor %vm136, %vm168
    %vm201 = vmor %vm137, %vm169
    %vm202 = vmor %vm138, %vm170
    %vm203 = vmor %vm139, %vm171
    %vm204 = vmor %vm140, %vm172
    %vm205 = vmor %vm141, %vm173
    %vm206 = vmor %vm142, %vm174
    %vm207 = vmor %vm143, %vm175
    %vm208 = vmor %vm144, %vm176
    %vm209 = vmor %vm145, %vm177
    %vm210 = vmor %vm146, %vm178
    %vm211 = vmor %vm147, %vm179
    %vm212 = vmor %vm148, %vm180
    %vm213 = vmor %vm149, %vm181
    %vm214 = vmor %vm150, %vm182
    %vm215 = vmor %vm151, %vm183
    %vm216 = vmor %vm152, %vm184
    %vm217 = vmor %vm153, %vm185
    %vm218 = vmor %vm154, %vm186
    %vm219 = vcmp.eq.s32.totalorder %v91, 127
    %vm220 = vcmp.eq.s32.totalorder %v92, 127
    %vm221 = vcmp.eq.s32.totalorder %v93, 127
    %vm222 = vcmp.eq.s32.totalorder %v94, 127
    %vm223 = vcmp.eq.s32.totalorder %v95, 127
    %vm224 = vcmp.eq.s32.totalorder %v96, 127
    %vm225 = vcmp.eq.s32.totalorder %v97, 127
    %vm226 = vcmp.eq.s32.totalorder %v98, 127
    %vm227 = vcmp.eq.s32.totalorder %v99, 127
    %vm228 = vcmp.eq.s32.totalorder %v100, 127
    %vm229 = vcmp.eq.s32.totalorder %v101, 127
    %vm230 = vcmp.eq.s32.totalorder %v102, 127
    %vm231 = vcmp.eq.s32.totalorder %v103, 127
    %vm232 = vcmp.eq.s32.totalorder %v104, 127
    %vm233 = vcmp.eq.s32.totalorder %v105, 127
    %vm234 = vcmp.eq.s32.totalorder %v106, 127
    %vm235 = vcmp.eq.s32.totalorder %v107, 127
    %vm236 = vcmp.eq.s32.totalorder %v108, 127
    %vm237 = vcmp.eq.s32.totalorder %v109, 127
    %vm238 = vcmp.eq.s32.totalorder %v110, 127
    %vm239 = vcmp.eq.s32.totalorder %v111, 127
    %vm240 = vcmp.eq.s32.totalorder %v112, 127
    %vm241 = vcmp.eq.s32.totalorder %v113, 127
    %vm242 = vcmp.eq.s32.totalorder %v114, 127
    %vm243 = vcmp.eq.s32.totalorder %v115, 127
    %vm244 = vcmp.eq.s32.totalorder %v116, 127
    %vm245 = vcmp.eq.s32.totalorder %v117, 127
    %vm246 = vcmp.eq.s32.totalorder %v118, 127
    %vm247 = vcmp.eq.s32.totalorder %v119, 127
    %vm248 = vcmp.eq.s32.totalorder %v120, 127
    %vm249 = vcmp.eq.s32.totalorder %v121, 127
    %vm250 = vcmp.eq.s32.totalorder %v122, 127
    %vm251 = vcmp.eq.s32.totalorder %v91, 255
    %vm252 = vcmp.eq.s32.totalorder %v92, 255
    %vm253 = vcmp.eq.s32.totalorder %v93, 255
    %vm254 = vcmp.eq.s32.totalorder %v94, 255
    %vm255 = vcmp.eq.s32.totalorder %v95, 255
    %vm256 = vcmp.eq.s32.totalorder %v96, 255
    %vm257 = vcmp.eq.s32.totalorder %v97, 255
    %vm258 = vcmp.eq.s32.totalorder %v98, 255
    %vm259 = vcmp.eq.s32.totalorder %v99, 255
    %vm260 = vcmp.eq.s32.totalorder %v100, 255
    %vm261 = vcmp.eq.s32.totalorder %v101, 255
    %vm262 = vcmp.eq.s32.totalorder %v102, 255
    %vm263 = vcmp.eq.s32.totalorder %v103, 255
    %vm264 = vcmp.eq.s32.totalorder %v104, 255
    %vm265 = vcmp.eq.s32.totalorder %v105, 255
    %vm266 = vcmp.eq.s32.totalorder %v106, 255
    %vm267 = vcmp.eq.s32.totalorder %v107, 255
    %vm268 = vcmp.eq.s32.totalorder %v108, 255
    %vm269 = vcmp.eq.s32.totalorder %v109, 255
    %vm270 = vcmp.eq.s32.totalorder %v110, 255
    %vm271 = vcmp.eq.s32.totalorder %v111, 255
    %vm272 = vcmp.eq.s32.totalorder %v112, 255
    %vm273 = vcmp.eq.s32.totalorder %v113, 255
    %vm274 = vcmp.eq.s32.totalorder %v114, 255
    %vm275 = vcmp.eq.s32.totalorder %v115, 255
    %vm276 = vcmp.eq.s32.totalorder %v116, 255
    %vm277 = vcmp.eq.s32.totalorder %v117, 255
    %vm278 = vcmp.eq.s32.totalorder %v118, 255
    %vm279 = vcmp.eq.s32.totalorder %v119, 255
    %vm280 = vcmp.eq.s32.totalorder %v120, 255
    %vm281 = vcmp.eq.s32.totalorder %v121, 255
    %vm282 = vcmp.eq.s32.totalorder %v122, 255
    %vm283 = vmor %vm219, %vm251
    %vm284 = vmor %vm220, %vm252
    %vm285 = vmor %vm221, %vm253
    %vm286 = vmor %vm222, %vm254
    %vm287 = vmor %vm223, %vm255
    %vm288 = vmor %vm224, %vm256
    %vm289 = vmor %vm225, %vm257
    %vm290 = vmor %vm226, %vm258
    %vm291 = vmor %vm227, %vm259
    %vm292 = vmor %vm228, %vm260
    %vm293 = vmor %vm229, %vm261
    %vm294 = vmor %vm230, %vm262
    %vm295 = vmor %vm231, %vm263
    %vm296 = vmor %vm232, %vm264
    %vm297 = vmor %vm233, %vm265
    %vm298 = vmor %vm234, %vm266
    %vm299 = vmor %vm235, %vm267
    %vm300 = vmor %vm236, %vm268
    %vm301 = vmor %vm237, %vm269
    %vm302 = vmor %vm238, %vm270
    %vm303 = vmor %vm239, %vm271
    %vm304 = vmor %vm240, %vm272
    %vm305 = vmor %vm241, %vm273
    %vm306 = vmor %vm242, %vm274
    %vm307 = vmor %vm243, %vm275
    %vm308 = vmor %vm244, %vm276
    %vm309 = vmor %vm245, %vm277
    %vm310 = vmor %vm246, %vm278
    %vm311 = vmor %vm247, %vm279
    %vm312 = vmor %vm248, %vm280
    %vm313 = vmor %vm249, %vm281
    %vm314 = vmor %vm250, %vm282
    %v315 = vsel %vm187, 0.0, 1.0
    %v316 = vsel %vm188, 0.0, 1.0
    %v317 = vsel %vm189, 0.0, 1.0
    %v318 = vsel %vm190, 0.0, 1.0
    %v319 = vsel %vm191, 0.0, 1.0
    %v320 = vsel %vm192, 0.0, 1.0
    %v321 = vsel %vm193, 0.0, 1.0
    %v322 = vsel %vm194, 0.0, 1.0
    %v323 = vsel %vm195, 0.0, 1.0
    %v324 = vsel %vm196, 0.0, 1.0
    %v325 = vsel %vm197, 0.0, 1.0
    %v326 = vsel %vm198, 0.0, 1.0
    %v327 = vsel %vm199, 0.0, 1.0
    %v328 = vsel %vm200, 0.0, 1.0
    %v329 = vsel %vm201, 0.0, 1.0
    %v330 = vsel %vm202, 0.0, 1.0
    %v331 = vsel %vm203, 0.0, 1.0
    %v332 = vsel %vm204, 0.0, 1.0
    %v333 = vsel %vm205, 0.0, 1.0
    %v334 = vsel %vm206, 0.0, 1.0
    %v335 = vsel %vm207, 0.0, 1.0
    %v336 = vsel %vm208, 0.0, 1.0
    %v337 = vsel %vm209, 0.0, 1.0
    %v338 = vsel %vm210, 0.0, 1.0
    %v339 = vsel %vm211, 0.0, 1.0
    %v340 = vsel %vm212, 0.0, 1.0
    %v341 = vsel %vm213, 0.0, 1.0
    %v342 = vsel %vm214, 0.0, 1.0
    %v343 = vsel %vm215, 0.0, 1.0
    %v344 = vsel %vm216, 0.0, 1.0
    %v345 = vsel %vm217, 0.0, 1.0
    %v346 = vsel %vm218, 0.0, 1.0
    %v347 = vsel %vm283, 0.0, 1.0
    %v348 = vsel %vm284, 0.0, 1.0
    %v349 = vsel %vm285, 0.0, 1.0
    %v350 = vsel %vm286, 0.0, 1.0
    %v351 = vsel %vm287, 0.0, 1.0
    %v352 = vsel %vm288, 0.0, 1.0
    %v353 = vsel %vm289, 0.0, 1.0
    %v354 = vsel %vm290, 0.0, 1.0
    %v355 = vsel %vm291, 0.0, 1.0
    %v356 = vsel %vm292, 0.0, 1.0
    %v357 = vsel %vm293, 0.0, 1.0
    %v358 = vsel %vm294, 0.0, 1.0
    %v359 = vsel %vm295, 0.0, 1.0
    %v360 = vsel %vm296, 0.0, 1.0
    %v361 = vsel %vm297, 0.0, 1.0
    %v362 = vsel %vm298, 0.0, 1.0
    %v363 = vsel %vm299, 0.0, 1.0
    %v364 = vsel %vm300, 0.0, 1.0
    %v365 = vsel %vm301, 0.0, 1.0
    %v366 = vsel %vm302, 0.0, 1.0
    %v367 = vsel %vm303, 0.0, 1.0
    %v368 = vsel %vm304, 0.0, 1.0
    %v369 = vsel %vm305, 0.0, 1.0
    %v370 = vsel %vm306, 0.0, 1.0
    %v371 = vsel %vm307, 0.0, 1.0
    %v372 = vsel %vm308, 0.0, 1.0
    %v373 = vsel %vm309, 0.0, 1.0
    %v374 = vsel %vm310, 0.0, 1.0
    %v375 = vsel %vm311, 0.0, 1.0
    %v376 = vsel %vm312, 0.0, 1.0
    %v377 = vsel %vm313, 0.0, 1.0
    %v378 = vsel %vm314, 0.0, 1.0
    %v379 = vrot.slane %v58, 7
    %v380 = vrot.slane %v59, 7
    %v381 = vrot.slane %v60, 7
    %v382 = vrot.slane %v61, 7
    %v383 = vrot.slane %v62, 7
    %v384 = vrot.slane %v63, 7
    %v385 = vrot.slane %v64, 7
    %v386 = vrot.slane %v65, 7
    %v387 = vrot.slane %v66, 7
    %v388 = vrot.slane %v67, 7
    %v389 = vrot.slane %v68, 7
    %v390 = vrot.slane %v69, 7
    %v391 = vrot.slane %v70, 7
    %v392 = vrot.slane %v71, 7
    %v393 = vrot.slane %v72, 7
    %v394 = vrot.slane %v73, 7
    %v395 = vrot.slane %v74, 7
    %v396 = vrot.slane %v75, 7
    %v397 = vrot.slane %v76, 7
    %v398 = vrot.slane %v77, 7
    %v399 = vrot.slane %v78, 7
    %v400 = vrot.slane %v79, 7
    %v401 = vrot.slane %v80, 7
    %v402 = vrot.slane %v81, 7
    %v403 = vrot.slane %v82, 7
    %v404 = vrot.slane %v83, 7
    %v405 = vrot.slane %v84, 7
    %v406 = vrot.slane %v85, 7
    %v407 = vrot.slane %v86, 7
    %v408 = vrot.slane %v87, 7
    %v409 = vrot.slane %v88, 7
    %v410 = vrot.slane %v89, 7
    %vm411 = vcmp.lt.s32.totalorder %v91, 1
    %v412 = vsel %vm411, %v409, %v410
    %v413 = vsel %vm411, %v408, %v409
    %v414 = vsel %vm411, %v407, %v408
    %v415 = vsel %vm411, %v406, %v407
    %v416 = vsel %vm411, %v405, %v406
    %v417 = vsel %vm411, %v404, %v405
    %v418 = vsel %vm411, %v403, %v404
    %v419 = vsel %vm411, %v402, %v403
    %v420 = vsel %vm411, %v401, %v402
    %v421 = vsel %vm411, %v400, %v401
    %v422 = vsel %vm411, %v399, %v400
    %v423 = vsel %vm411, %v398, %v399
    %v424 = vsel %vm411, %v397, %v398
    %v425 = vsel %vm411, %v396, %v397
    %v426 = vsel %vm411, %v395, %v396
    %v427 = vsel %vm411, %v394, %v395
    %v428 = vsel %vm411, %v393, %v394
    %v429 = vsel %vm411, %v392, %v393
    %v430 = vsel %vm411, %v391, %v392
    %v431 = vsel %vm411, %v390, %v391
    %v432 = vsel %vm411, %v389, %v390
    %v433 = vsel %vm411, %v388, %v389
    %v434 = vsel %vm411, %v387, %v388
    %v435 = vsel %vm411, %v386, %v387
    %v436 = vsel %vm411, %v385, %v386
    %v437 = vsel %vm411, %v384, %v385
    %v438 = vsel %vm411, %v383, %v384
    %v439 = vsel %vm411, %v382, %v383
    %v440 = vsel %vm411, %v381, %v382
    %v441 = vsel %vm411, %v380, %v381
    %v442 = vsel %vm411, %v379, %v380
    %v443 = vsel %vm411, %v410, %v379
    %v444 = vmul.f32 %v443, %v315
    %v445 = vmul.f32 %v442, %v316
    %v446 = vmul.f32 %v441, %v317
    %v447 = vmul.f32 %v440, %v318
    %v448 = vmul.f32 %v439, %v319
    %v449 = vmul.f32 %v438, %v320
    %v450 = vmul.f32 %v437, %v321
    %v451 = vmul.f32 %v436, %v322
    %v452 = vmul.f32 %v435, %v323
    %v453 = vmul.f32 %v434, %v324
    %v454 = vmul.f32 %v433, %v325
    %v455 = vmul.f32 %v432, %v326
    %v456 = vmul.f32 %v431, %v327
    %v457 = vmul.f32 %v430, %v328
    %v458 = vmul.f32 %v429, %v329
    %v459 = vmul.f32 %v428, %v330
    %v460 = vmul.f32 %v427, %v331
    %v461 = vmul.f32 %v426, %v332
    %v462 = vmul.f32 %v425, %v333
    %v463 = vmul.f32 %v424, %v334
    %v464 = vmul.f32 %v423, %v335
    %v465 = vmul.f32 %v422, %v336
    %v466 = vmul.f32 %v421, %v337
    %v467 = vmul.f32 %v420, %v338
    %v468 = vmul.f32 %v419, %v339
    %v469 = vmul.f32 %v418, %v340
    %v470 = vmul.f32 %v417, %v341
    %v471 = vmul.f32 %v416, %v342
    %v472 = vmul.f32 %v415, %v343
    %v473 = vmul.f32 %v414, %v344
    %v474 = vmul.f32 %v413, %v345
    %v475 = vmul.f32 %v412, %v346
    %v476 = vrot.slane %v58, 1
    %v477 = vrot.slane %v59, 1
    %v478 = vrot.slane %v60, 1
    %v479 = vrot.slane %v61, 1
    %v480 = vrot.slane %v62, 1
    %v481 = vrot.slane %v63, 1
    %v482 = vrot.slane %v64, 1
    %v483 = vrot.slane %v65, 1
    %v484 = vrot.slane %v66, 1
    %v485 = vrot.slane %v67, 1
    %v486 = vrot.slane %v68, 1
    %v487 = vrot.slane %v69, 1
    %v488 = vrot.slane %v70, 1
    %v489 = vrot.slane %v71, 1
    %v490 = vrot.slane %v72, 1
    %v491 = vrot.slane %v73, 1
    %v492 = vrot.slane %v74, 1
    %v493 = vrot.slane %v75, 1
    %v494 = vrot.slane %v76, 1
    %v495 = vrot.slane %v77, 1
    %v496 = vrot.slane %v78, 1
    %v497 = vrot.slane %v79, 1
    %v498 = vrot.slane %v80, 1
    %v499 = vrot.slane %v81, 1
    %v500 = vrot.slane %v82, 1
    %v501 = vrot.slane %v83, 1
    %v502 = vrot.slane %v84, 1
    %v503 = vrot.slane %v85, 1
    %v504 = vrot.slane %v86, 1
    %v505 = vrot.slane %v87, 1
    %v506 = vrot.slane %v88, 1
    %v507 = vrot.slane %v89, 1
    %vm508 = vcmp.lt.s32.totalorder %v91, 7
    %v509 = vsel %vm508, %v506, %v507
    %v510 = vsel %vm508, %v505, %v506
    %v511 = vsel %vm508, %v504, %v505
    %v512 = vsel %vm508, %v503, %v504
    %v513 = vsel %vm508, %v502, %v503
    %v514 = vsel %vm508, %v501, %v502
    %v515 = vsel %vm508, %v500, %v501
    %v516 = vsel %vm508, %v499, %v500
    %v517 = vsel %vm508, %v498, %v499
    %v518 = vsel %vm508, %v497, %v498
    %v519 = vsel %vm508, %v496, %v497
    %v520 = vsel %vm508, %v495, %v496
    %v521 = vsel %vm508, %v494, %v495
    %v522 = vsel %vm508, %v493, %v494
    %v523 = vsel %vm508, %v492, %v493
    %v524 = vsel %vm508, %v491, %v492
    %v525 = vsel %vm508, %v490, %v491
    %v526 = vsel %vm508, %v489, %v490
    %v527 = vsel %vm508, %v488, %v489
    %v528 = vsel %vm508, %v487, %v488
    %v529 = vsel %vm508, %v486, %v487
    %v530 = vsel %vm508, %v485, %v486
    %v531 = vsel %vm508, %v484, %v485
    %v532 = vsel %vm508, %v483, %v484
    %v533 = vsel %vm508, %v482, %v483
    %v534 = vsel %vm508, %v481, %v482
    %v535 = vsel %vm508, %v480, %v481
    %v536 = vsel %vm508, %v479, %v480
    %v537 = vsel %vm508, %v478, %v479
    %v538 = vsel %vm508, %v477, %v478
    %v539 = vsel %vm508, %v476, %v477
    %v540 = vsel %vm508, %v507, %v476
    %v541 = vmul.f32 %v539, %v347
    %v542 = vmul.f32 %v538, %v348
    %v543 = vmul.f32 %v537, %v349
    %v544 = vmul.f32 %v536, %v350
    %v545 = vmul.f32 %v535, %v351
    %v546 = vmul.f32 %v534, %v352
    %v547 = vmul.f32 %v533, %v353
    %v548 = vmul.f32 %v532, %v354
    %v549 = vmul.f32 %v531, %v355
    %v550 = vmul.f32 %v530, %v356
    %v551 = vmul.f32 %v529, %v357
    %v552 = vmul.f32 %v528, %v358
    %v553 = vmul.f32 %v527, %v359
    %v554 = vmul.f32 %v526, %v360
    %v555 = vmul.f32 %v525, %v361
    %v556 = vmul.f32 %v524, %v362
    %v557 = vmul.f32 %v523, %v363
    %v558 = vmul.f32 %v522, %v364
    %v559 = vmul.f32 %v521, %v365
    %v560 = vmul.f32 %v520, %v366
    %v561 = vmul.f32 %v519, %v367
    %v562 = vmul.f32 %v518, %v368
    %v563 = vmul.f32 %v517, %v369
    %v564 = vmul.f32 %v516, %v370
    %v565 = vmul.f32 %v515, %v371
    %v566 = vmul.f32 %v514, %v372
    %v567 = vmul.f32 %v513, %v373
    %v568 = vmul.f32 %v512, %v374
    %v569 = vmul.f32 %v511, %v375
    %v570 = vmul.f32 %v510, %v376
    %v571 = vmul.f32 %v509, %v377
    %v572 = vmul.f32 %v540, %v378
    %v573 = vld [vmem:[%s1] sm:$0xff]
    %s574 = scalar_lea.vmem %s1, 8
    %v575 = vld [vmem:[%s574] sm:$0xff]
    %vm576 = vcmask 64512
    %v578 = vsel %vm576, %v58, 0
    %v581 = vsel %vm576, %v59, 0
    %v584 = vsel %vm576, %v60, 0
    %v587 = vsel %vm576, %v61, 0
    %v590 = vsel %vm576, %v62, 0
    %v593 = vsel %vm576, %v63, 0
    %v596 = vsel %vm576, %v64, 0
    %v599 = vsel %vm576, %v65, 0
    %v602 = vsel %vm576, %v66, 0
    %v605 = vsel %vm576, %v67, 0
    %v608 = vsel %vm576, %v68, 0
    %v611 = vsel %vm576, %v69, 0
    %v614 = vsel %vm576, %v70, 0
    %v617 = vsel %vm576, %v71, 0
    %v620 = vsel %vm576, %v72, 0
    %v623 = vsel %vm576, %v73, 0
    %v626 = vsel %vm576, %v74, 0
    %v629 = vsel %vm576, %v75, 0
    %v632 = vsel %vm576, %v76, 0
    %v635 = vsel %vm576, %v77, 0
    %v638 = vsel %vm576, %v78, 0
    %v641 = vsel %vm576, %v79, 0
    %v644 = vsel %vm576, %v80, 0
    %v647 = vsel %vm576, %v81, 0
    %v650 = vsel %vm576, %v82, 0
    %v653 = vsel %vm576, %v83, 0
    %v656 = vsel %vm576, %v84, 0
    %v659 = vsel %vm576, %v85, 0
    %v662 = vsel %vm576, %v86, 0
    %v665 = vsel %vm576, %v87, 0
    %v668 = vsel %vm576, %v88, 0
    %v671 = vsel %vm576, %v89, 0
    %673 = vmatprep.subr.mxu0 0.0
    %674 = vmatpush1.msra.mxu0 %v575
    %675 = vmatprep.subr.mxu0 0.0
    %676 = vmatpush1.msra.mxu0 0.0
    %677 = vmatprep.subr.mxu0 0.0
    %678 = vmatpush1.msra.mxu0 0.0
    %679 = vmatprep.subr.mxu0 0.0
    %680 = vmatpush1.msra.mxu0 0.0
    %681 = vmatprep.subr.mxu0 0.0
    %682 = vmatpush1.msra.mxu0 0.0
    %683 = vmatprep.subr.mxu0 0.0
    %684 = vmatpush1.msra.mxu0 0.0
    %685 = vmatprep.subr.mxu0 0.0
    %686 = vmatpush1.msra.mxu0 0.0
    %687 = vmatprep.subr.mxu0 0.0
    %688 = vmatpush1.msra.mxu0 0.0
    %689 = vmatprep.subr.mxu0 0.0
    %690 = vmatpush1.msra.mxu0 0.0
    %691 = vmatprep.subr.mxu0 0.0
    %692 = vmatpush1.msra.mxu0 0.0
    %693 = vmatprep.subr.mxu0 0.0
    %694 = vmatpush1.msra.mxu0 0.0
    %695 = vmatprep.subr.mxu0 0.0
    %696 = vmatpush1.msra.mxu0 0.0
    %697 = vmatprep.subr.mxu0 0.0
    %698 = vmatpush1.msra.mxu0 0.0
    %699 = vmatprep.subr.mxu0 0.0
    %700 = vmatpush1.msra.mxu0 0.0
    %701 = vmatprep.subr.mxu0 0.0
    %702 = vmatpush1.msra.mxu0 0.0
    %703 = vmatprep.subr.mxu0 0.0
    %704 = vmatpush1.msra.mxu0 0.0
    %705 = vmatprep.subr.mxu0 0.0
    %706 = vmatpush1.msra.mxu0 0.0
    %707 = vmatprep.subr.mxu0 0.0
    %708 = vmatpush1.msra.mxu0 0.0
    %709 = vmatprep.subr.mxu0 0.0
    %710 = vmatpush1.msra.mxu0 0.0
    %711 = vmatprep.subr.mxu0 0.0
    %712 = vmatpush1.msra.mxu0 0.0
    %713 = vmatprep.subr.mxu0 0.0
    %714 = vmatpush1.msra.mxu0 0.0
    %715 = vmatprep.subr.mxu0 0.0
    %716 = vmatpush1.msra.mxu0 0.0
    %717 = vmatprep.subr.mxu0 0.0
    %718 = vmatpush1.msra.mxu0 0.0
    %719 = vmatprep.subr.mxu0 0.0
    %720 = vmatpush1.msra.mxu0 0.0
    %721 = vmatprep.subr.mxu0 0.0
    %722 = vmatpush1.msra.mxu0 0.0
    %723 = vmatprep.subr.mxu0 0.0
    %724 = vmatpush1.msra.mxu0 0.0
    %725 = vmatprep.subr.mxu0 0.0
    %726 = vmatpush1.msra.mxu0 0.0
    %727 = vmatprep.subr.mxu0 0.0
    %728 = vmatpush1.msra.mxu0 0.0
    %729 = vmatprep.subr.mxu0 0.0
    %730 = vmatpush1.msra.mxu0 0.0
    %731 = vmatprep.subr.mxu0 0.0
    %732 = vmatpush1.msra.mxu0 0.0
    %733 = vmatprep.subr.mxu0 0.0
    %734 = vmatpush1.msra.mxu0 0.0
    %735 = vmatprep.subr.mxu0 0.0
    %736 = vmatpush1.msra.mxu0 0.0
    %737 = vmatprep.mubr.f32.mxu0 0.0
    %738 = vmatmul.mubr.f32.gmra.mrb[0].mxu0 %v578
    %v739 = vpop.f32.mrb[0].mxu0
    %v740 = vadd.f32 0.0, %v739
    %v741 = vpop.f32.mrb[0].mxu0
    %742 = vmatprep.mubr.f32.mxu0 0.0
    %743 = vmatmul.mubr.f32.gmra.mrb[0].mxu0 %v581
    %v744 = vpop.f32.mrb[0].mxu0
    %v745 = vadd.f32 0.0, %v744
    %v746 = vpop.f32.mrb[0].mxu0
    %747 = vmatprep.mubr.f32.mxu0 0.0
    %748 = vmatmul.mubr.f32.gmra.mrb[0].mxu0 %v584
    %v749 = vpop.f32.mrb[0].mxu0
    %v750 = vadd.f32 0.0, %v749
    %v751 = vpop.f32.mrb[0].mxu0
    %752 = vmatprep.mubr.f32.mxu0 0.0
    %753 = vmatmul.mubr.f32.gmra.mrb[0].mxu0 %v587
    %v754 = vpop.f32.mrb[0].mxu0
    %v755 = vadd.f32 0.0, %v754
    %v756 = vpop.f32.mrb[0].mxu0
    %757 = vmatprep.mubr.f32.mxu0 0.0
    %758 = vmatmul.mubr.f32.gmra.mrb[0].mxu0 %v590
    %v759 = vpop.f32.mrb[0].mxu0
    %v760 = vadd.f32 0.0, %v759
    %v761 = vpop.f32.mrb[0].mxu0
    %762 = vmatprep.mubr.f32.mxu0 0.0
    %763 = vmatmul.mubr.f32.gmra.mrb[0].mxu0 %v593
    %v764 = vpop.f32.mrb[0].mxu0
    %v765 = vadd.f32 0.0, %v764
    %v766 = vpop.f32.mrb[0].mxu0
    %767 = vmatprep.mubr.f32.mxu0 0.0
    %768 = vmatmul.mubr.f32.gmra.mrb[0].mxu0 %v596
    %v769 = vpop.f32.mrb[0].mxu0
    %v770 = vadd.f32 0.0, %v769
    %v771 = vpop.f32.mrb[0].mxu0
    %772 = vmatprep.mubr.f32.mxu0 0.0
    %773 = vmatmul.mubr.f32.gmra.mrb[0].mxu0 %v599
    %v774 = vpop.f32.mrb[0].mxu0
    %v775 = vadd.f32 0.0, %v774
    %v776 = vpop.f32.mrb[0].mxu0
    %777 = vmatprep.mubr.f32.mxu0 0.0
    %778 = vmatmul.mubr.f32.gmra.mrb[0].mxu0 %v602
    %v779 = vpop.f32.mrb[0].mxu0
    %v780 = vadd.f32 0.0, %v779
    %v781 = vpop.f32.mrb[0].mxu0
    %782 = vmatprep.mubr.f32.mxu0 0.0
    %783 = vmatmul.mubr.f32.gmra.mrb[0].mxu0 %v605
    %v784 = vpop.f32.mrb[0].mxu0
    %v785 = vadd.f32 0.0, %v784
    %v786 = vpop.f32.mrb[0].mxu0
    %787 = vmatprep.mubr.f32.mxu0 0.0
    %788 = vmatmul.mubr.f32.gmra.mrb[0].mxu0 %v608
    %v789 = vpop.f32.mrb[0].mxu0
    %v790 = vadd.f32 0.0, %v789
    %v791 = vpop.f32.mrb[0].mxu0
    %792 = vmatprep.mubr.f32.mxu0 0.0
    %793 = vmatmul.mubr.f32.gmra.mrb[0].mxu0 %v611
    %v794 = vpop.f32.mrb[0].mxu0
    %v795 = vadd.f32 0.0, %v794
    %v796 = vpop.f32.mrb[0].mxu0
    %797 = vmatprep.mubr.f32.mxu0 0.0
    %798 = vmatmul.mubr.f32.gmra.mrb[0].mxu0 %v614
    %v799 = vpop.f32.mrb[0].mxu0
    %v800 = vadd.f32 0.0, %v799
    %v801 = vpop.f32.mrb[0].mxu0
    %802 = vmatprep.mubr.f32.mxu0 0.0
    %803 = vmatmul.mubr.f32.gmra.mrb[0].mxu0 %v617
    %v804 = vpop.f32.mrb[0].mxu0
    %v805 = vadd.f32 0.0, %v804
    %v806 = vpop.f32.mrb[0].mxu0
    %807 = vmatprep.mubr.f32.mxu0 0.0
    %808 = vmatmul.mubr.f32.gmra.mrb[0].mxu0 %v620
    %v809 = vpop.f32.mrb[0].mxu0
    %v810 = vadd.f32 0.0, %v809
    %v811 = vpop.f32.mrb[0].mxu0
    %812 = vmatprep.mubr.f32.mxu0 0.0
    %813 = vmatmul.mubr.f32.gmra.mrb[0].mxu0 %v623
    %v814 = vpop.f32.mrb[0].mxu0
    %v815 = vadd.f32 0.0, %v814
    %v816 = vpop.f32.mrb[0].mxu0
    %817 = vmatprep.mubr.f32.mxu0 0.0
    %818 = vmatmul.mubr.f32.gmra.mrb[0].mxu0 %v626
    %v819 = vpop.f32.mrb[0].mxu0
    %v820 = vadd.f32 0.0, %v819
    %v821 = vpop.f32.mrb[0].mxu0
    %822 = vmatprep.mubr.f32.mxu0 0.0
    %823 = vmatmul.mubr.f32.gmra.mrb[0].mxu0 %v629
    %v824 = vpop.f32.mrb[0].mxu0
    %v825 = vadd.f32 0.0, %v824
    %v826 = vpop.f32.mrb[0].mxu0
    %827 = vmatprep.mubr.f32.mxu0 0.0
    %828 = vmatmul.mubr.f32.gmra.mrb[0].mxu0 %v632
    %v829 = vpop.f32.mrb[0].mxu0
    %v830 = vadd.f32 0.0, %v829
    %v831 = vpop.f32.mrb[0].mxu0
    %832 = vmatprep.mubr.f32.mxu0 0.0
    %833 = vmatmul.mubr.f32.gmra.mrb[0].mxu0 %v635
    %v834 = vpop.f32.mrb[0].mxu0
    %v835 = vadd.f32 0.0, %v834
    %v836 = vpop.f32.mrb[0].mxu0
    %837 = vmatprep.mubr.f32.mxu0 0.0
    %838 = vmatmul.mubr.f32.gmra.mrb[0].mxu0 %v638
    %v839 = vpop.f32.mrb[0].mxu0
    %v840 = vadd.f32 0.0, %v839
    %v841 = vpop.f32.mrb[0].mxu0
    %842 = vmatprep.mubr.f32.mxu0 0.0
    %843 = vmatmul.mubr.f32.gmra.mrb[0].mxu0 %v641
    %v844 = vpop.f32.mrb[0].mxu0
    %v845 = vadd.f32 0.0, %v844
    %v846 = vpop.f32.mrb[0].mxu0
    %847 = vmatprep.mubr.f32.mxu0 0.0
    %848 = vmatmul.mubr.f32.gmra.mrb[0].mxu0 %v644
    %v849 = vpop.f32.mrb[0].mxu0
    %v850 = vadd.f32 0.0, %v849
    %v851 = vpop.f32.mrb[0].mxu0
    %852 = vmatprep.mubr.f32.mxu0 0.0
    %853 = vmatmul.mubr.f32.gmra.mrb[0].mxu0 %v647
    %v854 = vpop.f32.mrb[0].mxu0
    %v855 = vadd.f32 0.0, %v854
    %v856 = vpop.f32.mrb[0].mxu0
    %857 = vmatprep.mubr.f32.mxu0 0.0
    %858 = vmatmul.mubr.f32.gmra.mrb[0].mxu0 %v650
    %v859 = vpop.f32.mrb[0].mxu0
    %v860 = vadd.f32 0.0, %v859
    %v861 = vpop.f32.mrb[0].mxu0
    %862 = vmatprep.mubr.f32.mxu0 0.0
    %863 = vmatmul.mubr.f32.gmra.mrb[0].mxu0 %v653
    %v864 = vpop.f32.mrb[0].mxu0
    %v865 = vadd.f32 0.0, %v864
    %v866 = vpop.f32.mrb[0].mxu0
    %867 = vmatprep.mubr.f32.mxu0 0.0
    %868 = vmatmul.mubr.f32.gmra.mrb[0].mxu0 %v656
    %v869 = vpop.f32.mrb[0].mxu0
    %v870 = vadd.f32 0.0, %v869
    %v871 = vpop.f32.mrb[0].mxu0
    %872 = vmatprep.mubr.f32.mxu0 0.0
    %873 = vmatmul.mubr.f32.gmra.mrb[0].mxu0 %v659
    %v874 = vpop.f32.mrb[0].mxu0
    %v875 = vadd.f32 0.0, %v874
    %v876 = vpop.f32.mrb[0].mxu0
    %877 = vmatprep.mubr.f32.mxu0 0.0
    %878 = vmatmul.mubr.f32.gmra.mrb[0].mxu0 %v662
    %v879 = vpop.f32.mrb[0].mxu0
    %v880 = vadd.f32 0.0, %v879
    %v881 = vpop.f32.mrb[0].mxu0
    %882 = vmatprep.mubr.f32.mxu0 0.0
    %883 = vmatmul.mubr.f32.gmra.mrb[0].mxu0 %v665
    %v884 = vpop.f32.mrb[0].mxu0
    %v885 = vadd.f32 0.0, %v884
    %v886 = vpop.f32.mrb[0].mxu0
    %887 = vmatprep.mubr.f32.mxu0 0.0
    %888 = vmatmul.mubr.f32.gmra.mrb[0].mxu0 %v668
    %v889 = vpop.f32.mrb[0].mxu0
    %v890 = vadd.f32 0.0, %v889
    %v891 = vpop.f32.mrb[0].mxu0
    %892 = vmatprep.mubr.f32.mxu0 0.0
    %893 = vmatmul.mubr.f32.gmra.mrb[0].mxu0 %v671
    %v894 = vpop.f32.mrb[0].mxu0
    %v895 = vadd.f32 0.0, %v894
    %v896 = vpop.f32.mrb[0].mxu0
    %897 = vdwg.mxu0
    %v899 = vsel %vm576, %v444, 0
    %v902 = vsel %vm576, %v445, 0
    %v905 = vsel %vm576, %v446, 0
    %v908 = vsel %vm576, %v447, 0
    %v911 = vsel %vm576, %v448, 0
    %v914 = vsel %vm576, %v449, 0
    %v917 = vsel %vm576, %v450, 0
    %v920 = vsel %vm576, %v451, 0
    %v923 = vsel %vm576, %v452, 0
    %v926 = vsel %vm576, %v453, 0
    %v929 = vsel %vm576, %v454, 0
    %v932 = vsel %vm576, %v455, 0
    %v935 = vsel %vm576, %v456, 0
    %v938 = vsel %vm576, %v457, 0
    %v941 = vsel %vm576, %v458, 0
    %v944 = vsel %vm576, %v459, 0
    %v947 = vsel %vm576, %v460, 0
    %v950 = vsel %vm576, %v461, 0
    %v953 = vsel %vm576, %v462, 0
    %v956 = vsel %vm576, %v463, 0
    %v959 = vsel %vm576, %v464, 0
    %v962 = vsel %vm576, %v465, 0
    %v965 = vsel %vm576, %v466, 0
    %v968 = vsel %vm576, %v467, 0
    %v971 = vsel %vm576, %v468, 0
    %v974 = vsel %vm576, %v469, 0
    %v977 = vsel %vm576, %v470, 0
    %v980 = vsel %vm576, %v471, 0
    %v983 = vsel %vm576, %v472, 0
    %v986 = vsel %vm576, %v473, 0
    %v989 = vsel %vm576, %v474, 0
    %v992 = vsel %vm576, %v475, 0
    %994 = vmatprep.subr.mxu0 0.0
    %995 = vmatpush1.msra.mxu0 %v573
    %996 = vmatprep.subr.mxu0 0.0
    %997 = vmatpush1.msra.mxu0 0.0
    %998 = vmatprep.subr.mxu0 0.0
    %999 = vmatpush1.msra.mxu0 0.0
    %1000 = vmatprep.subr.mxu0 0.0
    %1001 = vmatpush1.msra.mxu0 0.0
    %1002 = vmatprep.subr.mxu0 0.0
    %1003 = vmatpush1.msra.mxu0 0.0
    %1004 = vmatprep.subr.mxu0 0.0
    %1005 = vmatpush1.msra.mxu0 0.0
    %1006 = vmatprep.subr.mxu0 0.0
    %1007 = vmatpush1.msra.mxu0 0.0
    %1008 = vmatprep.subr.mxu0 0.0
    %1009 = vmatpush1.msra.mxu0 0.0
    %1010 = vmatprep.subr.mxu0 0.0
    %1011 = vmatpush1.msra.mxu0 0.0
    %1012 = vmatprep.subr.mxu0 0.0
    %1013 = vmatpush1.msra.mxu0 0.0
    %1014 = vmatprep.subr.mxu0 0.0
    %1015 = vmatpush1.msra.mxu0 0.0
    %1016 = vmatprep.subr.mxu0 0.0
    %1017 = vmatpush1.msra.mxu0 0.0
    %1018 = vmatprep.subr.mxu0 0.0
    %1019 = vmatpush1.msra.mxu0 0.0
    %1020 = vmatprep.subr.mxu0 0.0
    %1021 = vmatpush1.msra.mxu0 0.0
    %1022 = vmatprep.subr.mxu0 0.0
    %1023 = vmatpush1.msra.mxu0 0.0
    %1024 = vmatprep.subr.mxu0 0.0
    %1025 = vmatpush1.msra.mxu0 0.0
    %1026 = vmatprep.subr.mxu0 0.0
    %1027 = vmatpush1.msra.mxu0 0.0
    %1028 = vmatprep.subr.mxu0 0.0
    %1029 = vmatpush1.msra.mxu0 0.0
    %1030 = vmatprep.subr.mxu0 0.0
    %1031 = vmatpush1.msra.mxu0 0.0
    %1032 = vmatprep.subr.mxu0 0.0
    %1033 = vmatpush1.msra.mxu0 0.0
    %1034 = vmatprep.subr.mxu0 0.0
    %1035 = vmatpush1.msra.mxu0 0.0
    %1036 = vmatprep.subr.mxu0 0.0
    %1037 = vmatpush1.msra.mxu0 0.0
    %1038 = vmatprep.subr.mxu0 0.0
    %1039 = vmatpush1.msra.mxu0 0.0
    %1040 = vmatprep.subr.mxu0 0.0
    %1041 = vmatpush1.msra.mxu0 0.0
    %1042 = vmatprep.subr.mxu0 0.0
    %1043 = vmatpush1.msra.mxu0 0.0
    %1044 = vmatprep.subr.mxu0 0.0
    %1045 = vmatpush1.msra.mxu0 0.0
    %1046 = vmatprep.subr.mxu0 0.0
    %1047 = vmatpush1.msra.mxu0 0.0
    %1048 = vmatprep.subr.mxu0 0.0
    %1049 = vmatpush1.msra.mxu0 0.0
    %1050 = vmatprep.subr.mxu0 0.0
    %1051 = vmatpush1.msra.mxu0 0.0
    %1052 = vmatprep.subr.mxu0 0.0
    %1053 = vmatpush1.msra.mxu0 0.0
    %1054 = vmatprep.subr.mxu0 0.0
    %1055 = vmatpush1.msra.mxu0 0.0
    %1056 = vmatprep.subr.mxu0 0.0
    %1057 = vmatpush1.msra.mxu0 0.0
    %1058 = vmatprep.mubr.f32.mxu0 0.0
    %1059 = vmatmul.mubr.f32.gmra.mrb[0].mxu0 %v899
    %v1060 = vpop.f32.mrb[0].mxu0
    %v1061 = vadd.f32 %v740, %v1060
    %v1062 = vpop.f32.mrb[0].mxu0
    %1063 = vmatprep.mubr.f32.mxu0 0.0
    %1064 = vmatmul.mubr.f32.gmra.mrb[0].mxu0 %v902
    %v1065 = vpop.f32.mrb[0].mxu0
    %v1066 = vadd.f32 %v745, %v1065
    %v1067 = vpop.f32.mrb[0].mxu0
    %1068 = vmatprep.mubr.f32.mxu0 0.0
    %1069 = vmatmul.mubr.f32.gmra.mrb[0].mxu0 %v905
    %v1070 = vpop.f32.mrb[0].mxu0
    %v1071 = vadd.f32 %v750, %v1070
    %v1072 = vpop.f32.mrb[0].mxu0
    %1073 = vmatprep.mubr.f32.mxu0 0.0
    %1074 = vmatmul.mubr.f32.gmra.mrb[0].mxu0 %v908
    %v1075 = vpop.f32.mrb[0].mxu0
    %v1076 = vadd.f32 %v755, %v1075
    %v1077 = vpop.f32.mrb[0].mxu0
    %1078 = vmatprep.mubr.f32.mxu0 0.0
    %1079 = vmatmul.mubr.f32.gmra.mrb[0].mxu0 %v911
    %v1080 = vpop.f32.mrb[0].mxu0
    %v1081 = vadd.f32 %v760, %v1080
    %v1082 = vpop.f32.mrb[0].mxu0
    %1083 = vmatprep.mubr.f32.mxu0 0.0
    %1084 = vmatmul.mubr.f32.gmra.mrb[0].mxu0 %v914
    %v1085 = vpop.f32.mrb[0].mxu0
    %v1086 = vadd.f32 %v765, %v1085
    %v1087 = vpop.f32.mrb[0].mxu0
    %1088 = vmatprep.mubr.f32.mxu0 0.0
    %1089 = vmatmul.mubr.f32.gmra.mrb[0].mxu0 %v917
    %v1090 = vpop.f32.mrb[0].mxu0
    %v1091 = vadd.f32 %v770, %v1090
    %v1092 = vpop.f32.mrb[0].mxu0
    %1093 = vmatprep.mubr.f32.mxu0 0.0
    %1094 = vmatmul.mubr.f32.gmra.mrb[0].mxu0 %v920
    %v1095 = vpop.f32.mrb[0].mxu0
    %v1096 = vadd.f32 %v775, %v1095
    %v1097 = vpop.f32.mrb[0].mxu0
    %1098 = vmatprep.mubr.f32.mxu0 0.0
    %1099 = vmatmul.mubr.f32.gmra.mrb[0].mxu0 %v923
    %v1100 = vpop.f32.mrb[0].mxu0
    %v1101 = vadd.f32 %v780, %v1100
    %v1102 = vpop.f32.mrb[0].mxu0
    %1103 = vmatprep.mubr.f32.mxu0 0.0
    %1104 = vmatmul.mubr.f32.gmra.mrb[0].mxu0 %v926
    %v1105 = vpop.f32.mrb[0].mxu0
    %v1106 = vadd.f32 %v785, %v1105
    %v1107 = vpop.f32.mrb[0].mxu0
    %1108 = vmatprep.mubr.f32.mxu0 0.0
    %1109 = vmatmul.mubr.f32.gmra.mrb[0].mxu0 %v929
    %v1110 = vpop.f32.mrb[0].mxu0
    %v1111 = vadd.f32 %v790, %v1110
    %v1112 = vpop.f32.mrb[0].mxu0
    %1113 = vmatprep.mubr.f32.mxu0 0.0
    %1114 = vmatmul.mubr.f32.gmra.mrb[0].mxu0 %v932
    %v1115 = vpop.f32.mrb[0].mxu0
    %v1116 = vadd.f32 %v795, %v1115
    %v1117 = vpop.f32.mrb[0].mxu0
    %1118 = vmatprep.mubr.f32.mxu0 0.0
    %1119 = vmatmul.mubr.f32.gmra.mrb[0].mxu0 %v935
    %v1120 = vpop.f32.mrb[0].mxu0
    %v1121 = vadd.f32 %v800, %v1120
    %v1122 = vpop.f32.mrb[0].mxu0
    %1123 = vmatprep.mubr.f32.mxu0 0.0
    %1124 = vmatmul.mubr.f32.gmra.mrb[0].mxu0 %v938
    %v1125 = vpop.f32.mrb[0].mxu0
    %v1126 = vadd.f32 %v805, %v1125
    %v1127 = vpop.f32.mrb[0].mxu0
    %1128 = vmatprep.mubr.f32.mxu0 0.0
    %1129 = vmatmul.mubr.f32.gmra.mrb[0].mxu0 %v941
    %v1130 = vpop.f32.mrb[0].mxu0
    %v1131 = vadd.f32 %v810, %v1130
    %v1132 = vpop.f32.mrb[0].mxu0
    %1133 = vmatprep.mubr.f32.mxu0 0.0
    %1134 = vmatmul.mubr.f32.gmra.mrb[0].mxu0 %v944
    %v1135 = vpop.f32.mrb[0].mxu0
    %v1136 = vadd.f32 %v815, %v1135
    %v1137 = vpop.f32.mrb[0].mxu0
    %1138 = vmatprep.mubr.f32.mxu0 0.0
    %1139 = vmatmul.mubr.f32.gmra.mrb[0].mxu0 %v947
    %v1140 = vpop.f32.mrb[0].mxu0
    %v1141 = vadd.f32 %v820, %v1140
    %v1142 = vpop.f32.mrb[0].mxu0
    %1143 = vmatprep.mubr.f32.mxu0 0.0
    %1144 = vmatmul.mubr.f32.gmra.mrb[0].mxu0 %v950
    %v1145 = vpop.f32.mrb[0].mxu0
    %v1146 = vadd.f32 %v825, %v1145
    %v1147 = vpop.f32.mrb[0].mxu0
    %1148 = vmatprep.mubr.f32.mxu0 0.0
    %1149 = vmatmul.mubr.f32.gmra.mrb[0].mxu0 %v953
    %v1150 = vpop.f32.mrb[0].mxu0
    %v1151 = vadd.f32 %v830, %v1150
    %v1152 = vpop.f32.mrb[0].mxu0
    %1153 = vmatprep.mubr.f32.mxu0 0.0
    %1154 = vmatmul.mubr.f32.gmra.mrb[0].mxu0 %v956
    %v1155 = vpop.f32.mrb[0].mxu0
    %v1156 = vadd.f32 %v835, %v1155
    %v1157 = vpop.f32.mrb[0].mxu0
    %1158 = vmatprep.mubr.f32.mxu0 0.0
    %1159 = vmatmul.mubr.f32.gmra.mrb[0].mxu0 %v959
    %v1160 = vpop.f32.mrb[0].mxu0
    %v1161 = vadd.f32 %v840, %v1160
    %v1162 = vpop.f32.mrb[0].mxu0
    %1163 = vmatprep.mubr.f32.mxu0 0.0
    %1164 = vmatmul.mubr.f32.gmra.mrb[0].mxu0 %v962
    %v1165 = vpop.f32.mrb[0].mxu0
    %v1166 = vadd.f32 %v845, %v1165
    %v1167 = vpop.f32.mrb[0].mxu0
    %1168 = vmatprep.mubr.f32.mxu0 0.0
    %1169 = vmatmul.mubr.f32.gmra.mrb[0].mxu0 %v965
    %v1170 = vpop.f32.mrb[0].mxu0
    %v1171 = vadd.f32 %v850, %v1170
    %v1172 = vpop.f32.mrb[0].mxu0
    %1173 = vmatprep.mubr.f32.mxu0 0.0
    %1174 = vmatmul.mubr.f32.gmra.mrb[0].mxu0 %v968
    %v1175 = vpop.f32.mrb[0].mxu0
    %v1176 = vadd.f32 %v855, %v1175
    %v1177 = vpop.f32.mrb[0].mxu0
    %1178 = vmatprep.mubr.f32.mxu0 0.0
    %1179 = vmatmul.mubr.f32.gmra.mrb[0].mxu0 %v971
    %v1180 = vpop.f32.mrb[0].mxu0
    %v1181 = vadd.f32 %v860, %v1180
    %v1182 = vpop.f32.mrb[0].mxu0
    %1183 = vmatprep.mubr.f32.mxu0 0.0
    %1184 = vmatmul.mubr.f32.gmra.mrb[0].mxu0 %v974
    %v1185 = vpop.f32.mrb[0].mxu0
    %v1186 = vadd.f32 %v865, %v1185
    %v1187 = vpop.f32.mrb[0].mxu0
    %1188 = vmatprep.mubr.f32.mxu0 0.0
    %1189 = vmatmul.mubr.f32.gmra.mrb[0].mxu0 %v977
    %v1190 = vpop.f32.mrb[0].mxu0
    %v1191 = vadd.f32 %v870, %v1190
    %v1192 = vpop.f32.mrb[0].mxu0
    %1193 = vmatprep.mubr.f32.mxu0 0.0
    %1194 = vmatmul.mubr.f32.gmra.mrb[0].mxu0 %v980
    %v1195 = vpop.f32.mrb[0].mxu0
    %v1196 = vadd.f32 %v875, %v1195
    %v1197 = vpop.f32.mrb[0].mxu0
    %1198 = vmatprep.mubr.f32.mxu0 0.0
    %1199 = vmatmul.mubr.f32.gmra.mrb[0].mxu0 %v983
    %v1200 = vpop.f32.mrb[0].mxu0
    %v1201 = vadd.f32 %v880, %v1200
    %v1202 = vpop.f32.mrb[0].mxu0
    %1203 = vmatprep.mubr.f32.mxu0 0.0
    %1204 = vmatmul.mubr.f32.gmra.mrb[0].mxu0 %v986
    %v1205 = vpop.f32.mrb[0].mxu0
    %v1206 = vadd.f32 %v885, %v1205
    %v1207 = vpop.f32.mrb[0].mxu0
    %1208 = vmatprep.mubr.f32.mxu0 0.0
    %1209 = vmatmul.mubr.f32.gmra.mrb[0].mxu0 %v989
    %v1210 = vpop.f32.mrb[0].mxu0
    %v1211 = vadd.f32 %v890, %v1210
    %v1212 = vpop.f32.mrb[0].mxu0
    %1213 = vmatprep.mubr.f32.mxu0 0.0
    %1214 = vmatmul.mubr.f32.gmra.mrb[0].mxu0 %v992
    %v1215 = vpop.f32.mrb[0].mxu0
    %v1216 = vadd.f32 %v895, %v1215
    %v1217 = vpop.f32.mrb[0].mxu0
    %1218 = vdwg.mxu0
    %s1219 = scalar_lea.vmem %s1, 16
    %v1220 = vld [vmem:[%s1219] sm:$0xff]
    %v1222 = vsel %vm576, %v541, 0
    %v1225 = vsel %vm576, %v542, 0
    %v1228 = vsel %vm576, %v543, 0
    %v1231 = vsel %vm576, %v544, 0
    %v1234 = vsel %vm576, %v545, 0
    %v1237 = vsel %vm576, %v546, 0
    %v1240 = vsel %vm576, %v547, 0
    %v1243 = vsel %vm576, %v548, 0
    %v1246 = vsel %vm576, %v549, 0
    %v1249 = vsel %vm576, %v550, 0
    %v1252 = vsel %vm576, %v551, 0
    %v1255 = vsel %vm576, %v552, 0
    %v1258 = vsel %vm576, %v553, 0
    %v1261 = vsel %vm576, %v554, 0
    %v1264 = vsel %vm576, %v555, 0
    %v1267 = vsel %vm576, %v556, 0
    %v1270 = vsel %vm576, %v557, 0
    %v1273 = vsel %vm576, %v558, 0
    %v1276 = vsel %vm576, %v559, 0
    %v1279 = vsel %vm576, %v560, 0
    %v1282 = vsel %vm576, %v561, 0
    %v1285 = vsel %vm576, %v562, 0
    %v1288 = vsel %vm576, %v563, 0
    %v1291 = vsel %vm576, %v564, 0
    %v1294 = vsel %vm576, %v565, 0
    %v1297 = vsel %vm576, %v566, 0
    %v1300 = vsel %vm576, %v567, 0
    %v1303 = vsel %vm576, %v568, 0
    %v1306 = vsel %vm576, %v569, 0
    %v1309 = vsel %vm576, %v570, 0
    %v1312 = vsel %vm576, %v571, 0
    %v1315 = vsel %vm576, %v572, 0
    %1317 = vmatprep.subr.mxu0 0.0
    %1318 = vmatpush1.msra.mxu0 %v1220
    %1319 = vmatprep.subr.mxu0 0.0
    %1320 = vmatpush1.msra.mxu0 0.0
    %1321 = vmatprep.subr.mxu0 0.0
    %1322 = vmatpush1.msra.mxu0 0.0
    %1323 = vmatprep.subr.mxu0 0.0
    %1324 = vmatpush1.msra.mxu0 0.0
    %1325 = vmatprep.subr.mxu0 0.0
    %1326 = vmatpush1.msra.mxu0 0.0
    %1327 = vmatprep.subr.mxu0 0.0
    %1328 = vmatpush1.msra.mxu0 0.0
    %1329 = vmatprep.subr.mxu0 0.0
    %1330 = vmatpush1.msra.mxu0 0.0
    %1331 = vmatprep.subr.mxu0 0.0
    %1332 = vmatpush1.msra.mxu0 0.0
    %1333 = vmatprep.subr.mxu0 0.0
    %1334 = vmatpush1.msra.mxu0 0.0
    %1335 = vmatprep.subr.mxu0 0.0
    %1336 = vmatpush1.msra.mxu0 0.0
    %1337 = vmatprep.subr.mxu0 0.0
    %1338 = vmatpush1.msra.mxu0 0.0
    %1339 = vmatprep.subr.mxu0 0.0
    %1340 = vmatpush1.msra.mxu0 0.0
    %1341 = vmatprep.subr.mxu0 0.0
    %1342 = vmatpush1.msra.mxu0 0.0
    %1343 = vmatprep.subr.mxu0 0.0
    %1344 = vmatpush1.msra.mxu0 0.0
    %1345 = vmatprep.subr.mxu0 0.0
    %1346 = vmatpush1.msra.mxu0 0.0
    %1347 = vmatprep.subr.mxu0 0.0
    %1348 = vmatpush1.msra.mxu0 0.0
    %1349 = vmatprep.subr.mxu0 0.0
    %1350 = vmatpush1.msra.mxu0 0.0
    %1351 = vmatprep.subr.mxu0 0.0
    %1352 = vmatpush1.msra.mxu0 0.0
    %1353 = vmatprep.subr.mxu0 0.0
    %1354 = vmatpush1.msra.mxu0 0.0
    %1355 = vmatprep.subr.mxu0 0.0
    %1356 = vmatpush1.msra.mxu0 0.0
    %1357 = vmatprep.subr.mxu0 0.0
    %1358 = vmatpush1.msra.mxu0 0.0
    %1359 = vmatprep.subr.mxu0 0.0
    %1360 = vmatpush1.msra.mxu0 0.0
    %1361 = vmatprep.subr.mxu0 0.0
    %1362 = vmatpush1.msra.mxu0 0.0
    %1363 = vmatprep.subr.mxu0 0.0
    %1364 = vmatpush1.msra.mxu0 0.0
    %1365 = vmatprep.subr.mxu0 0.0
    %1366 = vmatpush1.msra.mxu0 0.0
    %1367 = vmatprep.subr.mxu0 0.0
    %1368 = vmatpush1.msra.mxu0 0.0
    %1369 = vmatprep.subr.mxu0 0.0
    %1370 = vmatpush1.msra.mxu0 0.0
    %1371 = vmatprep.subr.mxu0 0.0
    %1372 = vmatpush1.msra.mxu0 0.0
    %1373 = vmatprep.subr.mxu0 0.0
    %1374 = vmatpush1.msra.mxu0 0.0
    %1375 = vmatprep.subr.mxu0 0.0
    %1376 = vmatpush1.msra.mxu0 0.0
    %1377 = vmatprep.subr.mxu0 0.0
    %1378 = vmatpush1.msra.mxu0 0.0
    %1379 = vmatprep.subr.mxu0 0.0
    %1380 = vmatpush1.msra.mxu0 0.0
    %1381 = vmatprep.mubr.f32.mxu0 0.0
    %1382 = vmatmul.mubr.f32.gmra.mrb[0].mxu0 %v1222
    %v1383 = vpop.f32.mrb[0].mxu0
    %v1384 = vadd.f32 0.0, %v1383
    %v1385 = vpop.f32.mrb[0].mxu0
    %1386 = vmatprep.mubr.f32.mxu0 0.0
    %1387 = vmatmul.mubr.f32.gmra.mrb[0].mxu0 %v1225
    %v1388 = vpop.f32.mrb[0].mxu0
    %v1389 = vadd.f32 0.0, %v1388
    %v1390 = vpop.f32.mrb[0].mxu0
    %1391 = vmatprep.mubr.f32.mxu0 0.0
    %1392 = vmatmul.mubr.f32.gmra.mrb[0].mxu0 %v1228
    %v1393 = vpop.f32.mrb[0].mxu0
    %v1394 = vadd.f32 0.0, %v1393
    %v1395 = vpop.f32.mrb[0].mxu0
    %1396 = vmatprep.mubr.f32.mxu0 0.0
    %1397 = vmatmul.mubr.f32.gmra.mrb[0].mxu0 %v1231
    %v1398 = vpop.f32.mrb[0].mxu0
    %v1399 = vadd.f32 0.0, %v1398
    %v1400 = vpop.f32.mrb[0].mxu0
    %1401 = vmatprep.mubr.f32.mxu0 0.0
    %1402 = vmatmul.mubr.f32.gmra.mrb[0].mxu0 %v1234
    %v1403 = vpop.f32.mrb[0].mxu0
    %v1404 = vadd.f32 0.0, %v1403
    %v1405 = vpop.f32.mrb[0].mxu0
    %1406 = vmatprep.mubr.f32.mxu0 0.0
    %1407 = vmatmul.mubr.f32.gmra.mrb[0].mxu0 %v1237
    %v1408 = vpop.f32.mrb[0].mxu0
    %v1409 = vadd.f32 0.0, %v1408
    %v1410 = vpop.f32.mrb[0].mxu0
    %1411 = vmatprep.mubr.f32.mxu0 0.0
    %1412 = vmatmul.mubr.f32.gmra.mrb[0].mxu0 %v1240
    %v1413 = vpop.f32.mrb[0].mxu0
    %v1414 = vadd.f32 0.0, %v1413
    %v1415 = vpop.f32.mrb[0].mxu0
    %1416 = vmatprep.mubr.f32.mxu0 0.0
    %1417 = vmatmul.mubr.f32.gmra.mrb[0].mxu0 %v1243
    %v1418 = vpop.f32.mrb[0].mxu0
    %v1419 = vadd.f32 0.0, %v1418
    %v1420 = vpop.f32.mrb[0].mxu0
    %1421 = vmatprep.mubr.f32.mxu0 0.0
    %1422 = vmatmul.mubr.f32.gmra.mrb[0].mxu0 %v1246
    %v1423 = vpop.f32.mrb[0].mxu0
    %v1424 = vadd.f32 0.0, %v1423
    %v1425 = vpop.f32.mrb[0].mxu0
    %1426 = vmatprep.mubr.f32.mxu0 0.0
    %1427 = vmatmul.mubr.f32.gmra.mrb[0].mxu0 %v1249
    %v1428 = vpop.f32.mrb[0].mxu0
    %v1429 = vadd.f32 0.0, %v1428
    %v1430 = vpop.f32.mrb[0].mxu0
    %1431 = vmatprep.mubr.f32.mxu0 0.0
    %1432 = vmatmul.mubr.f32.gmra.mrb[0].mxu0 %v1252
    %v1433 = vpop.f32.mrb[0].mxu0
    %v1434 = vadd.f32 0.0, %v1433
    %v1435 = vpop.f32.mrb[0].mxu0
    %1436 = vmatprep.mubr.f32.mxu0 0.0
    %1437 = vmatmul.mubr.f32.gmra.mrb[0].mxu0 %v1255
    %v1438 = vpop.f32.mrb[0].mxu0
    %v1439 = vadd.f32 0.0, %v1438
    %v1440 = vpop.f32.mrb[0].mxu0
    %1441 = vmatprep.mubr.f32.mxu0 0.0
    %1442 = vmatmul.mubr.f32.gmra.mrb[0].mxu0 %v1258
    %v1443 = vpop.f32.mrb[0].mxu0
    %v1444 = vadd.f32 0.0, %v1443
    %v1445 = vpop.f32.mrb[0].mxu0
    %1446 = vmatprep.mubr.f32.mxu0 0.0
    %1447 = vmatmul.mubr.f32.gmra.mrb[0].mxu0 %v1261
    %v1448 = vpop.f32.mrb[0].mxu0
    %v1449 = vadd.f32 0.0, %v1448
    %v1450 = vpop.f32.mrb[0].mxu0
    %1451 = vmatprep.mubr.f32.mxu0 0.0
    %1452 = vmatmul.mubr.f32.gmra.mrb[0].mxu0 %v1264
    %v1453 = vpop.f32.mrb[0].mxu0
    %v1454 = vadd.f32 0.0, %v1453
    %v1455 = vpop.f32.mrb[0].mxu0
    %1456 = vmatprep.mubr.f32.mxu0 0.0
    %1457 = vmatmul.mubr.f32.gmra.mrb[0].mxu0 %v1267
    %v1458 = vpop.f32.mrb[0].mxu0
    %v1459 = vadd.f32 0.0, %v1458
    %v1460 = vpop.f32.mrb[0].mxu0
    %1461 = vmatprep.mubr.f32.mxu0 0.0
    %1462 = vmatmul.mubr.f32.gmra.mrb[0].mxu0 %v1270
    %v1463 = vpop.f32.mrb[0].mxu0
    %v1464 = vadd.f32 0.0, %v1463
    %v1465 = vpop.f32.mrb[0].mxu0
    %1466 = vmatprep.mubr.f32.mxu0 0.0
    %1467 = vmatmul.mubr.f32.gmra.mrb[0].mxu0 %v1273
    %v1468 = vpop.f32.mrb[0].mxu0
    %v1469 = vadd.f32 0.0, %v1468
    %v1470 = vpop.f32.mrb[0].mxu0
    %1471 = vmatprep.mubr.f32.mxu0 0.0
    %1472 = vmatmul.mubr.f32.gmra.mrb[0].mxu0 %v1276
    %v1473 = vpop.f32.mrb[0].mxu0
    %v1474 = vadd.f32 0.0, %v1473
    %v1475 = vpop.f32.mrb[0].mxu0
    %1476 = vmatprep.mubr.f32.mxu0 0.0
    %1477 = vmatmul.mubr.f32.gmra.mrb[0].mxu0 %v1279
    %v1478 = vpop.f32.mrb[0].mxu0
    %v1479 = vadd.f32 0.0, %v1478
    %v1480 = vpop.f32.mrb[0].mxu0
    %1481 = vmatprep.mubr.f32.mxu0 0.0
    %1482 = vmatmul.mubr.f32.gmra.mrb[0].mxu0 %v1282
    %v1483 = vpop.f32.mrb[0].mxu0
    %v1484 = vadd.f32 0.0, %v1483
    %v1485 = vpop.f32.mrb[0].mxu0
    %1486 = vmatprep.mubr.f32.mxu0 0.0
    %1487 = vmatmul.mubr.f32.gmra.mrb[0].mxu0 %v1285
    %v1488 = vpop.f32.mrb[0].mxu0
    %v1489 = vadd.f32 0.0, %v1488
    %v1490 = vpop.f32.mrb[0].mxu0
    %1491 = vmatprep.mubr.f32.mxu0 0.0
    %1492 = vmatmul.mubr.f32.gmra.mrb[0].mxu0 %v1288
    %v1493 = vpop.f32.mrb[0].mxu0
    %v1494 = vadd.f32 0.0, %v1493
    %v1495 = vpop.f32.mrb[0].mxu0
    %1496 = vmatprep.mubr.f32.mxu0 0.0
    %1497 = vmatmul.mubr.f32.gmra.mrb[0].mxu0 %v1291
    %v1498 = vpop.f32.mrb[0].mxu0
    %v1499 = vadd.f32 0.0, %v1498
    %v1500 = vpop.f32.mrb[0].mxu0
    %1501 = vmatprep.mubr.f32.mxu0 0.0
    %1502 = vmatmul.mubr.f32.gmra.mrb[0].mxu0 %v1294
    %v1503 = vpop.f32.mrb[0].mxu0
    %v1504 = vadd.f32 0.0, %v1503
    %v1505 = vpop.f32.mrb[0].mxu0
    %1506 = vmatprep.mubr.f32.mxu0 0.0
    %1507 = vmatmul.mubr.f32.gmra.mrb[0].mxu0 %v1297
    %v1508 = vpop.f32.mrb[0].mxu0
    %v1509 = vadd.f32 0.0, %v1508
    %v1510 = vpop.f32.mrb[0].mxu0
    %1511 = vmatprep.mubr.f32.mxu0 0.0
    %1512 = vmatmul.mubr.f32.gmra.mrb[0].mxu0 %v1300
    %v1513 = vpop.f32.mrb[0].mxu0
    %v1514 = vadd.f32 0.0, %v1513
    %v1515 = vpop.f32.mrb[0].mxu0
    %1516 = vmatprep.mubr.f32.mxu0 0.0
    %1517 = vmatmul.mubr.f32.gmra.mrb[0].mxu0 %v1303
    %v1518 = vpop.f32.mrb[0].mxu0
    %v1519 = vadd.f32 0.0, %v1518
    %v1520 = vpop.f32.mrb[0].mxu0
    %1521 = vmatprep.mubr.f32.mxu0 0.0
    %1522 = vmatmul.mubr.f32.gmra.mrb[0].mxu0 %v1306
    %v1523 = vpop.f32.mrb[0].mxu0
    %v1524 = vadd.f32 0.0, %v1523
    %v1525 = vpop.f32.mrb[0].mxu0
    %1526 = vmatprep.mubr.f32.mxu0 0.0
    %1527 = vmatmul.mubr.f32.gmra.mrb[0].mxu0 %v1309
    %v1528 = vpop.f32.mrb[0].mxu0
    %v1529 = vadd.f32 0.0, %v1528
    %v1530 = vpop.f32.mrb[0].mxu0
    %1531 = vmatprep.mubr.f32.mxu0 0.0
    %1532 = vmatmul.mubr.f32.gmra.mrb[0].mxu0 %v1312
    %v1533 = vpop.f32.mrb[0].mxu0
    %v1534 = vadd.f32 0.0, %v1533
    %v1535 = vpop.f32.mrb[0].mxu0
    %1536 = vmatprep.mubr.f32.mxu0 0.0
    %1537 = vmatmul.mubr.f32.gmra.mrb[0].mxu0 %v1315
    %v1538 = vpop.f32.mrb[0].mxu0
    %v1539 = vadd.f32 0.0, %v1538
    %v1540 = vpop.f32.mrb[0].mxu0
    %1541 = vdwg.mxu0
    %v1542 = vadd.f32 %v1061, %v1384
    %v1543 = vadd.f32 %v1066, %v1389
    %v1544 = vadd.f32 %v1071, %v1394
    %v1545 = vadd.f32 %v1076, %v1399
    %v1546 = vadd.f32 %v1081, %v1404
    %v1547 = vadd.f32 %v1086, %v1409
    %v1548 = vadd.f32 %v1091, %v1414
    %v1549 = vadd.f32 %v1096, %v1419
    %v1550 = vadd.f32 %v1101, %v1424
    %v1551 = vadd.f32 %v1106, %v1429
    %v1552 = vadd.f32 %v1111, %v1434
    %v1553 = vadd.f32 %v1116, %v1439
    %v1554 = vadd.f32 %v1121, %v1444
    %v1555 = vadd.f32 %v1126, %v1449
    %v1556 = vadd.f32 %v1131, %v1454
    %v1557 = vadd.f32 %v1136, %v1459
    %v1558 = vadd.f32 %v1141, %v1464
    %v1559 = vadd.f32 %v1146, %v1469
    %v1560 = vadd.f32 %v1151, %v1474
    %v1561 = vadd.f32 %v1156, %v1479
    %v1562 = vadd.f32 %v1161, %v1484
    %v1563 = vadd.f32 %v1166, %v1489
    %v1564 = vadd.f32 %v1171, %v1494
    %v1565 = vadd.f32 %v1176, %v1499
    %v1566 = vadd.f32 %v1181, %v1504
    %v1567 = vadd.f32 %v1186, %v1509
    %v1568 = vadd.f32 %v1191, %v1514
    %v1569 = vadd.f32 %v1196, %v1519
    %v1570 = vadd.f32 %v1201, %v1524
    %v1571 = vadd.f32 %v1206, %v1529
    %v1572 = vadd.f32 %v1211, %v1534
    %v1573 = vadd.f32 %v1216, %v1539
    %v1574 = vld [vmem:[%s2] sm:$0x1]
    %v1576 = vlaneseq
    %v1577 = vshrl.u32 %v1576, 7
    %v1578 = vsub.s32 0, %v1577
    %v1579 = vrot.slane %v1574, %v1578
    %v1581 = vadd.f32 %v1542, %v1579
    %v1582 = vadd.f32 %v1543, %v1579
    %v1583 = vadd.f32 %v1544, %v1579
    %v1584 = vadd.f32 %v1545, %v1579
    %v1585 = vadd.f32 %v1546, %v1579
    %v1586 = vadd.f32 %v1547, %v1579
    %v1587 = vadd.f32 %v1548, %v1579
    %v1588 = vadd.f32 %v1549, %v1579
    %v1589 = vadd.f32 %v1550, %v1579
    %v1590 = vadd.f32 %v1551, %v1579
    %v1591 = vadd.f32 %v1552, %v1579
    %v1592 = vadd.f32 %v1553, %v1579
    %v1593 = vadd.f32 %v1554, %v1579
    %v1594 = vadd.f32 %v1555, %v1579
    %v1595 = vadd.f32 %v1556, %v1579
    %v1596 = vadd.f32 %v1557, %v1579
    %v1597 = vadd.f32 %v1558, %v1579
    %v1598 = vadd.f32 %v1559, %v1579
    %v1599 = vadd.f32 %v1560, %v1579
    %v1600 = vadd.f32 %v1561, %v1579
    %v1601 = vadd.f32 %v1562, %v1579
    %v1602 = vadd.f32 %v1563, %v1579
    %v1603 = vadd.f32 %v1564, %v1579
    %v1604 = vadd.f32 %v1565, %v1579
    %v1605 = vadd.f32 %v1566, %v1579
    %v1606 = vadd.f32 %v1567, %v1579
    %v1607 = vadd.f32 %v1568, %v1579
    %v1608 = vadd.f32 %v1569, %v1579
    %v1609 = vadd.f32 %v1570, %v1579
    %v1610 = vadd.f32 %v1571, %v1579
    %v1611 = vadd.f32 %v1572, %v1579
    %v1612 = vadd.f32 %v1573, %v1579
    %vm1613 = vcmp.gt.f32.partialorder %v1581, 0.0
    %vm1614 = vcmp.gt.f32.partialorder %v1582, 0.0
    %vm1615 = vcmp.gt.f32.partialorder %v1583, 0.0
    %vm1616 = vcmp.gt.f32.partialorder %v1584, 0.0
    %vm1617 = vcmp.gt.f32.partialorder %v1585, 0.0
    %vm1618 = vcmp.gt.f32.partialorder %v1586, 0.0
    %vm1619 = vcmp.gt.f32.partialorder %v1587, 0.0
    %vm1620 = vcmp.gt.f32.partialorder %v1588, 0.0
    %vm1621 = vcmp.gt.f32.partialorder %v1589, 0.0
    %vm1622 = vcmp.gt.f32.partialorder %v1590, 0.0
    %vm1623 = vcmp.gt.f32.partialorder %v1591, 0.0
    %vm1624 = vcmp.gt.f32.partialorder %v1592, 0.0
    %vm1625 = vcmp.gt.f32.partialorder %v1593, 0.0
    %vm1626 = vcmp.gt.f32.partialorder %v1594, 0.0
    %vm1627 = vcmp.gt.f32.partialorder %v1595, 0.0
    %vm1628 = vcmp.gt.f32.partialorder %v1596, 0.0
    %vm1629 = vcmp.gt.f32.partialorder %v1597, 0.0
    %vm1630 = vcmp.gt.f32.partialorder %v1598, 0.0
    %vm1631 = vcmp.gt.f32.partialorder %v1599, 0.0
    %vm1632 = vcmp.gt.f32.partialorder %v1600, 0.0
    %vm1633 = vcmp.gt.f32.partialorder %v1601, 0.0
    %vm1634 = vcmp.gt.f32.partialorder %v1602, 0.0
    %vm1635 = vcmp.gt.f32.partialorder %v1603, 0.0
    %vm1636 = vcmp.gt.f32.partialorder %v1604, 0.0
    %vm1637 = vcmp.gt.f32.partialorder %v1605, 0.0
    %vm1638 = vcmp.gt.f32.partialorder %v1606, 0.0
    %vm1639 = vcmp.gt.f32.partialorder %v1607, 0.0
    %vm1640 = vcmp.gt.f32.partialorder %v1608, 0.0
    %vm1641 = vcmp.gt.f32.partialorder %v1609, 0.0
    %vm1642 = vcmp.gt.f32.partialorder %v1610, 0.0
    %vm1643 = vcmp.gt.f32.partialorder %v1611, 0.0
    %vm1644 = vcmp.gt.f32.partialorder %v1612, 0.0
    %v1645 = vmul.f32 %v1581, 0.01
    %v1646 = vmul.f32 %v1582, 0.01
    %v1647 = vmul.f32 %v1583, 0.01
    %v1648 = vmul.f32 %v1584, 0.01
    %v1649 = vmul.f32 %v1585, 0.01
    %v1650 = vmul.f32 %v1586, 0.01
    %v1651 = vmul.f32 %v1587, 0.01
    %v1652 = vmul.f32 %v1588, 0.01
    %v1653 = vmul.f32 %v1589, 0.01
    %v1654 = vmul.f32 %v1590, 0.01
    %v1655 = vmul.f32 %v1591, 0.01
    %v1656 = vmul.f32 %v1592, 0.01
    %v1657 = vmul.f32 %v1593, 0.01
    %v1658 = vmul.f32 %v1594, 0.01
    %v1659 = vmul.f32 %v1595, 0.01
    %v1660 = vmul.f32 %v1596, 0.01
    %v1661 = vmul.f32 %v1597, 0.01
    %v1662 = vmul.f32 %v1598, 0.01
    %v1663 = vmul.f32 %v1599, 0.01
    %v1664 = vmul.f32 %v1600, 0.01
    %v1665 = vmul.f32 %v1601, 0.01
    %v1666 = vmul.f32 %v1602, 0.01
    %v1667 = vmul.f32 %v1603, 0.01
    %v1668 = vmul.f32 %v1604, 0.01
    %v1669 = vmul.f32 %v1605, 0.01
    %v1670 = vmul.f32 %v1606, 0.01
    %v1671 = vmul.f32 %v1607, 0.01
    %v1672 = vmul.f32 %v1608, 0.01
    %v1673 = vmul.f32 %v1609, 0.01
    %v1674 = vmul.f32 %v1610, 0.01
    %v1675 = vmul.f32 %v1611, 0.01
    %v1676 = vmul.f32 %v1612, 0.01
    %v1677 = vsel %vm1613, %v1581, %v1645
    %v1678 = vsel %vm1614, %v1582, %v1646
    %v1679 = vsel %vm1615, %v1583, %v1647
    %v1680 = vsel %vm1616, %v1584, %v1648
    %v1681 = vsel %vm1617, %v1585, %v1649
    %v1682 = vsel %vm1618, %v1586, %v1650
    %v1683 = vsel %vm1619, %v1587, %v1651
    %v1684 = vsel %vm1620, %v1588, %v1652
    %v1685 = vsel %vm1621, %v1589, %v1653
    %v1686 = vsel %vm1622, %v1590, %v1654
    %v1687 = vsel %vm1623, %v1591, %v1655
    %v1688 = vsel %vm1624, %v1592, %v1656
    %v1689 = vsel %vm1625, %v1593, %v1657
    %v1690 = vsel %vm1626, %v1594, %v1658
    %v1691 = vsel %vm1627, %v1595, %v1659
    %v1692 = vsel %vm1628, %v1596, %v1660
    %v1693 = vsel %vm1629, %v1597, %v1661
    %v1694 = vsel %vm1630, %v1598, %v1662
    %v1695 = vsel %vm1631, %v1599, %v1663
    %v1696 = vsel %vm1632, %v1600, %v1664
    %v1697 = vsel %vm1633, %v1601, %v1665
    %v1698 = vsel %vm1634, %v1602, %v1666
    %v1699 = vsel %vm1635, %v1603, %v1667
    %v1700 = vsel %vm1636, %v1604, %v1668
    %v1701 = vsel %vm1637, %v1605, %v1669
    %v1702 = vsel %vm1638, %v1606, %v1670
    %v1703 = vsel %vm1639, %v1607, %v1671
    %v1704 = vsel %vm1640, %v1608, %v1672
    %v1705 = vsel %vm1641, %v1609, %v1673
    %v1706 = vsel %vm1642, %v1610, %v1674
    %v1707 = vsel %vm1643, %v1611, %v1675
    %v1708 = vsel %vm1644, %v1612, %v1676
    %v1709 = vrot.slane %v1677, 7
    %v1710 = vrot.slane %v1678, 7
    %v1711 = vrot.slane %v1679, 7
    %v1712 = vrot.slane %v1680, 7
    %v1713 = vrot.slane %v1681, 7
    %v1714 = vrot.slane %v1682, 7
    %v1715 = vrot.slane %v1683, 7
    %v1716 = vrot.slane %v1684, 7
    %v1717 = vrot.slane %v1685, 7
    %v1718 = vrot.slane %v1686, 7
    %v1719 = vrot.slane %v1687, 7
    %v1720 = vrot.slane %v1688, 7
    %v1721 = vrot.slane %v1689, 7
    %v1722 = vrot.slane %v1690, 7
    %v1723 = vrot.slane %v1691, 7
    %v1724 = vrot.slane %v1692, 7
    %v1725 = vrot.slane %v1693, 7
    %v1726 = vrot.slane %v1694, 7
    %v1727 = vrot.slane %v1695, 7
    %v1728 = vrot.slane %v1696, 7
    %v1729 = vrot.slane %v1697, 7
    %v1730 = vrot.slane %v1698, 7
    %v1731 = vrot.slane %v1699, 7
    %v1732 = vrot.slane %v1700, 7
    %v1733 = vrot.slane %v1701, 7
    %v1734 = vrot.slane %v1702, 7
    %v1735 = vrot.slane %v1703, 7
    %v1736 = vrot.slane %v1704, 7
    %v1737 = vrot.slane %v1705, 7
    %v1738 = vrot.slane %v1706, 7
    %v1739 = vrot.slane %v1707, 7
    %v1740 = vrot.slane %v1708, 7
    %v1741 = vsel %vm411, %v1739, %v1740
    %v1742 = vsel %vm411, %v1738, %v1739
    %v1743 = vsel %vm411, %v1737, %v1738
    %v1744 = vsel %vm411, %v1736, %v1737
    %v1745 = vsel %vm411, %v1735, %v1736
    %v1746 = vsel %vm411, %v1734, %v1735
    %v1747 = vsel %vm411, %v1733, %v1734
    %v1748 = vsel %vm411, %v1732, %v1733
    %v1749 = vsel %vm411, %v1731, %v1732
    %v1750 = vsel %vm411, %v1730, %v1731
    %v1751 = vsel %vm411, %v1729, %v1730
    %v1752 = vsel %vm411, %v1728, %v1729
    %v1753 = vsel %vm411, %v1727, %v1728
    %v1754 = vsel %vm411, %v1726, %v1727
    %v1755 = vsel %vm411, %v1725, %v1726
    %v1756 = vsel %vm411, %v1724, %v1725
    %v1757 = vsel %vm411, %v1723, %v1724
    %v1758 = vsel %vm411, %v1722, %v1723
    %v1759 = vsel %vm411, %v1721, %v1722
    %v1760 = vsel %vm411, %v1720, %v1721
    %v1761 = vsel %vm411, %v1719, %v1720
    %v1762 = vsel %vm411, %v1718, %v1719
    %v1763 = vsel %vm411, %v1717, %v1718
    %v1764 = vsel %vm411, %v1716, %v1717
    %v1765 = vsel %vm411, %v1715, %v1716
    %v1766 = vsel %vm411, %v1714, %v1715
    %v1767 = vsel %vm411, %v1713, %v1714
    %v1768 = vsel %vm411, %v1712, %v1713
    %v1769 = vsel %vm411, %v1711, %v1712
    %v1770 = vsel %vm411, %v1710, %v1711
    %v1771 = vsel %vm411, %v1709, %v1710
    %v1772 = vsel %vm411, %v1740, %v1709
    %v1773 = vmul.f32 %v1772, %v315
    %v1774 = vmul.f32 %v1771, %v316
    %v1775 = vmul.f32 %v1770, %v317
    %v1776 = vmul.f32 %v1769, %v318
    %v1777 = vmul.f32 %v1768, %v319
    %v1778 = vmul.f32 %v1767, %v320
    %v1779 = vmul.f32 %v1766, %v321
    %v1780 = vmul.f32 %v1765, %v322
    %v1781 = vmul.f32 %v1764, %v323
    %v1782 = vmul.f32 %v1763, %v324
    %v1783 = vmul.f32 %v1762, %v325
    %v1784 = vmul.f32 %v1761, %v326
    %v1785 = vmul.f32 %v1760, %v327
    %v1786 = vmul.f32 %v1759, %v328
    %v1787 = vmul.f32 %v1758, %v329
    %v1788 = vmul.f32 %v1757, %v330
    %v1789 = vmul.f32 %v1756, %v331
    %v1790 = vmul.f32 %v1755, %v332
    %v1791 = vmul.f32 %v1754, %v333
    %v1792 = vmul.f32 %v1753, %v334
    %v1793 = vmul.f32 %v1752, %v335
    %v1794 = vmul.f32 %v1751, %v336
    %v1795 = vmul.f32 %v1750, %v337
    %v1796 = vmul.f32 %v1749, %v338
    %v1797 = vmul.f32 %v1748, %v339
    %v1798 = vmul.f32 %v1747, %v340
    %v1799 = vmul.f32 %v1746, %v341
    %v1800 = vmul.f32 %v1745, %v342
    %v1801 = vmul.f32 %v1744, %v343
    %v1802 = vmul.f32 %v1743, %v344
    %v1803 = vmul.f32 %v1742, %v345
    %v1804 = vmul.f32 %v1741, %v346
    %v1805 = vrot.slane %v1677, 1
    %v1806 = vrot.slane %v1678, 1
    %v1807 = vrot.slane %v1679, 1
    %v1808 = vrot.slane %v1680, 1
    %v1809 = vrot.slane %v1681, 1
    %v1810 = vrot.slane %v1682, 1
    %v1811 = vrot.slane %v1683, 1
    %v1812 = vrot.slane %v1684, 1
    %v1813 = vrot.slane %v1685, 1
    %v1814 = vrot.slane %v1686, 1
    %v1815 = vrot.slane %v1687, 1
    %v1816 = vrot.slane %v1688, 1
    %v1817 = vrot.slane %v1689, 1
    %v1818 = vrot.slane %v1690, 1
    %v1819 = vrot.slane %v1691, 1
    %v1820 = vrot.slane %v1692, 1
    %v1821 = vrot.slane %v1693, 1
    %v1822 = vrot.slane %v1694, 1
    %v1823 = vrot.slane %v1695, 1
    %v1824 = vrot.slane %v1696, 1
    %v1825 = vrot.slane %v1697, 1
    %v1826 = vrot.slane %v1698, 1
    %v1827 = vrot.slane %v1699, 1
    %v1828 = vrot.slane %v1700, 1
    %v1829 = vrot.slane %v1701, 1
    %v1830 = vrot.slane %v1702, 1
    %v1831 = vrot.slane %v1703, 1
    %v1832 = vrot.slane %v1704, 1
    %v1833 = vrot.slane %v1705, 1
    %v1834 = vrot.slane %v1706, 1
    %v1835 = vrot.slane %v1707, 1
    %v1836 = vrot.slane %v1708, 1
    %v1837 = vsel %vm508, %v1835, %v1836
    %v1838 = vsel %vm508, %v1834, %v1835
    %v1839 = vsel %vm508, %v1833, %v1834
    %v1840 = vsel %vm508, %v1832, %v1833
    %v1841 = vsel %vm508, %v1831, %v1832
    %v1842 = vsel %vm508, %v1830, %v1831
    %v1843 = vsel %vm508, %v1829, %v1830
    %v1844 = vsel %vm508, %v1828, %v1829
    %v1845 = vsel %vm508, %v1827, %v1828
    %v1846 = vsel %vm508, %v1826, %v1827
    %v1847 = vsel %vm508, %v1825, %v1826
    %v1848 = vsel %vm508, %v1824, %v1825
    %v1849 = vsel %vm508, %v1823, %v1824
    %v1850 = vsel %vm508, %v1822, %v1823
    %v1851 = vsel %vm508, %v1821, %v1822
    %v1852 = vsel %vm508, %v1820, %v1821
    %v1853 = vsel %vm508, %v1819, %v1820
    %v1854 = vsel %vm508, %v1818, %v1819
    %v1855 = vsel %vm508, %v1817, %v1818
    %v1856 = vsel %vm508, %v1816, %v1817
    %v1857 = vsel %vm508, %v1815, %v1816
    %v1858 = vsel %vm508, %v1814, %v1815
    %v1859 = vsel %vm508, %v1813, %v1814
    %v1860 = vsel %vm508, %v1812, %v1813
    %v1861 = vsel %vm508, %v1811, %v1812
    %v1862 = vsel %vm508, %v1810, %v1811
    %v1863 = vsel %vm508, %v1809, %v1810
    %v1864 = vsel %vm508, %v1808, %v1809
    %v1865 = vsel %vm508, %v1807, %v1808
    %v1866 = vsel %vm508, %v1806, %v1807
    %v1867 = vsel %vm508, %v1805, %v1806
    %v1868 = vsel %vm508, %v1836, %v1805
    %v1869 = vmul.f32 %v1867, %v347
    %v1870 = vmul.f32 %v1866, %v348
    %v1871 = vmul.f32 %v1865, %v349
    %v1872 = vmul.f32 %v1864, %v350
    %v1873 = vmul.f32 %v1863, %v351
    %v1874 = vmul.f32 %v1862, %v352
    %v1875 = vmul.f32 %v1861, %v353
    %v1876 = vmul.f32 %v1860, %v354
    %v1877 = vmul.f32 %v1859, %v355
    %v1878 = vmul.f32 %v1858, %v356
    %v1879 = vmul.f32 %v1857, %v357
    %v1880 = vmul.f32 %v1856, %v358
    %v1881 = vmul.f32 %v1855, %v359
    %v1882 = vmul.f32 %v1854, %v360
    %v1883 = vmul.f32 %v1853, %v361
    %v1884 = vmul.f32 %v1852, %v362
    %v1885 = vmul.f32 %v1851, %v363
    %v1886 = vmul.f32 %v1850, %v364
    %v1887 = vmul.f32 %v1849, %v365
    %v1888 = vmul.f32 %v1848, %v366
    %v1889 = vmul.f32 %v1847, %v367
    %v1890 = vmul.f32 %v1846, %v368
    %v1891 = vmul.f32 %v1845, %v369
    %v1892 = vmul.f32 %v1844, %v370
    %v1893 = vmul.f32 %v1843, %v371
    %v1894 = vmul.f32 %v1842, %v372
    %v1895 = vmul.f32 %v1841, %v373
    %v1896 = vmul.f32 %v1840, %v374
    %v1897 = vmul.f32 %v1839, %v375
    %v1898 = vmul.f32 %v1838, %v376
    %v1899 = vmul.f32 %v1837, %v377
    %v1900 = vmul.f32 %v1868, %v378
    %v1901 = vld [vmem:[%s3] sm:$0xff]
    %v1902 = vld [vmem:[%s3 + $0x8] sm:$0xff]
    %v1903 = vld [vmem:[%s3 + $0x10] sm:$0xff]
    %v1904 = vld [vmem:[%s3 + $0x18] sm:$0xff]
    %v1905 = vld [vmem:[%s3 + $0x20] sm:$0xff]
    %v1906 = vld [vmem:[%s3 + $0x28] sm:$0xff]
    %v1907 = vld [vmem:[%s3 + $0x30] sm:$0xff]
    %v1908 = vld [vmem:[%s3 + $0x38] sm:$0xff]
    %s1909 = scalar_lea.vmem %s3, 64
    %v1910 = vld [vmem:[%s1909] sm:$0xff]
    %v1911 = vld [vmem:[%s1909 + $0x8] sm:$0xff]
    %v1912 = vld [vmem:[%s1909 + $0x10] sm:$0xff]
    %v1913 = vld [vmem:[%s1909 + $0x18] sm:$0xff]
    %v1914 = vld [vmem:[%s1909 + $0x20] sm:$0xff]
    %v1915 = vld [vmem:[%s1909 + $0x28] sm:$0xff]
    %v1916 = vld [vmem:[%s1909 + $0x30] sm:$0xff]
    %v1917 = vld [vmem:[%s1909 + $0x38] sm:$0xff]
    %vm1918 = vcmask 523264
    %v1920 = vsel %vm1918, %v1677, 0
    %v1923 = vsel %vm1918, %v1678, 0
    %v1926 = vsel %vm1918, %v1679, 0
    %v1929 = vsel %vm1918, %v1680, 0
    %v1932 = vsel %vm1918, %v1681, 0
    %v1935 = vsel %vm1918, %v1682, 0
    %v1938 = vsel %vm1918, %v1683, 0
    %v1941 = vsel %vm1918, %v1684, 0
    %v1944 = vsel %vm1918, %v1685, 0
    %v1947 = vsel %vm1918, %v1686, 0
    %v1950 = vsel %vm1918, %v1687, 0
    %v1953 = vsel %vm1918, %v1688, 0
    %v1956 = vsel %vm1918, %v1689, 0
    %v1959 = vsel %vm1918, %v1690, 0
    %v1962 = vsel %vm1918, %v1691, 0
    %v1965 = vsel %vm1918, %v1692, 0
    %v1968 = vsel %vm1918, %v1693, 0
    %v1971 = vsel %vm1918, %v1694, 0
    %v1974 = vsel %vm1918, %v1695, 0
    %v1977 = vsel %vm1918, %v1696, 0
    %v1980 = vsel %vm1918, %v1697, 0
    %v1983 = vsel %vm1918, %v1698, 0
    %v1986 = vsel %vm1918, %v1699, 0
    %v1989 = vsel %vm1918, %v1700, 0
    %v1992 = vsel %vm1918, %v1701, 0
    %v1995 = vsel %vm1918, %v1702, 0
    %v1998 = vsel %vm1918, %v1703, 0
    %v2001 = vsel %vm1918, %v1704, 0
    %v2004 = vsel %vm1918, %v1705, 0
    %v2007 = vsel %vm1918, %v1706, 0
    %v2010 = vsel %vm1918, %v1707, 0
    %v2013 = vsel %vm1918, %v1708, 0
    %2015 = vmatprep.subr.mxu0 0.0
    %2016 = vmatpush1.msra.mxu0 %v1910
    %2017 = vmatprep.subr.mxu0 0.0
    %2018 = vmatpush1.msra.mxu0 %v1911
    %2019 = vmatprep.subr.mxu0 0.0
    %2020 = vmatpush1.msra.mxu0 %v1912
    %2021 = vmatprep.subr.mxu0 0.0
    %2022 = vmatpush1.msra.mxu0 %v1913
    %2023 = vmatprep.subr.mxu0 0.0
    %2024 = vmatpush1.msra.mxu0 %v1914
    %2025 = vmatprep.subr.mxu0 0.0
    %2026 = vmatpush1.msra.mxu0 %v1915
    %2027 = vmatprep.subr.mxu0 0.0
    %2028 = vmatpush1.msra.mxu0 %v1916
    %2029 = vmatprep.subr.mxu0 0.0
    %2030 = vmatpush1.msra.mxu0 %v1917
    %2031 = vmatprep.subr.mxu0 0.0
    %2032 = vmatpush1.msra.mxu0 0.0
    %2033 = vmatprep.subr.mxu0 0.0
    %2034 = vmatpush1.msra.mxu0 0.0
    %2035 = vmatprep.subr.mxu0 0.0
    %2036 = vmatpush1.msra.mxu0 0.0
    %2037 = vmatprep.subr.mxu0 0.0
    %2038 = vmatpush1.msra.mxu0 0.0
    %2039 = vmatprep.subr.mxu0 0.0
    %2040 = vmatpush1.msra.mxu0 0.0
    %2041 = vmatprep.subr.mxu0 0.0
    %2042 = vmatpush1.msra.mxu0 0.0
    %2043 = vmatprep.subr.mxu0 0.0
    %2044 = vmatpush1.msra.mxu0 0.0
    %2045 = vmatprep.subr.mxu0 0.0
    %2046 = vmatpush1.msra.mxu0 0.0
    %2047 = vmatprep.subr.mxu0 0.0
    %2048 = vmatpush1.msra.mxu0 0.0
    %2049 = vmatprep.subr.mxu0 0.0
    %2050 = vmatpush1.msra.mxu0 0.0
    %2051 = vmatprep.subr.mxu0 0.0
    %2052 = vmatpush1.msra.mxu0 0.0
    %2053 = vmatprep.subr.mxu0 0.0
    %2054 = vmatpush1.msra.mxu0 0.0
    %2055 = vmatprep.subr.mxu0 0.0
    %2056 = vmatpush1.msra.mxu0 0.0
    %2057 = vmatprep.subr.mxu0 0.0
    %2058 = vmatpush1.msra.mxu0 0.0
    %2059 = vmatprep.subr.mxu0 0.0
    %2060 = vmatpush1.msra.mxu0 0.0
    %2061 = vmatprep.subr.mxu0 0.0
    %2062 = vmatpush1.msra.mxu0 0.0
    %2063 = vmatprep.subr.mxu0 0.0
    %2064 = vmatpush1.msra.mxu0 0.0
    %2065 = vmatprep.subr.mxu0 0.0
    %2066 = vmatpush1.msra.mxu0 0.0
    %2067 = vmatprep.subr.mxu0 0.0
    %2068 = vmatpush1.msra.mxu0 0.0
    %2069 = vmatprep.subr.mxu0 0.0
    %2070 = vmatpush1.msra.mxu0 0.0
    %2071 = vmatprep.subr.mxu0 0.0
    %2072 = vmatpush1.msra.mxu0 0.0
    %2073 = vmatprep.subr.mxu0 0.0
    %2074 = vmatpush1.msra.mxu0 0.0
    %2075 = vmatprep.subr.mxu0 0.0
    %2076 = vmatpush1.msra.mxu0 0.0
    %2077 = vmatprep.subr.mxu0 0.0
    %2078 = vmatpush1.msra.mxu0 0.0
    %2079 = vmatprep.mubr.f32.mxu0 0.0
    %2080 = vmatmul.mubr.f32.gmra.mrb[0].mxu0 %v1920
    %v2081 = vpop.f32.mrb[0].mxu0
    %v2082 = vadd.f32 0.0, %v2081
    %v2083 = vpop.f32.mrb[0].mxu0
    %2084 = vmatprep.mubr.f32.mxu0 0.0
    %2085 = vmatmul.mubr.f32.gmra.mrb[0].mxu0 %v1923
    %v2086 = vpop.f32.mrb[0].mxu0
    %v2087 = vadd.f32 0.0, %v2086
    %v2088 = vpop.f32.mrb[0].mxu0
    %2089 = vmatprep.mubr.f32.mxu0 0.0
    %2090 = vmatmul.mubr.f32.gmra.mrb[0].mxu0 %v1926
    %v2091 = vpop.f32.mrb[0].mxu0
    %v2092 = vadd.f32 0.0, %v2091
    %v2093 = vpop.f32.mrb[0].mxu0
    %2094 = vmatprep.mubr.f32.mxu0 0.0
    %2095 = vmatmul.mubr.f32.gmra.mrb[0].mxu0 %v1929
    %v2096 = vpop.f32.mrb[0].mxu0
    %v2097 = vadd.f32 0.0, %v2096
    %v2098 = vpop.f32.mrb[0].mxu0
    %2099 = vmatprep.mubr.f32.mxu0 0.0
    %2100 = vmatmul.mubr.f32.gmra.mrb[0].mxu0 %v1932
    %v2101 = vpop.f32.mrb[0].mxu0
    %v2102 = vadd.f32 0.0, %v2101
    %v2103 = vpop.f32.mrb[0].mxu0
    %2104 = vmatprep.mubr.f32.mxu0 0.0
    %2105 = vmatmul.mubr.f32.gmra.mrb[0].mxu0 %v1935
    %v2106 = vpop.f32.mrb[0].mxu0
    %v2107 = vadd.f32 0.0, %v2106
    %v2108 = vpop.f32.mrb[0].mxu0
    %2109 = vmatprep.mubr.f32.mxu0 0.0
    %2110 = vmatmul.mubr.f32.gmra.mrb[0].mxu0 %v1938
    %v2111 = vpop.f32.mrb[0].mxu0
    %v2112 = vadd.f32 0.0, %v2111
    %v2113 = vpop.f32.mrb[0].mxu0
    %2114 = vmatprep.mubr.f32.mxu0 0.0
    %2115 = vmatmul.mubr.f32.gmra.mrb[0].mxu0 %v1941
    %v2116 = vpop.f32.mrb[0].mxu0
    %v2117 = vadd.f32 0.0, %v2116
    %v2118 = vpop.f32.mrb[0].mxu0
    %2119 = vmatprep.mubr.f32.mxu0 0.0
    %2120 = vmatmul.mubr.f32.gmra.mrb[0].mxu0 %v1944
    %v2121 = vpop.f32.mrb[0].mxu0
    %v2122 = vadd.f32 0.0, %v2121
    %v2123 = vpop.f32.mrb[0].mxu0
    %2124 = vmatprep.mubr.f32.mxu0 0.0
    %2125 = vmatmul.mubr.f32.gmra.mrb[0].mxu0 %v1947
    %v2126 = vpop.f32.mrb[0].mxu0
    %v2127 = vadd.f32 0.0, %v2126
    %v2128 = vpop.f32.mrb[0].mxu0
    %2129 = vmatprep.mubr.f32.mxu0 0.0
    %2130 = vmatmul.mubr.f32.gmra.mrb[0].mxu0 %v1950
    %v2131 = vpop.f32.mrb[0].mxu0
    %v2132 = vadd.f32 0.0, %v2131
    %v2133 = vpop.f32.mrb[0].mxu0
    %2134 = vmatprep.mubr.f32.mxu0 0.0
    %2135 = vmatmul.mubr.f32.gmra.mrb[0].mxu0 %v1953
    %v2136 = vpop.f32.mrb[0].mxu0
    %v2137 = vadd.f32 0.0, %v2136
    %v2138 = vpop.f32.mrb[0].mxu0
    %2139 = vmatprep.mubr.f32.mxu0 0.0
    %2140 = vmatmul.mubr.f32.gmra.mrb[0].mxu0 %v1956
    %v2141 = vpop.f32.mrb[0].mxu0
    %v2142 = vadd.f32 0.0, %v2141
    %v2143 = vpop.f32.mrb[0].mxu0
    %2144 = vmatprep.mubr.f32.mxu0 0.0
    %2145 = vmatmul.mubr.f32.gmra.mrb[0].mxu0 %v1959
    %v2146 = vpop.f32.mrb[0].mxu0
    %v2147 = vadd.f32 0.0, %v2146
    %v2148 = vpop.f32.mrb[0].mxu0
    %2149 = vmatprep.mubr.f32.mxu0 0.0
    %2150 = vmatmul.mubr.f32.gmra.mrb[0].mxu0 %v1962
    %v2151 = vpop.f32.mrb[0].mxu0
    %v2152 = vadd.f32 0.0, %v2151
    %v2153 = vpop.f32.mrb[0].mxu0
    %2154 = vmatprep.mubr.f32.mxu0 0.0
    %2155 = vmatmul.mubr.f32.gmra.mrb[0].mxu0 %v1965
    %v2156 = vpop.f32.mrb[0].mxu0
    %v2157 = vadd.f32 0.0, %v2156
    %v2158 = vpop.f32.mrb[0].mxu0
    %2159 = vmatprep.mubr.f32.mxu0 0.0
    %2160 = vmatmul.mubr.f32.gmra.mrb[0].mxu0 %v1968
    %v2161 = vpop.f32.mrb[0].mxu0
    %v2162 = vadd.f32 0.0, %v2161
    %v2163 = vpop.f32.mrb[0].mxu0
    %2164 = vmatprep.mubr.f32.mxu0 0.0
    %2165 = vmatmul.mubr.f32.gmra.mrb[0].mxu0 %v1971
    %v2166 = vpop.f32.mrb[0].mxu0
    %v2167 = vadd.f32 0.0, %v2166
    %v2168 = vpop.f32.mrb[0].mxu0
    %2169 = vmatprep.mubr.f32.mxu0 0.0
    %2170 = vmatmul.mubr.f32.gmra.mrb[0].mxu0 %v1974
    %v2171 = vpop.f32.mrb[0].mxu0
    %v2172 = vadd.f32 0.0, %v2171
    %v2173 = vpop.f32.mrb[0].mxu0
    %2174 = vmatprep.mubr.f32.mxu0 0.0
    %2175 = vmatmul.mubr.f32.gmra.mrb[0].mxu0 %v1977
    %v2176 = vpop.f32.mrb[0].mxu0
    %v2177 = vadd.f32 0.0, %v2176
    %v2178 = vpop.f32.mrb[0].mxu0
    %2179 = vmatprep.mubr.f32.mxu0 0.0
    %2180 = vmatmul.mubr.f32.gmra.mrb[0].mxu0 %v1980
    %v2181 = vpop.f32.mrb[0].mxu0
    %v2182 = vadd.f32 0.0, %v2181
    %v2183 = vpop.f32.mrb[0].mxu0
    %2184 = vmatprep.mubr.f32.mxu0 0.0
    %2185 = vmatmul.mubr.f32.gmra.mrb[0].mxu0 %v1983
    %v2186 = vpop.f32.mrb[0].mxu0
    %v2187 = vadd.f32 0.0, %v2186
    %v2188 = vpop.f32.mrb[0].mxu0
    %2189 = vmatprep.mubr.f32.mxu0 0.0
    %2190 = vmatmul.mubr.f32.gmra.mrb[0].mxu0 %v1986
    %v2191 = vpop.f32.mrb[0].mxu0
    %v2192 = vadd.f32 0.0, %v2191
    %v2193 = vpop.f32.mrb[0].mxu0
    %2194 = vmatprep.mubr.f32.mxu0 0.0
    %2195 = vmatmul.mubr.f32.gmra.mrb[0].mxu0 %v1989
    %v2196 = vpop.f32.mrb[0].mxu0
    %v2197 = vadd.f32 0.0, %v2196
    %v2198 = vpop.f32.mrb[0].mxu0
    %2199 = vmatprep.mubr.f32.mxu0 0.0
    %2200 = vmatmul.mubr.f32.gmra.mrb[0].mxu0 %v1992
    %v2201 = vpop.f32.mrb[0].mxu0
    %v2202 = vadd.f32 0.0, %v2201
    %v2203 = vpop.f32.mrb[0].mxu0
    %2204 = vmatprep.mubr.f32.mxu0 0.0
    %2205 = vmatmul.mubr.f32.gmra.mrb[0].mxu0 %v1995
    %v2206 = vpop.f32.mrb[0].mxu0
    %v2207 = vadd.f32 0.0, %v2206
    %v2208 = vpop.f32.mrb[0].mxu0
    %2209 = vmatprep.mubr.f32.mxu0 0.0
    %2210 = vmatmul.mubr.f32.gmra.mrb[0].mxu0 %v1998
    %v2211 = vpop.f32.mrb[0].mxu0
    %v2212 = vadd.f32 0.0, %v2211
    %v2213 = vpop.f32.mrb[0].mxu0
    %2214 = vmatprep.mubr.f32.mxu0 0.0
    %2215 = vmatmul.mubr.f32.gmra.mrb[0].mxu0 %v2001
    %v2216 = vpop.f32.mrb[0].mxu0
    %v2217 = vadd.f32 0.0, %v2216
    %v2218 = vpop.f32.mrb[0].mxu0
    %2219 = vmatprep.mubr.f32.mxu0 0.0
    %2220 = vmatmul.mubr.f32.gmra.mrb[0].mxu0 %v2004
    %v2221 = vpop.f32.mrb[0].mxu0
    %v2222 = vadd.f32 0.0, %v2221
    %v2223 = vpop.f32.mrb[0].mxu0
    %2224 = vmatprep.mubr.f32.mxu0 0.0
    %2225 = vmatmul.mubr.f32.gmra.mrb[0].mxu0 %v2007
    %v2226 = vpop.f32.mrb[0].mxu0
    %v2227 = vadd.f32 0.0, %v2226
    %v2228 = vpop.f32.mrb[0].mxu0
    %2229 = vmatprep.mubr.f32.mxu0 0.0
    %2230 = vmatmul.mubr.f32.gmra.mrb[0].mxu0 %v2010
    %v2231 = vpop.f32.mrb[0].mxu0
    %v2232 = vadd.f32 0.0, %v2231
    %v2233 = vpop.f32.mrb[0].mxu0
    %2234 = vmatprep.mubr.f32.mxu0 0.0
    %2235 = vmatmul.mubr.f32.gmra.mrb[0].mxu0 %v2013
    %v2236 = vpop.f32.mrb[0].mxu0
    %v2237 = vadd.f32 0.0, %v2236
    %v2238 = vpop.f32.mrb[0].mxu0
    %2239 = vdwg.mxu0
    %v2241 = vsel %vm1918, %v1773, 0
    %v2244 = vsel %vm1918, %v1774, 0
    %v2247 = vsel %vm1918, %v1775, 0
    %v2250 = vsel %vm1918, %v1776, 0
    %v2253 = vsel %vm1918, %v1777, 0
    %v2256 = vsel %vm1918, %v1778, 0
    %v2259 = vsel %vm1918, %v1779, 0
    %v2262 = vsel %vm1918, %v1780, 0
    %v2265 = vsel %vm1918, %v1781, 0
    %v2268 = vsel %vm1918, %v1782, 0
    %v2271 = vsel %vm1918, %v1783, 0
    %v2274 = vsel %vm1918, %v1784, 0
    %v2277 = vsel %vm1918, %v1785, 0
    %v2280 = vsel %vm1918, %v1786, 0
    %v2283 = vsel %vm1918, %v1787, 0
    %v2286 = vsel %vm1918, %v1788, 0
    %v2289 = vsel %vm1918, %v1789, 0
    %v2292 = vsel %vm1918, %v1790, 0
    %v2295 = vsel %vm1918, %v1791, 0
    %v2298 = vsel %vm1918, %v1792, 0
    %v2301 = vsel %vm1918, %v1793, 0
    %v2304 = vsel %vm1918, %v1794, 0
    %v2307 = vsel %vm1918, %v1795, 0
    %v2310 = vsel %vm1918, %v1796, 0
    %v2313 = vsel %vm1918, %v1797, 0
    %v2316 = vsel %vm1918, %v1798, 0
    %v2319 = vsel %vm1918, %v1799, 0
    %v2322 = vsel %vm1918, %v1800, 0
    %v2325 = vsel %vm1918, %v1801, 0
    %v2328 = vsel %vm1918, %v1802, 0
    %v2331 = vsel %vm1918, %v1803, 0
    %v2334 = vsel %vm1918, %v1804, 0
    %2336 = vmatprep.subr.mxu0 0.0
    %2337 = vmatpush1.msra.mxu0 %v1901
    %2338 = vmatprep.subr.mxu0 0.0
    %2339 = vmatpush1.msra.mxu0 %v1902
    %2340 = vmatprep.subr.mxu0 0.0
    %2341 = vmatpush1.msra.mxu0 %v1903
    %2342 = vmatprep.subr.mxu0 0.0
    %2343 = vmatpush1.msra.mxu0 %v1904
    %2344 = vmatprep.subr.mxu0 0.0
    %2345 = vmatpush1.msra.mxu0 %v1905
    %2346 = vmatprep.subr.mxu0 0.0
    %2347 = vmatpush1.msra.mxu0 %v1906
    %2348 = vmatprep.subr.mxu0 0.0
    %2349 = vmatpush1.msra.mxu0 %v1907
    %2350 = vmatprep.subr.mxu0 0.0
    %2351 = vmatpush1.msra.mxu0 %v1908
    %2352 = vmatprep.subr.mxu0 0.0
    %2353 = vmatpush1.msra.mxu0 0.0
    %2354 = vmatprep.subr.mxu0 0.0
    %2355 = vmatpush1.msra.mxu0 0.0
    %2356 = vmatprep.subr.mxu0 0.0
    %2357 = vmatpush1.msra.mxu0 0.0
    %2358 = vmatprep.subr.mxu0 0.0
    %2359 = vmatpush1.msra.mxu0 0.0
    %2360 = vmatprep.subr.mxu0 0.0
    %2361 = vmatpush1.msra.mxu0 0.0
    %2362 = vmatprep.subr.mxu0 0.0
    %2363 = vmatpush1.msra.mxu0 0.0
    %2364 = vmatprep.subr.mxu0 0.0
    %2365 = vmatpush1.msra.mxu0 0.0
    %2366 = vmatprep.subr.mxu0 0.0
    %2367 = vmatpush1.msra.mxu0 0.0
    %2368 = vmatprep.subr.mxu0 0.0
    %2369 = vmatpush1.msra.mxu0 0.0
    %2370 = vmatprep.subr.mxu0 0.0
    %2371 = vmatpush1.msra.mxu0 0.0
    %2372 = vmatprep.subr.mxu0 0.0
    %2373 = vmatpush1.msra.mxu0 0.0
    %2374 = vmatprep.subr.mxu0 0.0
    %2375 = vmatpush1.msra.mxu0 0.0
    %2376 = vmatprep.subr.mxu0 0.0
    %2377 = vmatpush1.msra.mxu0 0.0
    %2378 = vmatprep.subr.mxu0 0.0
    %2379 = vmatpush1.msra.mxu0 0.0
    %2380 = vmatprep.subr.mxu0 0.0
    %2381 = vmatpush1.msra.mxu0 0.0
    %2382 = vmatprep.subr.mxu0 0.0
    %2383 = vmatpush1.msra.mxu0 0.0
    %2384 = vmatprep.subr.mxu0 0.0
    %2385 = vmatpush1.msra.mxu0 0.0
    %2386 = vmatprep.subr.mxu0 0.0
    %2387 = vmatpush1.msra.mxu0 0.0
    %2388 = vmatprep.subr.mxu0 0.0
    %2389 = vmatpush1.msra.mxu0 0.0
    %2390 = vmatprep.subr.mxu0 0.0
    %2391 = vmatpush1.msra.mxu0 0.0
    %2392 = vmatprep.subr.mxu0 0.0
    %2393 = vmatpush1.msra.mxu0 0.0
    %2394 = vmatprep.subr.mxu0 0.0
    %2395 = vmatpush1.msra.mxu0 0.0
    %2396 = vmatprep.subr.mxu0 0.0
    %2397 = vmatpush1.msra.mxu0 0.0
    %2398 = vmatprep.subr.mxu0 0.0
    %2399 = vmatpush1.msra.mxu0 0.0
    %2400 = vmatprep.mubr.f32.mxu0 0.0
    %2401 = vmatmul.mubr.f32.gmra.mrb[0].mxu0 %v2241
    %v2402 = vpop.f32.mrb[0].mxu0
    %v2403 = vadd.f32 %v2082, %v2402
    %v2404 = vpop.f32.mrb[0].mxu0
    %2405 = vmatprep.mubr.f32.mxu0 0.0
    %2406 = vmatmul.mubr.f32.gmra.mrb[0].mxu0 %v2244
    %v2407 = vpop.f32.mrb[0].mxu0
    %v2408 = vadd.f32 %v2087, %v2407
    %v2409 = vpop.f32.mrb[0].mxu0
    %2410 = vmatprep.mubr.f32.mxu0 0.0
    %2411 = vmatmul.mubr.f32.gmra.mrb[0].mxu0 %v2247
    %v2412 = vpop.f32.mrb[0].mxu0
    %v2413 = vadd.f32 %v2092, %v2412
    %v2414 = vpop.f32.mrb[0].mxu0
    %2415 = vmatprep.mubr.f32.mxu0 0.0
    %2416 = vmatmul.mubr.f32.gmra.mrb[0].mxu0 %v2250
    %v2417 = vpop.f32.mrb[0].mxu0
    %v2418 = vadd.f32 %v2097, %v2417
    %v2419 = vpop.f32.mrb[0].mxu0
    %2420 = vmatprep.mubr.f32.mxu0 0.0
    %2421 = vmatmul.mubr.f32.gmra.mrb[0].mxu0 %v2253
    %v2422 = vpop.f32.mrb[0].mxu0
    %v2423 = vadd.f32 %v2102, %v2422
    %v2424 = vpop.f32.mrb[0].mxu0
    %2425 = vmatprep.mubr.f32.mxu0 0.0
    %2426 = vmatmul.mubr.f32.gmra.mrb[0].mxu0 %v2256
    %v2427 = vpop.f32.mrb[0].mxu0
    %v2428 = vadd.f32 %v2107, %v2427
    %v2429 = vpop.f32.mrb[0].mxu0
    %2430 = vmatprep.mubr.f32.mxu0 0.0
    %2431 = vmatmul.mubr.f32.gmra.mrb[0].mxu0 %v2259
    %v2432 = vpop.f32.mrb[0].mxu0
    %v2433 = vadd.f32 %v2112, %v2432
    %v2434 = vpop.f32.mrb[0].mxu0
    %2435 = vmatprep.mubr.f32.mxu0 0.0
    %2436 = vmatmul.mubr.f32.gmra.mrb[0].mxu0 %v2262
    %v2437 = vpop.f32.mrb[0].mxu0
    %v2438 = vadd.f32 %v2117, %v2437
    %v2439 = vpop.f32.mrb[0].mxu0
    %2440 = vmatprep.mubr.f32.mxu0 0.0
    %2441 = vmatmul.mubr.f32.gmra.mrb[0].mxu0 %v2265
    %v2442 = vpop.f32.mrb[0].mxu0
    %v2443 = vadd.f32 %v2122, %v2442
    %v2444 = vpop.f32.mrb[0].mxu0
    %2445 = vmatprep.mubr.f32.mxu0 0.0
    %2446 = vmatmul.mubr.f32.gmra.mrb[0].mxu0 %v2268
    %v2447 = vpop.f32.mrb[0].mxu0
    %v2448 = vadd.f32 %v2127, %v2447
    %v2449 = vpop.f32.mrb[0].mxu0
    %2450 = vmatprep.mubr.f32.mxu0 0.0
    %2451 = vmatmul.mubr.f32.gmra.mrb[0].mxu0 %v2271
    %v2452 = vpop.f32.mrb[0].mxu0
    %v2453 = vadd.f32 %v2132, %v2452
    %v2454 = vpop.f32.mrb[0].mxu0
    %2455 = vmatprep.mubr.f32.mxu0 0.0
    %2456 = vmatmul.mubr.f32.gmra.mrb[0].mxu0 %v2274
    %v2457 = vpop.f32.mrb[0].mxu0
    %v2458 = vadd.f32 %v2137, %v2457
    %v2459 = vpop.f32.mrb[0].mxu0
    %2460 = vmatprep.mubr.f32.mxu0 0.0
    %2461 = vmatmul.mubr.f32.gmra.mrb[0].mxu0 %v2277
    %v2462 = vpop.f32.mrb[0].mxu0
    %v2463 = vadd.f32 %v2142, %v2462
    %v2464 = vpop.f32.mrb[0].mxu0
    %2465 = vmatprep.mubr.f32.mxu0 0.0
    %2466 = vmatmul.mubr.f32.gmra.mrb[0].mxu0 %v2280
    %v2467 = vpop.f32.mrb[0].mxu0
    %v2468 = vadd.f32 %v2147, %v2467
    %v2469 = vpop.f32.mrb[0].mxu0
    %2470 = vmatprep.mubr.f32.mxu0 0.0
    %2471 = vmatmul.mubr.f32.gmra.mrb[0].mxu0 %v2283
    %v2472 = vpop.f32.mrb[0].mxu0
    %v2473 = vadd.f32 %v2152, %v2472
    %v2474 = vpop.f32.mrb[0].mxu0
    %2475 = vmatprep.mubr.f32.mxu0 0.0
    %2476 = vmatmul.mubr.f32.gmra.mrb[0].mxu0 %v2286
    %v2477 = vpop.f32.mrb[0].mxu0
    %v2478 = vadd.f32 %v2157, %v2477
    %v2479 = vpop.f32.mrb[0].mxu0
    %2480 = vmatprep.mubr.f32.mxu0 0.0
    %2481 = vmatmul.mubr.f32.gmra.mrb[0].mxu0 %v2289
    %v2482 = vpop.f32.mrb[0].mxu0
    %v2483 = vadd.f32 %v2162, %v2482
    %v2484 = vpop.f32.mrb[0].mxu0
    %2485 = vmatprep.mubr.f32.mxu0 0.0
    %2486 = vmatmul.mubr.f32.gmra.mrb[0].mxu0 %v2292
    %v2487 = vpop.f32.mrb[0].mxu0
    %v2488 = vadd.f32 %v2167, %v2487
    %v2489 = vpop.f32.mrb[0].mxu0
    %2490 = vmatprep.mubr.f32.mxu0 0.0
    %2491 = vmatmul.mubr.f32.gmra.mrb[0].mxu0 %v2295
    %v2492 = vpop.f32.mrb[0].mxu0
    %v2493 = vadd.f32 %v2172, %v2492
    %v2494 = vpop.f32.mrb[0].mxu0
    %2495 = vmatprep.mubr.f32.mxu0 0.0
    %2496 = vmatmul.mubr.f32.gmra.mrb[0].mxu0 %v2298
    %v2497 = vpop.f32.mrb[0].mxu0
    %v2498 = vadd.f32 %v2177, %v2497
    %v2499 = vpop.f32.mrb[0].mxu0
    %2500 = vmatprep.mubr.f32.mxu0 0.0
    %2501 = vmatmul.mubr.f32.gmra.mrb[0].mxu0 %v2301
    %v2502 = vpop.f32.mrb[0].mxu0
    %v2503 = vadd.f32 %v2182, %v2502
    %v2504 = vpop.f32.mrb[0].mxu0
    %2505 = vmatprep.mubr.f32.mxu0 0.0
    %2506 = vmatmul.mubr.f32.gmra.mrb[0].mxu0 %v2304
    %v2507 = vpop.f32.mrb[0].mxu0
    %v2508 = vadd.f32 %v2187, %v2507
    %v2509 = vpop.f32.mrb[0].mxu0
    %2510 = vmatprep.mubr.f32.mxu0 0.0
    %2511 = vmatmul.mubr.f32.gmra.mrb[0].mxu0 %v2307
    %v2512 = vpop.f32.mrb[0].mxu0
    %v2513 = vadd.f32 %v2192, %v2512
    %v2514 = vpop.f32.mrb[0].mxu0
    %2515 = vmatprep.mubr.f32.mxu0 0.0
    %2516 = vmatmul.mubr.f32.gmra.mrb[0].mxu0 %v2310
    %v2517 = vpop.f32.mrb[0].mxu0
    %v2518 = vadd.f32 %v2197, %v2517
    %v2519 = vpop.f32.mrb[0].mxu0
    %2520 = vmatprep.mubr.f32.mxu0 0.0
    %2521 = vmatmul.mubr.f32.gmra.mrb[0].mxu0 %v2313
    %v2522 = vpop.f32.mrb[0].mxu0
    %v2523 = vadd.f32 %v2202, %v2522
    %v2524 = vpop.f32.mrb[0].mxu0
    %2525 = vmatprep.mubr.f32.mxu0 0.0
    %2526 = vmatmul.mubr.f32.gmra.mrb[0].mxu0 %v2316
    %v2527 = vpop.f32.mrb[0].mxu0
    %v2528 = vadd.f32 %v2207, %v2527
    %v2529 = vpop.f32.mrb[0].mxu0
    %2530 = vmatprep.mubr.f32.mxu0 0.0
    %2531 = vmatmul.mubr.f32.gmra.mrb[0].mxu0 %v2319
    %v2532 = vpop.f32.mrb[0].mxu0
    %v2533 = vadd.f32 %v2212, %v2532
    %v2534 = vpop.f32.mrb[0].mxu0
    %2535 = vmatprep.mubr.f32.mxu0 0.0
    %2536 = vmatmul.mubr.f32.gmra.mrb[0].mxu0 %v2322
    %v2537 = vpop.f32.mrb[0].mxu0
    %v2538 = vadd.f32 %v2217, %v2537
    %v2539 = vpop.f32.mrb[0].mxu0
    %2540 = vmatprep.mubr.f32.mxu0 0.0
    %2541 = vmatmul.mubr.f32.gmra.mrb[0].mxu0 %v2325
    %v2542 = vpop.f32.mrb[0].mxu0
    %v2543 = vadd.f32 %v2222, %v2542
    %v2544 = vpop.f32.mrb[0].mxu0
    %2545 = vmatprep.mubr.f32.mxu0 0.0
    %2546 = vmatmul.mubr.f32.gmra.mrb[0].mxu0 %v2328
    %v2547 = vpop.f32.mrb[0].mxu0
    %v2548 = vadd.f32 %v2227, %v2547
    %v2549 = vpop.f32.mrb[0].mxu0
    %2550 = vmatprep.mubr.f32.mxu0 0.0
    %2551 = vmatmul.mubr.f32.gmra.mrb[0].mxu0 %v2331
    %v2552 = vpop.f32.mrb[0].mxu0
    %v2553 = vadd.f32 %v2232, %v2552
    %v2554 = vpop.f32.mrb[0].mxu0
    %2555 = vmatprep.mubr.f32.mxu0 0.0
    %2556 = vmatmul.mubr.f32.gmra.mrb[0].mxu0 %v2334
    %v2557 = vpop.f32.mrb[0].mxu0
    %v2558 = vadd.f32 %v2237, %v2557
    %v2559 = vpop.f32.mrb[0].mxu0
    %2560 = vdwg.mxu0
    %s2561 = scalar_lea.vmem %s3, 128
    %v2562 = vld [vmem:[%s2561] sm:$0xff]
    %v2563 = vld [vmem:[%s2561 + $0x8] sm:$0xff]
    %v2564 = vld [vmem:[%s2561 + $0x10] sm:$0xff]
    %v2565 = vld [vmem:[%s2561 + $0x18] sm:$0xff]
    %v2566 = vld [vmem:[%s2561 + $0x20] sm:$0xff]
    %v2567 = vld [vmem:[%s2561 + $0x28] sm:$0xff]
    %v2568 = vld [vmem:[%s2561 + $0x30] sm:$0xff]
    %v2569 = vld [vmem:[%s2561 + $0x38] sm:$0xff]
    %v2571 = vsel %vm1918, %v1869, 0
    %v2574 = vsel %vm1918, %v1870, 0
    %v2577 = vsel %vm1918, %v1871, 0
    %v2580 = vsel %vm1918, %v1872, 0
    %v2583 = vsel %vm1918, %v1873, 0
    %v2586 = vsel %vm1918, %v1874, 0
    %v2589 = vsel %vm1918, %v1875, 0
    %v2592 = vsel %vm1918, %v1876, 0
    %v2595 = vsel %vm1918, %v1877, 0
    %v2598 = vsel %vm1918, %v1878, 0
    %v2601 = vsel %vm1918, %v1879, 0
    %v2604 = vsel %vm1918, %v1880, 0
    %v2607 = vsel %vm1918, %v1881, 0
    %v2610 = vsel %vm1918, %v1882, 0
    %v2613 = vsel %vm1918, %v1883, 0
    %v2616 = vsel %vm1918, %v1884, 0
    %v2619 = vsel %vm1918, %v1885, 0
    %v2622 = vsel %vm1918, %v1886, 0
    %v2625 = vsel %vm1918, %v1887, 0
    %v2628 = vsel %vm1918, %v1888, 0
    %v2631 = vsel %vm1918, %v1889, 0
    %v2634 = vsel %vm1918, %v1890, 0
    %v2637 = vsel %vm1918, %v1891, 0
    %v2640 = vsel %vm1918, %v1892, 0
    %v2643 = vsel %vm1918, %v1893, 0
    %v2646 = vsel %vm1918, %v1894, 0
    %v2649 = vsel %vm1918, %v1895, 0
    %v2652 = vsel %vm1918, %v1896, 0
    %v2655 = vsel %vm1918, %v1897, 0
    %v2658 = vsel %vm1918, %v1898, 0
    %v2661 = vsel %vm1918, %v1899, 0
    %v2664 = vsel %vm1918, %v1900, 0
    %2666 = vmatprep.subr.mxu0 0.0
    %2667 = vmatpush1.msra.mxu0 %v2562
    %2668 = vmatprep.subr.mxu0 0.0
    %2669 = vmatpush1.msra.mxu0 %v2563
    %2670 = vmatprep.subr.mxu0 0.0
    %2671 = vmatpush1.msra.mxu0 %v2564
    %2672 = vmatprep.subr.mxu0 0.0
    %2673 = vmatpush1.msra.mxu0 %v2565
    %2674 = vmatprep.subr.mxu0 0.0
    %2675 = vmatpush1.msra.mxu0 %v2566
    %2676 = vmatprep.subr.mxu0 0.0
    %2677 = vmatpush1.msra.mxu0 %v2567
    %2678 = vmatprep.subr.mxu0 0.0
    %2679 = vmatpush1.msra.mxu0 %v2568
    %2680 = vmatprep.subr.mxu0 0.0
    %2681 = vmatpush1.msra.mxu0 %v2569
    %2682 = vmatprep.subr.mxu0 0.0
    %2683 = vmatpush1.msra.mxu0 0.0
    %2684 = vmatprep.subr.mxu0 0.0
    %2685 = vmatpush1.msra.mxu0 0.0
    %2686 = vmatprep.subr.mxu0 0.0
    %2687 = vmatpush1.msra.mxu0 0.0
    %2688 = vmatprep.subr.mxu0 0.0
    %2689 = vmatpush1.msra.mxu0 0.0
    %2690 = vmatprep.subr.mxu0 0.0
    %2691 = vmatpush1.msra.mxu0 0.0
    %2692 = vmatprep.subr.mxu0 0.0
    %2693 = vmatpush1.msra.mxu0 0.0
    %2694 = vmatprep.subr.mxu0 0.0
    %2695 = vmatpush1.msra.mxu0 0.0
    %2696 = vmatprep.subr.mxu0 0.0
    %2697 = vmatpush1.msra.mxu0 0.0
    %2698 = vmatprep.subr.mxu0 0.0
    %2699 = vmatpush1.msra.mxu0 0.0
    %2700 = vmatprep.subr.mxu0 0.0
    %2701 = vmatpush1.msra.mxu0 0.0
    %2702 = vmatprep.subr.mxu0 0.0
    %2703 = vmatpush1.msra.mxu0 0.0
    %2704 = vmatprep.subr.mxu0 0.0
    %2705 = vmatpush1.msra.mxu0 0.0
    %2706 = vmatprep.subr.mxu0 0.0
    %2707 = vmatpush1.msra.mxu0 0.0
    %2708 = vmatprep.subr.mxu0 0.0
    %2709 = vmatpush1.msra.mxu0 0.0
    %2710 = vmatprep.subr.mxu0 0.0
    %2711 = vmatpush1.msra.mxu0 0.0
    %2712 = vmatprep.subr.mxu0 0.0
    %2713 = vmatpush1.msra.mxu0 0.0
    %2714 = vmatprep.subr.mxu0 0.0
    %2715 = vmatpush1.msra.mxu0 0.0
    %2716 = vmatprep.subr.mxu0 0.0
    %2717 = vmatpush1.msra.mxu0 0.0
    %2718 = vmatprep.subr.mxu0 0.0
    %2719 = vmatpush1.msra.mxu0 0.0
    %2720 = vmatprep.subr.mxu0 0.0
    %2721 = vmatpush1.msra.mxu0 0.0
    %2722 = vmatprep.subr.mxu0 0.0
    %2723 = vmatpush1.msra.mxu0 0.0
    %2724 = vmatprep.subr.mxu0 0.0
    %2725 = vmatpush1.msra.mxu0 0.0
    %2726 = vmatprep.subr.mxu0 0.0
    %2727 = vmatpush1.msra.mxu0 0.0
    %2728 = vmatprep.subr.mxu0 0.0
    %2729 = vmatpush1.msra.mxu0 0.0
    %2730 = vmatprep.mubr.f32.mxu0 0.0
    %2731 = vmatmul.mubr.f32.gmra.mrb[0].mxu0 %v2571
    %v2732 = vpop.f32.mrb[0].mxu0
    %v2733 = vadd.f32 0.0, %v2732
    %v2734 = vpop.f32.mrb[0].mxu0
    %2735 = vmatprep.mubr.f32.mxu0 0.0
    %2736 = vmatmul.mubr.f32.gmra.mrb[0].mxu0 %v2574
    %v2737 = vpop.f32.mrb[0].mxu0
    %v2738 = vadd.f32 0.0, %v2737
    %v2739 = vpop.f32.mrb[0].mxu0
    %2740 = vmatprep.mubr.f32.mxu0 0.0
    %2741 = vmatmul.mubr.f32.gmra.mrb[0].mxu0 %v2577
    %v2742 = vpop.f32.mrb[0].mxu0
    %v2743 = vadd.f32 0.0, %v2742
    %v2744 = vpop.f32.mrb[0].mxu0
    %2745 = vmatprep.mubr.f32.mxu0 0.0
    %2746 = vmatmul.mubr.f32.gmra.mrb[0].mxu0 %v2580
    %v2747 = vpop.f32.mrb[0].mxu0
    %v2748 = vadd.f32 0.0, %v2747
    %v2749 = vpop.f32.mrb[0].mxu0
    %2750 = vmatprep.mubr.f32.mxu0 0.0
    %2751 = vmatmul.mubr.f32.gmra.mrb[0].mxu0 %v2583
    %v2752 = vpop.f32.mrb[0].mxu0
    %v2753 = vadd.f32 0.0, %v2752
    %v2754 = vpop.f32.mrb[0].mxu0
    %2755 = vmatprep.mubr.f32.mxu0 0.0
    %2756 = vmatmul.mubr.f32.gmra.mrb[0].mxu0 %v2586
    %v2757 = vpop.f32.mrb[0].mxu0
    %v2758 = vadd.f32 0.0, %v2757
    %v2759 = vpop.f32.mrb[0].mxu0
    %2760 = vmatprep.mubr.f32.mxu0 0.0
    %2761 = vmatmul.mubr.f32.gmra.mrb[0].mxu0 %v2589
    %v2762 = vpop.f32.mrb[0].mxu0
    %v2763 = vadd.f32 0.0, %v2762
    %v2764 = vpop.f32.mrb[0].mxu0
    %2765 = vmatprep.mubr.f32.mxu0 0.0
    %2766 = vmatmul.mubr.f32.gmra.mrb[0].mxu0 %v2592
    %v2767 = vpop.f32.mrb[0].mxu0
    %v2768 = vadd.f32 0.0, %v2767
    %v2769 = vpop.f32.mrb[0].mxu0
    %2770 = vmatprep.mubr.f32.mxu0 0.0
    %2771 = vmatmul.mubr.f32.gmra.mrb[0].mxu0 %v2595
    %v2772 = vpop.f32.mrb[0].mxu0
    %v2773 = vadd.f32 0.0, %v2772
    %v2774 = vpop.f32.mrb[0].mxu0
    %2775 = vmatprep.mubr.f32.mxu0 0.0
    %2776 = vmatmul.mubr.f32.gmra.mrb[0].mxu0 %v2598
    %v2777 = vpop.f32.mrb[0].mxu0
    %v2778 = vadd.f32 0.0, %v2777
    %v2779 = vpop.f32.mrb[0].mxu0
    %2780 = vmatprep.mubr.f32.mxu0 0.0
    %2781 = vmatmul.mubr.f32.gmra.mrb[0].mxu0 %v2601
    %v2782 = vpop.f32.mrb[0].mxu0
    %v2783 = vadd.f32 0.0, %v2782
    %v2784 = vpop.f32.mrb[0].mxu0
    %2785 = vmatprep.mubr.f32.mxu0 0.0
    %2786 = vmatmul.mubr.f32.gmra.mrb[0].mxu0 %v2604
    %v2787 = vpop.f32.mrb[0].mxu0
    %v2788 = vadd.f32 0.0, %v2787
    %v2789 = vpop.f32.mrb[0].mxu0
    %2790 = vmatprep.mubr.f32.mxu0 0.0
    %2791 = vmatmul.mubr.f32.gmra.mrb[0].mxu0 %v2607
    %v2792 = vpop.f32.mrb[0].mxu0
    %v2793 = vadd.f32 0.0, %v2792
    %v2794 = vpop.f32.mrb[0].mxu0
    %2795 = vmatprep.mubr.f32.mxu0 0.0
    %2796 = vmatmul.mubr.f32.gmra.mrb[0].mxu0 %v2610
    %v2797 = vpop.f32.mrb[0].mxu0
    %v2798 = vadd.f32 0.0, %v2797
    %v2799 = vpop.f32.mrb[0].mxu0
    %2800 = vmatprep.mubr.f32.mxu0 0.0
    %2801 = vmatmul.mubr.f32.gmra.mrb[0].mxu0 %v2613
    %v2802 = vpop.f32.mrb[0].mxu0
    %v2803 = vadd.f32 0.0, %v2802
    %v2804 = vpop.f32.mrb[0].mxu0
    %2805 = vmatprep.mubr.f32.mxu0 0.0
    %2806 = vmatmul.mubr.f32.gmra.mrb[0].mxu0 %v2616
    %v2807 = vpop.f32.mrb[0].mxu0
    %v2808 = vadd.f32 0.0, %v2807
    %v2809 = vpop.f32.mrb[0].mxu0
    %2810 = vmatprep.mubr.f32.mxu0 0.0
    %2811 = vmatmul.mubr.f32.gmra.mrb[0].mxu0 %v2619
    %v2812 = vpop.f32.mrb[0].mxu0
    %v2813 = vadd.f32 0.0, %v2812
    %v2814 = vpop.f32.mrb[0].mxu0
    %2815 = vmatprep.mubr.f32.mxu0 0.0
    %2816 = vmatmul.mubr.f32.gmra.mrb[0].mxu0 %v2622
    %v2817 = vpop.f32.mrb[0].mxu0
    %v2818 = vadd.f32 0.0, %v2817
    %v2819 = vpop.f32.mrb[0].mxu0
    %2820 = vmatprep.mubr.f32.mxu0 0.0
    %2821 = vmatmul.mubr.f32.gmra.mrb[0].mxu0 %v2625
    %v2822 = vpop.f32.mrb[0].mxu0
    %v2823 = vadd.f32 0.0, %v2822
    %v2824 = vpop.f32.mrb[0].mxu0
    %2825 = vmatprep.mubr.f32.mxu0 0.0
    %2826 = vmatmul.mubr.f32.gmra.mrb[0].mxu0 %v2628
    %v2827 = vpop.f32.mrb[0].mxu0
    %v2828 = vadd.f32 0.0, %v2827
    %v2829 = vpop.f32.mrb[0].mxu0
    %2830 = vmatprep.mubr.f32.mxu0 0.0
    %2831 = vmatmul.mubr.f32.gmra.mrb[0].mxu0 %v2631
    %v2832 = vpop.f32.mrb[0].mxu0
    %v2833 = vadd.f32 0.0, %v2832
    %v2834 = vpop.f32.mrb[0].mxu0
    %2835 = vmatprep.mubr.f32.mxu0 0.0
    %2836 = vmatmul.mubr.f32.gmra.mrb[0].mxu0 %v2634
    %v2837 = vpop.f32.mrb[0].mxu0
    %v2838 = vadd.f32 0.0, %v2837
    %v2839 = vpop.f32.mrb[0].mxu0
    %2840 = vmatprep.mubr.f32.mxu0 0.0
    %2841 = vmatmul.mubr.f32.gmra.mrb[0].mxu0 %v2637
    %v2842 = vpop.f32.mrb[0].mxu0
    %v2843 = vadd.f32 0.0, %v2842
    %v2844 = vpop.f32.mrb[0].mxu0
    %2845 = vmatprep.mubr.f32.mxu0 0.0
    %2846 = vmatmul.mubr.f32.gmra.mrb[0].mxu0 %v2640
    %v2847 = vpop.f32.mrb[0].mxu0
    %v2848 = vadd.f32 0.0, %v2847
    %v2849 = vpop.f32.mrb[0].mxu0
    %2850 = vmatprep.mubr.f32.mxu0 0.0
    %2851 = vmatmul.mubr.f32.gmra.mrb[0].mxu0 %v2643
    %v2852 = vpop.f32.mrb[0].mxu0
    %v2853 = vadd.f32 0.0, %v2852
    %v2854 = vpop.f32.mrb[0].mxu0
    %2855 = vmatprep.mubr.f32.mxu0 0.0
    %2856 = vmatmul.mubr.f32.gmra.mrb[0].mxu0 %v2646
    %v2857 = vpop.f32.mrb[0].mxu0
    %v2858 = vadd.f32 0.0, %v2857
    %v2859 = vpop.f32.mrb[0].mxu0
    %2860 = vmatprep.mubr.f32.mxu0 0.0
    %2861 = vmatmul.mubr.f32.gmra.mrb[0].mxu0 %v2649
    %v2862 = vpop.f32.mrb[0].mxu0
    %v2863 = vadd.f32 0.0, %v2862
    %v2864 = vpop.f32.mrb[0].mxu0
    %2865 = vmatprep.mubr.f32.mxu0 0.0
    %2866 = vmatmul.mubr.f32.gmra.mrb[0].mxu0 %v2652
    %v2867 = vpop.f32.mrb[0].mxu0
    %v2868 = vadd.f32 0.0, %v2867
    %v2869 = vpop.f32.mrb[0].mxu0
    %2870 = vmatprep.mubr.f32.mxu0 0.0
    %2871 = vmatmul.mubr.f32.gmra.mrb[0].mxu0 %v2655
    %v2872 = vpop.f32.mrb[0].mxu0
    %v2873 = vadd.f32 0.0, %v2872
    %v2874 = vpop.f32.mrb[0].mxu0
    %2875 = vmatprep.mubr.f32.mxu0 0.0
    %2876 = vmatmul.mubr.f32.gmra.mrb[0].mxu0 %v2658
    %v2877 = vpop.f32.mrb[0].mxu0
    %v2878 = vadd.f32 0.0, %v2877
    %v2879 = vpop.f32.mrb[0].mxu0
    %2880 = vmatprep.mubr.f32.mxu0 0.0
    %2881 = vmatmul.mubr.f32.gmra.mrb[0].mxu0 %v2661
    %v2882 = vpop.f32.mrb[0].mxu0
    %v2883 = vadd.f32 0.0, %v2882
    %v2884 = vpop.f32.mrb[0].mxu0
    %2885 = vmatprep.mubr.f32.mxu0 0.0
    %2886 = vmatmul.mubr.f32.gmra.mrb[0].mxu0 %v2664
    %v2887 = vpop.f32.mrb[0].mxu0
    %v2888 = vadd.f32 0.0, %v2887
    %v2889 = vpop.f32.mrb[0].mxu0
    %2890 = vdwg.mxu0
    %v2891 = vadd.f32 %v2403, %v2733
    %v2892 = vadd.f32 %v2408, %v2738
    %v2893 = vadd.f32 %v2413, %v2743
    %v2894 = vadd.f32 %v2418, %v2748
    %v2895 = vadd.f32 %v2423, %v2753
    %v2896 = vadd.f32 %v2428, %v2758
    %v2897 = vadd.f32 %v2433, %v2763
    %v2898 = vadd.f32 %v2438, %v2768
    %v2899 = vadd.f32 %v2443, %v2773
    %v2900 = vadd.f32 %v2448, %v2778
    %v2901 = vadd.f32 %v2453, %v2783
    %v2902 = vadd.f32 %v2458, %v2788
    %v2903 = vadd.f32 %v2463, %v2793
    %v2904 = vadd.f32 %v2468, %v2798
    %v2905 = vadd.f32 %v2473, %v2803
    %v2906 = vadd.f32 %v2478, %v2808
    %v2907 = vadd.f32 %v2483, %v2813
    %v2908 = vadd.f32 %v2488, %v2818
    %v2909 = vadd.f32 %v2493, %v2823
    %v2910 = vadd.f32 %v2498, %v2828
    %v2911 = vadd.f32 %v2503, %v2833
    %v2912 = vadd.f32 %v2508, %v2838
    %v2913 = vadd.f32 %v2513, %v2843
    %v2914 = vadd.f32 %v2518, %v2848
    %v2915 = vadd.f32 %v2523, %v2853
    %v2916 = vadd.f32 %v2528, %v2858
    %v2917 = vadd.f32 %v2533, %v2863
    %v2918 = vadd.f32 %v2538, %v2868
    %v2919 = vadd.f32 %v2543, %v2873
    %v2920 = vadd.f32 %v2548, %v2878
    %v2921 = vadd.f32 %v2553, %v2883
    %v2922 = vadd.f32 %v2558, %v2888
    %v2923 = vld [vmem:[%s4] sm:$0x1]
    %v2925 = vlaneseq
    %v2926 = vshrl.u32 %v2925, 7
    %v2927 = vsub.s32 0, %v2926
    %v2928 = vrot.slane %v2923, %v2927
    %v2930 = vadd.f32 %v2891, %v2928
    %v2931 = vadd.f32 %v2892, %v2928
    %v2932 = vadd.f32 %v2893, %v2928
    %v2933 = vadd.f32 %v2894, %v2928
    %v2934 = vadd.f32 %v2895, %v2928
    %v2935 = vadd.f32 %v2896, %v2928
    %v2936 = vadd.f32 %v2897, %v2928
    %v2937 = vadd.f32 %v2898, %v2928
    %v2938 = vadd.f32 %v2899, %v2928
    %v2939 = vadd.f32 %v2900, %v2928
    %v2940 = vadd.f32 %v2901, %v2928
    %v2941 = vadd.f32 %v2902, %v2928
    %v2942 = vadd.f32 %v2903, %v2928
    %v2943 = vadd.f32 %v2904, %v2928
    %v2944 = vadd.f32 %v2905, %v2928
    %v2945 = vadd.f32 %v2906, %v2928
    %v2946 = vadd.f32 %v2907, %v2928
    %v2947 = vadd.f32 %v2908, %v2928
    %v2948 = vadd.f32 %v2909, %v2928
    %v2949 = vadd.f32 %v2910, %v2928
    %v2950 = vadd.f32 %v2911, %v2928
    %v2951 = vadd.f32 %v2912, %v2928
    %v2952 = vadd.f32 %v2913, %v2928
    %v2953 = vadd.f32 %v2914, %v2928
    %v2954 = vadd.f32 %v2915, %v2928
    %v2955 = vadd.f32 %v2916, %v2928
    %v2956 = vadd.f32 %v2917, %v2928
    %v2957 = vadd.f32 %v2918, %v2928
    %v2958 = vadd.f32 %v2919, %v2928
    %v2959 = vadd.f32 %v2920, %v2928
    %v2960 = vadd.f32 %v2921, %v2928
    %v2961 = vadd.f32 %v2922, %v2928
    %vm2962 = vcmp.gt.f32.partialorder %v2930, 0.0
    %vm2963 = vcmp.gt.f32.partialorder %v2931, 0.0
    %vm2964 = vcmp.gt.f32.partialorder %v2932, 0.0
    %vm2965 = vcmp.gt.f32.partialorder %v2933, 0.0
    %vm2966 = vcmp.gt.f32.partialorder %v2934, 0.0
    %vm2967 = vcmp.gt.f32.partialorder %v2935, 0.0
    %vm2968 = vcmp.gt.f32.partialorder %v2936, 0.0
    %vm2969 = vcmp.gt.f32.partialorder %v2937, 0.0
    %vm2970 = vcmp.gt.f32.partialorder %v2938, 0.0
    %vm2971 = vcmp.gt.f32.partialorder %v2939, 0.0
    %vm2972 = vcmp.gt.f32.partialorder %v2940, 0.0
    %vm2973 = vcmp.gt.f32.partialorder %v2941, 0.0
    %vm2974 = vcmp.gt.f32.partialorder %v2942, 0.0
    %vm2975 = vcmp.gt.f32.partialorder %v2943, 0.0
    %vm2976 = vcmp.gt.f32.partialorder %v2944, 0.0
    %vm2977 = vcmp.gt.f32.partialorder %v2945, 0.0
    %vm2978 = vcmp.gt.f32.partialorder %v2946, 0.0
    %vm2979 = vcmp.gt.f32.partialorder %v2947, 0.0
    %vm2980 = vcmp.gt.f32.partialorder %v2948, 0.0
    %vm2981 = vcmp.gt.f32.partialorder %v2949, 0.0
    %vm2982 = vcmp.gt.f32.partialorder %v2950, 0.0
    %vm2983 = vcmp.gt.f32.partialorder %v2951, 0.0
    %vm2984 = vcmp.gt.f32.partialorder %v2952, 0.0
    %vm2985 = vcmp.gt.f32.partialorder %v2953, 0.0
    %vm2986 = vcmp.gt.f32.partialorder %v2954, 0.0
    %vm2987 = vcmp.gt.f32.partialorder %v2955, 0.0
    %vm2988 = vcmp.gt.f32.partialorder %v2956, 0.0
    %vm2989 = vcmp.gt.f32.partialorder %v2957, 0.0
    %vm2990 = vcmp.gt.f32.partialorder %v2958, 0.0
    %vm2991 = vcmp.gt.f32.partialorder %v2959, 0.0
    %vm2992 = vcmp.gt.f32.partialorder %v2960, 0.0
    %vm2993 = vcmp.gt.f32.partialorder %v2961, 0.0
    %v2994 = vmul.f32 %v2930, 0.01
    %v2995 = vmul.f32 %v2931, 0.01
    %v2996 = vmul.f32 %v2932, 0.01
    %v2997 = vmul.f32 %v2933, 0.01
    %v2998 = vmul.f32 %v2934, 0.01
    %v2999 = vmul.f32 %v2935, 0.01
    %v3000 = vmul.f32 %v2936, 0.01
    %v3001 = vmul.f32 %v2937, 0.01
    %v3002 = vmul.f32 %v2938, 0.01
    %v3003 = vmul.f32 %v2939, 0.01
    %v3004 = vmul.f32 %v2940, 0.01
    %v3005 = vmul.f32 %v2941, 0.01
    %v3006 = vmul.f32 %v2942, 0.01
    %v3007 = vmul.f32 %v2943, 0.01
    %v3008 = vmul.f32 %v2944, 0.01
    %v3009 = vmul.f32 %v2945, 0.01
    %v3010 = vmul.f32 %v2946, 0.01
    %v3011 = vmul.f32 %v2947, 0.01
    %v3012 = vmul.f32 %v2948, 0.01
    %v3013 = vmul.f32 %v2949, 0.01
    %v3014 = vmul.f32 %v2950, 0.01
    %v3015 = vmul.f32 %v2951, 0.01
    %v3016 = vmul.f32 %v2952, 0.01
    %v3017 = vmul.f32 %v2953, 0.01
    %v3018 = vmul.f32 %v2954, 0.01
    %v3019 = vmul.f32 %v2955, 0.01
    %v3020 = vmul.f32 %v2956, 0.01
    %v3021 = vmul.f32 %v2957, 0.01
    %v3022 = vmul.f32 %v2958, 0.01
    %v3023 = vmul.f32 %v2959, 0.01
    %v3024 = vmul.f32 %v2960, 0.01
    %v3025 = vmul.f32 %v2961, 0.01
    %v3026 = vsel %vm2962, %v2930, %v2994
    %v3027 = vsel %vm2963, %v2931, %v2995
    %v3028 = vsel %vm2964, %v2932, %v2996
    %v3029 = vsel %vm2965, %v2933, %v2997
    %v3030 = vsel %vm2966, %v2934, %v2998
    %v3031 = vsel %vm2967, %v2935, %v2999
    %v3032 = vsel %vm2968, %v2936, %v3000
    %v3033 = vsel %vm2969, %v2937, %v3001
    %v3034 = vsel %vm2970, %v2938, %v3002
    %v3035 = vsel %vm2971, %v2939, %v3003
    %v3036 = vsel %vm2972, %v2940, %v3004
    %v3037 = vsel %vm2973, %v2941, %v3005
    %v3038 = vsel %vm2974, %v2942, %v3006
    %v3039 = vsel %vm2975, %v2943, %v3007
    %v3040 = vsel %vm2976, %v2944, %v3008
    %v3041 = vsel %vm2977, %v2945, %v3009
    %v3042 = vsel %vm2978, %v2946, %v3010
    %v3043 = vsel %vm2979, %v2947, %v3011
    %v3044 = vsel %vm2980, %v2948, %v3012
    %v3045 = vsel %vm2981, %v2949, %v3013
    %v3046 = vsel %vm2982, %v2950, %v3014
    %v3047 = vsel %vm2983, %v2951, %v3015
    %v3048 = vsel %vm2984, %v2952, %v3016
    %v3049 = vsel %vm2985, %v2953, %v3017
    %v3050 = vsel %vm2986, %v2954, %v3018
    %v3051 = vsel %vm2987, %v2955, %v3019
    %v3052 = vsel %vm2988, %v2956, %v3020
    %v3053 = vsel %vm2989, %v2957, %v3021
    %v3054 = vsel %vm2990, %v2958, %v3022
    %v3055 = vsel %vm2991, %v2959, %v3023
    %v3056 = vsel %vm2992, %v2960, %v3024
    %v3057 = vsel %vm2993, %v2961, %v3025
    %v3058 = vrot.slane %v3026, 7
    %v3059 = vrot.slane %v3027, 7
    %v3060 = vrot.slane %v3028, 7
    %v3061 = vrot.slane %v3029, 7
    %v3062 = vrot.slane %v3030, 7
    %v3063 = vrot.slane %v3031, 7
    %v3064 = vrot.slane %v3032, 7
    %v3065 = vrot.slane %v3033, 7
    %v3066 = vrot.slane %v3034, 7
    %v3067 = vrot.slane %v3035, 7
    %v3068 = vrot.slane %v3036, 7
    %v3069 = vrot.slane %v3037, 7
    %v3070 = vrot.slane %v3038, 7
    %v3071 = vrot.slane %v3039, 7
    %v3072 = vrot.slane %v3040, 7
    %v3073 = vrot.slane %v3041, 7
    %v3074 = vrot.slane %v3042, 7
    %v3075 = vrot.slane %v3043, 7
    %v3076 = vrot.slane %v3044, 7
    %v3077 = vrot.slane %v3045, 7
    %v3078 = vrot.slane %v3046, 7
    %v3079 = vrot.slane %v3047, 7
    %v3080 = vrot.slane %v3048, 7
    %v3081 = vrot.slane %v3049, 7
    %v3082 = vrot.slane %v3050, 7
    %v3083 = vrot.slane %v3051, 7
    %v3084 = vrot.slane %v3052, 7
    %v3085 = vrot.slane %v3053, 7
    %v3086 = vrot.slane %v3054, 7
    %v3087 = vrot.slane %v3055, 7
    %v3088 = vrot.slane %v3056, 7
    %v3089 = vrot.slane %v3057, 7
    %v3090 = vsel %vm411, %v3088, %v3089
    %v3091 = vsel %vm411, %v3087, %v3088
    %v3092 = vsel %vm411, %v3086, %v3087
    %v3093 = vsel %vm411, %v3085, %v3086
    %v3094 = vsel %vm411, %v3084, %v3085
    %v3095 = vsel %vm411, %v3083, %v3084
    %v3096 = vsel %vm411, %v3082, %v3083
    %v3097 = vsel %vm411, %v3081, %v3082
    %v3098 = vsel %vm411, %v3080, %v3081
    %v3099 = vsel %vm411, %v3079, %v3080
    %v3100 = vsel %vm411, %v3078, %v3079
    %v3101 = vsel %vm411, %v3077, %v3078
    %v3102 = vsel %vm411, %v3076, %v3077
    %v3103 = vsel %vm411, %v3075, %v3076
    %v3104 = vsel %vm411, %v3074, %v3075
    %v3105 = vsel %vm411, %v3073, %v3074
    %v3106 = vsel %vm411, %v3072, %v3073
    %v3107 = vsel %vm411, %v3071, %v3072
    %v3108 = vsel %vm411, %v3070, %v3071
    %v3109 = vsel %vm411, %v3069, %v3070
    %v3110 = vsel %vm411, %v3068, %v3069
    %v3111 = vsel %vm411, %v3067, %v3068
    %v3112 = vsel %vm411, %v3066, %v3067
    %v3113 = vsel %vm411, %v3065, %v3066
    %v3114 = vsel %vm411, %v3064, %v3065
    %v3115 = vsel %vm411, %v3063, %v3064
    %v3116 = vsel %vm411, %v3062, %v3063
    %v3117 = vsel %vm411, %v3061, %v3062
    %v3118 = vsel %vm411, %v3060, %v3061
    %v3119 = vsel %vm411, %v3059, %v3060
    %v3120 = vsel %vm411, %v3058, %v3059
    %v3121 = vsel %vm411, %v3089, %v3058
    %v3122 = vmul.f32 %v3121, %v315
    %v3123 = vmul.f32 %v3120, %v316
    %v3124 = vmul.f32 %v3119, %v317
    %v3125 = vmul.f32 %v3118, %v318
    %v3126 = vmul.f32 %v3117, %v319
    %v3127 = vmul.f32 %v3116, %v320
    %v3128 = vmul.f32 %v3115, %v321
    %v3129 = vmul.f32 %v3114, %v322
    %v3130 = vmul.f32 %v3113, %v323
    %v3131 = vmul.f32 %v3112, %v324
    %v3132 = vmul.f32 %v3111, %v325
    %v3133 = vmul.f32 %v3110, %v326
    %v3134 = vmul.f32 %v3109, %v327
    %v3135 = vmul.f32 %v3108, %v328
    %v3136 = vmul.f32 %v3107, %v329
    %v3137 = vmul.f32 %v3106, %v330
    %v3138 = vmul.f32 %v3105, %v331
    %v3139 = vmul.f32 %v3104, %v332
    %v3140 = vmul.f32 %v3103, %v333
    %v3141 = vmul.f32 %v3102, %v334
    %v3142 = vmul.f32 %v3101, %v335
    %v3143 = vmul.f32 %v3100, %v336
    %v3144 = vmul.f32 %v3099, %v337
    %v3145 = vmul.f32 %v3098, %v338
    %v3146 = vmul.f32 %v3097, %v339
    %v3147 = vmul.f32 %v3096, %v340
    %v3148 = vmul.f32 %v3095, %v341
    %v3149 = vmul.f32 %v3094, %v342
    %v3150 = vmul.f32 %v3093, %v343
    %v3151 = vmul.f32 %v3092, %v344
    %v3152 = vmul.f32 %v3091, %v345
    %v3153 = vmul.f32 %v3090, %v346
    %v3154 = vrot.slane %v3026, 1
    %v3155 = vrot.slane %v3027, 1
    %v3156 = vrot.slane %v3028, 1
    %v3157 = vrot.slane %v3029, 1
    %v3158 = vrot.slane %v3030, 1
    %v3159 = vrot.slane %v3031, 1
    %v3160 = vrot.slane %v3032, 1
    %v3161 = vrot.slane %v3033, 1
    %v3162 = vrot.slane %v3034, 1
    %v3163 = vrot.slane %v3035, 1
    %v3164 = vrot.slane %v3036, 1
    %v3165 = vrot.slane %v3037, 1
    %v3166 = vrot.slane %v3038, 1
    %v3167 = vrot.slane %v3039, 1
    %v3168 = vrot.slane %v3040, 1
    %v3169 = vrot.slane %v3041, 1
    %v3170 = vrot.slane %v3042, 1
    %v3171 = vrot.slane %v3043, 1
    %v3172 = vrot.slane %v3044, 1
    %v3173 = vrot.slane %v3045, 1
    %v3174 = vrot.slane %v3046, 1
    %v3175 = vrot.slane %v3047, 1
    %v3176 = vrot.slane %v3048, 1
    %v3177 = vrot.slane %v3049, 1
    %v3178 = vrot.slane %v3050, 1
    %v3179 = vrot.slane %v3051, 1
    %v3180 = vrot.slane %v3052, 1
    %v3181 = vrot.slane %v3053, 1
    %v3182 = vrot.slane %v3054, 1
    %v3183 = vrot.slane %v3055, 1
    %v3184 = vrot.slane %v3056, 1
    %v3185 = vrot.slane %v3057, 1
    %v3186 = vsel %vm508, %v3184, %v3185
    %v3187 = vsel %vm508, %v3183, %v3184
    %v3188 = vsel %vm508, %v3182, %v3183
    %v3189 = vsel %vm508, %v3181, %v3182
    %v3190 = vsel %vm508, %v3180, %v3181
    %v3191 = vsel %vm508, %v3179, %v3180
    %v3192 = vsel %vm508, %v3178, %v3179
    %v3193 = vsel %vm508, %v3177, %v3178
    %v3194 = vsel %vm508, %v3176, %v3177
    %v3195 = vsel %vm508, %v3175, %v3176
    %v3196 = vsel %vm508, %v3174, %v3175
    %v3197 = vsel %vm508, %v3173, %v3174
    %v3198 = vsel %vm508, %v3172, %v3173
    %v3199 = vsel %vm508, %v3171, %v3172
    %v3200 = vsel %vm508, %v3170, %v3171
    %v3201 = vsel %vm508, %v3169, %v3170
    %v3202 = vsel %vm508, %v3168, %v3169
    %v3203 = vsel %vm508, %v3167, %v3168
    %v3204 = vsel %vm508, %v3166, %v3167
    %v3205 = vsel %vm508, %v3165, %v3166
    %v3206 = vsel %vm508, %v3164, %v3165
    %v3207 = vsel %vm508, %v3163, %v3164
    %v3208 = vsel %vm508, %v3162, %v3163
    %v3209 = vsel %vm508, %v3161, %v3162
    %v3210 = vsel %vm508, %v3160, %v3161
    %v3211 = vsel %vm508, %v3159, %v3160
    %v3212 = vsel %vm508, %v3158, %v3159
    %v3213 = vsel %vm508, %v3157, %v3158
    %v3214 = vsel %vm508, %v3156, %v3157
    %v3215 = vsel %vm508, %v3155, %v3156
    %v3216 = vsel %vm508, %v3154, %v3155
    %v3217 = vsel %vm508, %v3185, %v3154
    %v3218 = vmul.f32 %v3216, %v347
    %v3219 = vmul.f32 %v3215, %v348
    %v3220 = vmul.f32 %v3214, %v349
    %v3221 = vmul.f32 %v3213, %v350
    %v3222 = vmul.f32 %v3212, %v351
    %v3223 = vmul.f32 %v3211, %v352
    %v3224 = vmul.f32 %v3210, %v353
    %v3225 = vmul.f32 %v3209, %v354
    %v3226 = vmul.f32 %v3208, %v355
    %v3227 = vmul.f32 %v3207, %v356
    %v3228 = vmul.f32 %v3206, %v357
    %v3229 = vmul.f32 %v3205, %v358
    %v3230 = vmul.f32 %v3204, %v359
    %v3231 = vmul.f32 %v3203, %v360
    %v3232 = vmul.f32 %v3202, %v361
    %v3233 = vmul.f32 %v3201, %v362
    %v3234 = vmul.f32 %v3200, %v363
    %v3235 = vmul.f32 %v3199, %v364
    %v3236 = vmul.f32 %v3198, %v365
    %v3237 = vmul.f32 %v3197, %v366
    %v3238 = vmul.f32 %v3196, %v367
    %v3239 = vmul.f32 %v3195, %v368
    %v3240 = vmul.f32 %v3194, %v369
    %v3241 = vmul.f32 %v3193, %v370
    %v3242 = vmul.f32 %v3192, %v371
    %v3243 = vmul.f32 %v3191, %v372
    %v3244 = vmul.f32 %v3190, %v373
    %v3245 = vmul.f32 %v3189, %v374
    %v3246 = vmul.f32 %v3188, %v375
    %v3247 = vmul.f32 %v3187, %v376
    %v3248 = vmul.f32 %v3186, %v377
    %v3249 = vmul.f32 %v3217, %v378
    %v3250 = vld [vmem:[#allocation2] sm:$0xff]
    %v3251 = vld [vmem:[#allocation2 + $0x8] sm:$0xff]
    %v3252 = vld [vmem:[#allocation2 + $0x10] sm:$0xff]
    %v3253 = vld [vmem:[#allocation2 + $0x18] sm:$0xff]
    %v3254 = vld [vmem:[#allocation2 + $0x20] sm:$0xff]
    %v3255 = vld [vmem:[#allocation2 + $0x28] sm:$0xff]
    %v3256 = vld [vmem:[#allocation2 + $0x30] sm:$0xff]
    %v3257 = vld [vmem:[#allocation2 + $0x38] sm:$0xff]
    %v3258 = vld [vmem:[#allocation2 + $0x40] sm:$0xff]
    %v3259 = vld [vmem:[#allocation2 + $0x48] sm:$0xff]
    %v3260 = vld [vmem:[#allocation2 + $0x50] sm:$0xff]
    %v3261 = vld [vmem:[#allocation2 + $0x58] sm:$0xff]
    %v3262 = vld [vmem:[#allocation2 + $0x60] sm:$0xff]
    %v3263 = vld [vmem:[#allocation2 + $0x68] sm:$0xff]
    %v3264 = vld [vmem:[#allocation2 + $0x70] sm:$0xff]
    %v3265 = vld [vmem:[#allocation2 + $0x78] sm:$0xff]
    %s3266 = scalar_lea.vmem [#allocation2], 128
    %v3267 = vld [vmem:[%s3266] sm:$0xff]
    %v3268 = vld [vmem:[%s3266 + $0x8] sm:$0xff]
    %v3269 = vld [vmem:[%s3266 + $0x10] sm:$0xff]
    %v3270 = vld [vmem:[%s3266 + $0x18] sm:$0xff]
    %v3271 = vld [vmem:[%s3266 + $0x20] sm:$0xff]
    %v3272 = vld [vmem:[%s3266 + $0x28] sm:$0xff]
    %v3273 = vld [vmem:[%s3266 + $0x30] sm:$0xff]
    %v3274 = vld [vmem:[%s3266 + $0x38] sm:$0xff]
    %v3275 = vld [vmem:[%s3266 + $0x40] sm:$0xff]
    %v3276 = vld [vmem:[%s3266 + $0x48] sm:$0xff]
    %v3277 = vld [vmem:[%s3266 + $0x50] sm:$0xff]
    %v3278 = vld [vmem:[%s3266 + $0x58] sm:$0xff]
    %v3279 = vld [vmem:[%s3266 + $0x60] sm:$0xff]
    %v3280 = vld [vmem:[%s3266 + $0x68] sm:$0xff]
    %v3281 = vld [vmem:[%s3266 + $0x70] sm:$0xff]
    %v3282 = vld [vmem:[%s3266 + $0x78] sm:$0xff]
    %3283 = vmatprep.subr.mxu0 %v3268
    %3284 = vmatpush1.msra.mxu0 %v3267
    %3285 = vmatprep.subr.mxu0 %v3270
    %3286 = vmatpush1.msra.mxu0 %v3269
    %3287 = vmatprep.subr.mxu0 %v3272
    %3288 = vmatpush1.msra.mxu0 %v3271
    %3289 = vmatprep.subr.mxu0 %v3274
    %3290 = vmatpush1.msra.mxu0 %v3273
    %3291 = vmatprep.subr.mxu0 %v3276
    %3292 = vmatpush1.msra.mxu0 %v3275
    %3293 = vmatprep.subr.mxu0 %v3278
    %3294 = vmatpush1.msra.mxu0 %v3277
    %3295 = vmatprep.subr.mxu0 %v3280
    %3296 = vmatpush1.msra.mxu0 %v3279
    %3297 = vmatprep.subr.mxu0 %v3282
    %3298 = vmatpush1.msra.mxu0 %v3281
    %3299 = vmatprep.subr.mxu0 0.0
    %3300 = vmatpush1.msra.mxu0 0.0
    %3301 = vmatprep.subr.mxu0 0.0
    %3302 = vmatpush1.msra.mxu0 0.0
    %3303 = vmatprep.subr.mxu0 0.0
    %3304 = vmatpush1.msra.mxu0 0.0
    %3305 = vmatprep.subr.mxu0 0.0
    %3306 = vmatpush1.msra.mxu0 0.0
    %3307 = vmatprep.subr.mxu0 0.0
    %3308 = vmatpush1.msra.mxu0 0.0
    %3309 = vmatprep.subr.mxu0 0.0
    %3310 = vmatpush1.msra.mxu0 0.0
    %3311 = vmatprep.subr.mxu0 0.0
    %3312 = vmatpush1.msra.mxu0 0.0
    %3313 = vmatprep.subr.mxu0 0.0
    %3314 = vmatpush1.msra.mxu0 0.0
    %3315 = vmatprep.subr.mxu0 0.0
    %3316 = vmatpush1.msra.mxu0 0.0
    %3317 = vmatprep.subr.mxu0 0.0
    %3318 = vmatpush1.msra.mxu0 0.0
    %3319 = vmatprep.subr.mxu0 0.0
    %3320 = vmatpush1.msra.mxu0 0.0
    %3321 = vmatprep.subr.mxu0 0.0
    %3322 = vmatpush1.msra.mxu0 0.0
    %3323 = vmatprep.subr.mxu0 0.0
    %3324 = vmatpush1.msra.mxu0 0.0
    %3325 = vmatprep.subr.mxu0 0.0
    %3326 = vmatpush1.msra.mxu0 0.0
    %3327 = vmatprep.subr.mxu0 0.0
    %3328 = vmatpush1.msra.mxu0 0.0
    %3329 = vmatprep.subr.mxu0 0.0
    %3330 = vmatpush1.msra.mxu0 0.0
    %3331 = vmatprep.subr.mxu0 0.0
    %3332 = vmatpush1.msra.mxu0 0.0
    %3333 = vmatprep.subr.mxu0 0.0
    %3334 = vmatpush1.msra.mxu0 0.0
    %3335 = vmatprep.subr.mxu0 0.0
    %3336 = vmatpush1.msra.mxu0 0.0
    %3337 = vmatprep.subr.mxu0 0.0
    %3338 = vmatpush1.msra.mxu0 0.0
    %3339 = vmatprep.subr.mxu0 0.0
    %3340 = vmatpush1.msra.mxu0 0.0
    %3341 = vmatprep.subr.mxu0 0.0
    %3342 = vmatpush1.msra.mxu0 0.0
    %3343 = vmatprep.subr.mxu0 0.0
    %3344 = vmatpush1.msra.mxu0 0.0
    %3345 = vmatprep.subr.mxu0 0.0
    %3346 = vmatpush1.msra.mxu0 0.0
    %3347 = vmatprep.mubr.f32.mxu0 0.0
    %3348 = vmatmul.mubr.f32.gmra.mrb[0].mxu0 %v1920
    %v3349 = vpop.f32.mrb[0].mxu0
    %v3350 = vadd.f32 0.0, %v3349
    %v3351 = vpop.f32.mrb[0].mxu0
    %v3352 = vadd.f32 0.0, %v3351
    %3353 = vmatprep.mubr.f32.mxu0 0.0
    %3354 = vmatmul.mubr.f32.gmra.mrb[0].mxu0 %v1923
    %v3355 = vpop.f32.mrb[0].mxu0
    %v3356 = vadd.f32 0.0, %v3355
    %v3357 = vpop.f32.mrb[0].mxu0
    %v3358 = vadd.f32 0.0, %v3357
    %3359 = vmatprep.mubr.f32.mxu0 0.0
    %3360 = vmatmul.mubr.f32.gmra.mrb[0].mxu0 %v1926
    %v3361 = vpop.f32.mrb[0].mxu0
    %v3362 = vadd.f32 0.0, %v3361
    %v3363 = vpop.f32.mrb[0].mxu0
    %v3364 = vadd.f32 0.0, %v3363
    %3365 = vmatprep.mubr.f32.mxu0 0.0
    %3366 = vmatmul.mubr.f32.gmra.mrb[0].mxu0 %v1929
    %v3367 = vpop.f32.mrb[0].mxu0
    %v3368 = vadd.f32 0.0, %v3367
    %v3369 = vpop.f32.mrb[0].mxu0
    %v3370 = vadd.f32 0.0, %v3369
    %3371 = vmatprep.mubr.f32.mxu0 0.0
    %3372 = vmatmul.mubr.f32.gmra.mrb[0].mxu0 %v1932
    %v3373 = vpop.f32.mrb[0].mxu0
    %v3374 = vadd.f32 0.0, %v3373
    %v3375 = vpop.f32.mrb[0].mxu0
    %v3376 = vadd.f32 0.0, %v3375
    %3377 = vmatprep.mubr.f32.mxu0 0.0
    %3378 = vmatmul.mubr.f32.gmra.mrb[0].mxu0 %v1935
    %v3379 = vpop.f32.mrb[0].mxu0
    %v3380 = vadd.f32 0.0, %v3379
    %v3381 = vpop.f32.mrb[0].mxu0
    %v3382 = vadd.f32 0.0, %v3381
    %3383 = vmatprep.mubr.f32.mxu0 0.0
    %3384 = vmatmul.mubr.f32.gmra.mrb[0].mxu0 %v1938
    %v3385 = vpop.f32.mrb[0].mxu0
    %v3386 = vadd.f32 0.0, %v3385
    %v3387 = vpop.f32.mrb[0].mxu0
    %v3388 = vadd.f32 0.0, %v3387
    %3389 = vmatprep.mubr.f32.mxu0 0.0
    %3390 = vmatmul.mubr.f32.gmra.mrb[0].mxu0 %v1941
    %v3391 = vpop.f32.mrb[0].mxu0
    %v3392 = vadd.f32 0.0, %v3391
    %v3393 = vpop.f32.mrb[0].mxu0
    %v3394 = vadd.f32 0.0, %v3393
    %3395 = vmatprep.mubr.f32.mxu0 0.0
    %3396 = vmatmul.mubr.f32.gmra.mrb[0].mxu0 %v1944
    %v3397 = vpop.f32.mrb[0].mxu0
    %v3398 = vadd.f32 0.0, %v3397
    %v3399 = vpop.f32.mrb[0].mxu0
    %v3400 = vadd.f32 0.0, %v3399
    %3401 = vmatprep.mubr.f32.mxu0 0.0
    %3402 = vmatmul.mubr.f32.gmra.mrb[0].mxu0 %v1947
    %v3403 = vpop.f32.mrb[0].mxu0
    %v3404 = vadd.f32 0.0, %v3403
    %v3405 = vpop.f32.mrb[0].mxu0
    %v3406 = vadd.f32 0.0, %v3405
    %3407 = vmatprep.mubr.f32.mxu0 0.0
    %3408 = vmatmul.mubr.f32.gmra.mrb[0].mxu0 %v1950
    %v3409 = vpop.f32.mrb[0].mxu0
    %v3410 = vadd.f32 0.0, %v3409
    %v3411 = vpop.f32.mrb[0].mxu0
    %v3412 = vadd.f32 0.0, %v3411
    %3413 = vmatprep.mubr.f32.mxu0 0.0
    %3414 = vmatmul.mubr.f32.gmra.mrb[0].mxu0 %v1953
    %v3415 = vpop.f32.mrb[0].mxu0
    %v3416 = vadd.f32 0.0, %v3415
    %v3417 = vpop.f32.mrb[0].mxu0
    %v3418 = vadd.f32 0.0, %v3417
    %3419 = vmatprep.mubr.f32.mxu0 0.0
    %3420 = vmatmul.mubr.f32.gmra.mrb[0].mxu0 %v1956
    %v3421 = vpop.f32.mrb[0].mxu0
    %v3422 = vadd.f32 0.0, %v3421
    %v3423 = vpop.f32.mrb[0].mxu0
    %v3424 = vadd.f32 0.0, %v3423
    %3425 = vmatprep.mubr.f32.mxu0 0.0
    %3426 = vmatmul.mubr.f32.gmra.mrb[0].mxu0 %v1959
    %v3427 = vpop.f32.mrb[0].mxu0
    %v3428 = vadd.f32 0.0, %v3427
    %v3429 = vpop.f32.mrb[0].mxu0
    %v3430 = vadd.f32 0.0, %v3429
    %3431 = vmatprep.mubr.f32.mxu0 0.0
    %3432 = vmatmul.mubr.f32.gmra.mrb[0].mxu0 %v1962
    %v3433 = vpop.f32.mrb[0].mxu0
    %v3434 = vadd.f32 0.0, %v3433
    %v3435 = vpop.f32.mrb[0].mxu0
    %v3436 = vadd.f32 0.0, %v3435
    %3437 = vmatprep.mubr.f32.mxu0 0.0
    %3438 = vmatmul.mubr.f32.gmra.mrb[0].mxu0 %v1965
    %v3439 = vpop.f32.mrb[0].mxu0
    %v3440 = vadd.f32 0.0, %v3439
    %v3441 = vpop.f32.mrb[0].mxu0
    %v3442 = vadd.f32 0.0, %v3441
    %3443 = vmatprep.mubr.f32.mxu0 0.0
    %3444 = vmatmul.mubr.f32.gmra.mrb[0].mxu0 %v1968
    %v3445 = vpop.f32.mrb[0].mxu0
    %v3446 = vadd.f32 0.0, %v3445
    %v3447 = vpop.f32.mrb[0].mxu0
    %v3448 = vadd.f32 0.0, %v3447
    %3449 = vmatprep.mubr.f32.mxu0 0.0
    %3450 = vmatmul.mubr.f32.gmra.mrb[0].mxu0 %v1971
    %v3451 = vpop.f32.mrb[0].mxu0
    %v3452 = vadd.f32 0.0, %v3451
    %v3453 = vpop.f32.mrb[0].mxu0
    %v3454 = vadd.f32 0.0, %v3453
    %3455 = vmatprep.mubr.f32.mxu0 0.0
    %3456 = vmatmul.mubr.f32.gmra.mrb[0].mxu0 %v1974
    %v3457 = vpop.f32.mrb[0].mxu0
    %v3458 = vadd.f32 0.0, %v3457
    %v3459 = vpop.f32.mrb[0].mxu0
    %v3460 = vadd.f32 0.0, %v3459
    %3461 = vmatprep.mubr.f32.mxu0 0.0
    %3462 = vmatmul.mubr.f32.gmra.mrb[0].mxu0 %v1977
    %v3463 = vpop.f32.mrb[0].mxu0
    %v3464 = vadd.f32 0.0, %v3463
    %v3465 = vpop.f32.mrb[0].mxu0
    %v3466 = vadd.f32 0.0, %v3465
    %3467 = vmatprep.mubr.f32.mxu0 0.0
    %3468 = vmatmul.mubr.f32.gmra.mrb[0].mxu0 %v1980
    %v3469 = vpop.f32.mrb[0].mxu0
    %v3470 = vadd.f32 0.0, %v3469
    %v3471 = vpop.f32.mrb[0].mxu0
    %v3472 = vadd.f32 0.0, %v3471
    %3473 = vmatprep.mubr.f32.mxu0 0.0
    %3474 = vmatmul.mubr.f32.gmra.mrb[0].mxu0 %v1983
    %v3475 = vpop.f32.mrb[0].mxu0
    %v3476 = vadd.f32 0.0, %v3475
    %v3477 = vpop.f32.mrb[0].mxu0
    %v3478 = vadd.f32 0.0, %v3477
    %3479 = vmatprep.mubr.f32.mxu0 0.0
    %3480 = vmatmul.mubr.f32.gmra.mrb[0].mxu0 %v1986
    %v3481 = vpop.f32.mrb[0].mxu0
    %v3482 = vadd.f32 0.0, %v3481
    %v3483 = vpop.f32.mrb[0].mxu0
    %v3484 = vadd.f32 0.0, %v3483
    %3485 = vmatprep.mubr.f32.mxu0 0.0
    %3486 = vmatmul.mubr.f32.gmra.mrb[0].mxu0 %v1989
    %v3487 = vpop.f32.mrb[0].mxu0
    %v3488 = vadd.f32 0.0, %v3487
    %v3489 = vpop.f32.mrb[0].mxu0
    %v3490 = vadd.f32 0.0, %v3489
    %3491 = vmatprep.mubr.f32.mxu0 0.0
    %3492 = vmatmul.mubr.f32.gmra.mrb[0].mxu0 %v1992
    %v3493 = vpop.f32.mrb[0].mxu0
    %v3494 = vadd.f32 0.0, %v3493
    %v3495 = vpop.f32.mrb[0].mxu0
    %v3496 = vadd.f32 0.0, %v3495
    %3497 = vmatprep.mubr.f32.mxu0 0.0
    %3498 = vmatmul.mubr.f32.gmra.mrb[0].mxu0 %v1995
    %v3499 = vpop.f32.mrb[0].mxu0
    %v3500 = vadd.f32 0.0, %v3499
    %v3501 = vpop.f32.mrb[0].mxu0
    %v3502 = vadd.f32 0.0, %v3501
    %3503 = vmatprep.mubr.f32.mxu0 0.0
    %3504 = vmatmul.mubr.f32.gmra.mrb[0].mxu0 %v1998
    %v3505 = vpop.f32.mrb[0].mxu0
    %v3506 = vadd.f32 0.0, %v3505
    %v3507 = vpop.f32.mrb[0].mxu0
    %v3508 = vadd.f32 0.0, %v3507
    %3509 = vmatprep.mubr.f32.mxu0 0.0
    %3510 = vmatmul.mubr.f32.gmra.mrb[0].mxu0 %v2001
    %v3511 = vpop.f32.mrb[0].mxu0
    %v3512 = vadd.f32 0.0, %v3511
    %v3513 = vpop.f32.mrb[0].mxu0
    %v3514 = vadd.f32 0.0, %v3513
    %3515 = vmatprep.mubr.f32.mxu0 0.0
    %3516 = vmatmul.mubr.f32.gmra.mrb[0].mxu0 %v2004
    %v3517 = vpop.f32.mrb[0].mxu0
    %v3518 = vadd.f32 0.0, %v3517
    %v3519 = vpop.f32.mrb[0].mxu0
    %v3520 = vadd.f32 0.0, %v3519
    %3521 = vmatprep.mubr.f32.mxu0 0.0
    %3522 = vmatmul.mubr.f32.gmra.mrb[0].mxu0 %v2007
    %v3523 = vpop.f32.mrb[0].mxu0
    %v3524 = vadd.f32 0.0, %v3523
    %v3525 = vpop.f32.mrb[0].mxu0
    %v3526 = vadd.f32 0.0, %v3525
    %3527 = vmatprep.mubr.f32.mxu0 0.0
    %3528 = vmatmul.mubr.f32.gmra.mrb[0].mxu0 %v2010
    %v3529 = vpop.f32.mrb[0].mxu0
    %v3530 = vadd.f32 0.0, %v3529
    %v3531 = vpop.f32.mrb[0].mxu0
    %v3532 = vadd.f32 0.0, %v3531
    %3533 = vmatprep.mubr.f32.mxu0 0.0
    %3534 = vmatmul.mubr.f32.gmra.mrb[0].mxu0 %v2013
    %v3535 = vpop.f32.mrb[0].mxu0
    %v3536 = vadd.f32 0.0, %v3535
    %v3537 = vpop.f32.mrb[0].mxu0
    %v3538 = vadd.f32 0.0, %v3537
    %3539 = vdwg.mxu0
    %3540 = vmatprep.subr.mxu0 %v3251
    %3541 = vmatpush1.msra.mxu0 %v3250
    %3542 = vmatprep.subr.mxu0 %v3253
    %3543 = vmatpush1.msra.mxu0 %v3252
    %3544 = vmatprep.subr.mxu0 %v3255
    %3545 = vmatpush1.msra.mxu0 %v3254
    %3546 = vmatprep.subr.mxu0 %v3257
    %3547 = vmatpush1.msra.mxu0 %v3256
    %3548 = vmatprep.subr.mxu0 %v3259
    %3549 = vmatpush1.msra.mxu0 %v3258
    %3550 = vmatprep.subr.mxu0 %v3261
    %3551 = vmatpush1.msra.mxu0 %v3260
    %3552 = vmatprep.subr.mxu0 %v3263
    %3553 = vmatpush1.msra.mxu0 %v3262
    %3554 = vmatprep.subr.mxu0 %v3265
    %3555 = vmatpush1.msra.mxu0 %v3264
    %3556 = vmatprep.subr.mxu0 0.0
    %3557 = vmatpush1.msra.mxu0 0.0
    %3558 = vmatprep.subr.mxu0 0.0
    %3559 = vmatpush1.msra.mxu0 0.0
    %3560 = vmatprep.subr.mxu0 0.0
    %3561 = vmatpush1.msra.mxu0 0.0
    %3562 = vmatprep.subr.mxu0 0.0
    %3563 = vmatpush1.msra.mxu0 0.0
    %3564 = vmatprep.subr.mxu0 0.0
    %3565 = vmatpush1.msra.mxu0 0.0
    %3566 = vmatprep.subr.mxu0 0.0
    %3567 = vmatpush1.msra.mxu0 0.0
    %3568 = vmatprep.subr.mxu0 0.0
    %3569 = vmatpush1.msra.mxu0 0.0
    %3570 = vmatprep.subr.mxu0 0.0
    %3571 = vmatpush1.msra.mxu0 0.0
    %3572 = vmatprep.subr.mxu0 0.0
    %3573 = vmatpush1.msra.mxu0 0.0
    %3574 = vmatprep.subr.mxu0 0.0
    %3575 = vmatpush1.msra.mxu0 0.0
    %3576 = vmatprep.subr.mxu0 0.0
    %3577 = vmatpush1.msra.mxu0 0.0
    %3578 = vmatprep.subr.mxu0 0.0
    %3579 = vmatpush1.msra.mxu0 0.0
    %3580 = vmatprep.subr.mxu0 0.0
    %3581 = vmatpush1.msra.mxu0 0.0
    %3582 = vmatprep.subr.mxu0 0.0
    %3583 = vmatpush1.msra.mxu0 0.0
    %3584 = vmatprep.subr.mxu0 0.0
    %3585 = vmatpush1.msra.mxu0 0.0
    %3586 = vmatprep.subr.mxu0 0.0
    %3587 = vmatpush1.msra.mxu0 0.0
    %3588 = vmatprep.subr.mxu0 0.0
    %3589 = vmatpush1.msra.mxu0 0.0
    %3590 = vmatprep.subr.mxu0 0.0
    %3591 = vmatpush1.msra.mxu0 0.0
    %3592 = vmatprep.subr.mxu0 0.0
    %3593 = vmatpush1.msra.mxu0 0.0
    %3594 = vmatprep.subr.mxu0 0.0
    %3595 = vmatpush1.msra.mxu0 0.0
    %3596 = vmatprep.subr.mxu0 0.0
    %3597 = vmatpush1.msra.mxu0 0.0
    %3598 = vmatprep.subr.mxu0 0.0
    %3599 = vmatpush1.msra.mxu0 0.0
    %3600 = vmatprep.subr.mxu0 0.0
    %3601 = vmatpush1.msra.mxu0 0.0
    %3602 = vmatprep.subr.mxu0 0.0
    %3603 = vmatpush1.msra.mxu0 0.0
    %3604 = vmatprep.mubr.f32.mxu0 0.0
    %3605 = vmatmul.mubr.f32.gmra.mrb[0].mxu0 %v2241
    %v3606 = vpop.f32.mrb[0].mxu0
    %v3607 = vadd.f32 %v3350, %v3606
    %v3608 = vpop.f32.mrb[0].mxu0
    %v3609 = vadd.f32 %v3352, %v3608
    %3610 = vmatprep.mubr.f32.mxu0 0.0
    %3611 = vmatmul.mubr.f32.gmra.mrb[0].mxu0 %v2244
    %v3612 = vpop.f32.mrb[0].mxu0
    %v3613 = vadd.f32 %v3356, %v3612
    %v3614 = vpop.f32.mrb[0].mxu0
    %v3615 = vadd.f32 %v3358, %v3614
    %3616 = vmatprep.mubr.f32.mxu0 0.0
    %3617 = vmatmul.mubr.f32.gmra.mrb[0].mxu0 %v2247
    %v3618 = vpop.f32.mrb[0].mxu0
    %v3619 = vadd.f32 %v3362, %v3618
    %v3620 = vpop.f32.mrb[0].mxu0
    %v3621 = vadd.f32 %v3364, %v3620
    %3622 = vmatprep.mubr.f32.mxu0 0.0
    %3623 = vmatmul.mubr.f32.gmra.mrb[0].mxu0 %v2250
    %v3624 = vpop.f32.mrb[0].mxu0
    %v3625 = vadd.f32 %v3368, %v3624
    %v3626 = vpop.f32.mrb[0].mxu0
    %v3627 = vadd.f32 %v3370, %v3626
    %3628 = vmatprep.mubr.f32.mxu0 0.0
    %3629 = vmatmul.mubr.f32.gmra.mrb[0].mxu0 %v2253
    %v3630 = vpop.f32.mrb[0].mxu0
    %v3631 = vadd.f32 %v3374, %v3630
    %v3632 = vpop.f32.mrb[0].mxu0
    %v3633 = vadd.f32 %v3376, %v3632
    %3634 = vmatprep.mubr.f32.mxu0 0.0
    %3635 = vmatmul.mubr.f32.gmra.mrb[0].mxu0 %v2256
    %v3636 = vpop.f32.mrb[0].mxu0
    %v3637 = vadd.f32 %v3380, %v3636
    %v3638 = vpop.f32.mrb[0].mxu0
    %v3639 = vadd.f32 %v3382, %v3638
    %3640 = vmatprep.mubr.f32.mxu0 0.0
    %3641 = vmatmul.mubr.f32.gmra.mrb[0].mxu0 %v2259
    %v3642 = vpop.f32.mrb[0].mxu0
    %v3643 = vadd.f32 %v3386, %v3642
    %v3644 = vpop.f32.mrb[0].mxu0
    %v3645 = vadd.f32 %v3388, %v3644
    %3646 = vmatprep.mubr.f32.mxu0 0.0
    %3647 = vmatmul.mubr.f32.gmra.mrb[0].mxu0 %v2262
    %v3648 = vpop.f32.mrb[0].mxu0
    %v3649 = vadd.f32 %v3392, %v3648
    %v3650 = vpop.f32.mrb[0].mxu0
    %v3651 = vadd.f32 %v3394, %v3650
    %3652 = vmatprep.mubr.f32.mxu0 0.0
    %3653 = vmatmul.mubr.f32.gmra.mrb[0].mxu0 %v2265
    %v3654 = vpop.f32.mrb[0].mxu0
    %v3655 = vadd.f32 %v3398, %v3654
    %v3656 = vpop.f32.mrb[0].mxu0
    %v3657 = vadd.f32 %v3400, %v3656
    %3658 = vmatprep.mubr.f32.mxu0 0.0
    %3659 = vmatmul.mubr.f32.gmra.mrb[0].mxu0 %v2268
    %v3660 = vpop.f32.mrb[0].mxu0
    %v3661 = vadd.f32 %v3404, %v3660
    %v3662 = vpop.f32.mrb[0].mxu0
    %v3663 = vadd.f32 %v3406, %v3662
    %3664 = vmatprep.mubr.f32.mxu0 0.0
    %3665 = vmatmul.mubr.f32.gmra.mrb[0].mxu0 %v2271
    %v3666 = vpop.f32.mrb[0].mxu0
    %v3667 = vadd.f32 %v3410, %v3666
    %v3668 = vpop.f32.mrb[0].mxu0
    %v3669 = vadd.f32 %v3412, %v3668
    %3670 = vmatprep.mubr.f32.mxu0 0.0
    %3671 = vmatmul.mubr.f32.gmra.mrb[0].mxu0 %v2274
    %v3672 = vpop.f32.mrb[0].mxu0
    %v3673 = vadd.f32 %v3416, %v3672
    %v3674 = vpop.f32.mrb[0].mxu0
    %v3675 = vadd.f32 %v3418, %v3674
    %3676 = vmatprep.mubr.f32.mxu0 0.0
    %3677 = vmatmul.mubr.f32.gmra.mrb[0].mxu0 %v2277
    %v3678 = vpop.f32.mrb[0].mxu0
    %v3679 = vadd.f32 %v3422, %v3678
    %v3680 = vpop.f32.mrb[0].mxu0
    %v3681 = vadd.f32 %v3424, %v3680
    %3682 = vmatprep.mubr.f32.mxu0 0.0
    %3683 = vmatmul.mubr.f32.gmra.mrb[0].mxu0 %v2280
    %v3684 = vpop.f32.mrb[0].mxu0
    %v3685 = vadd.f32 %v3428, %v3684
    %v3686 = vpop.f32.mrb[0].mxu0
    %v3687 = vadd.f32 %v3430, %v3686
    %3688 = vmatprep.mubr.f32.mxu0 0.0
    %3689 = vmatmul.mubr.f32.gmra.mrb[0].mxu0 %v2283
    %v3690 = vpop.f32.mrb[0].mxu0
    %v3691 = vadd.f32 %v3434, %v3690
    %v3692 = vpop.f32.mrb[0].mxu0
    %v3693 = vadd.f32 %v3436, %v3692
    %3694 = vmatprep.mubr.f32.mxu0 0.0
    %3695 = vmatmul.mubr.f32.gmra.mrb[0].mxu0 %v2286
    %v3696 = vpop.f32.mrb[0].mxu0
    %v3697 = vadd.f32 %v3440, %v3696
    %v3698 = vpop.f32.mrb[0].mxu0
    %v3699 = vadd.f32 %v3442, %v3698
    %3700 = vmatprep.mubr.f32.mxu0 0.0
    %3701 = vmatmul.mubr.f32.gmra.mrb[0].mxu0 %v2289
    %v3702 = vpop.f32.mrb[0].mxu0
    %v3703 = vadd.f32 %v3446, %v3702
    %v3704 = vpop.f32.mrb[0].mxu0
    %v3705 = vadd.f32 %v3448, %v3704
    %3706 = vmatprep.mubr.f32.mxu0 0.0
    %3707 = vmatmul.mubr.f32.gmra.mrb[0].mxu0 %v2292
    %v3708 = vpop.f32.mrb[0].mxu0
    %v3709 = vadd.f32 %v3452, %v3708
    %v3710 = vpop.f32.mrb[0].mxu0
    %v3711 = vadd.f32 %v3454, %v3710
    %3712 = vmatprep.mubr.f32.mxu0 0.0
    %3713 = vmatmul.mubr.f32.gmra.mrb[0].mxu0 %v2295
    %v3714 = vpop.f32.mrb[0].mxu0
    %v3715 = vadd.f32 %v3458, %v3714
    %v3716 = vpop.f32.mrb[0].mxu0
    %v3717 = vadd.f32 %v3460, %v3716
    %3718 = vmatprep.mubr.f32.mxu0 0.0
    %3719 = vmatmul.mubr.f32.gmra.mrb[0].mxu0 %v2298
    %v3720 = vpop.f32.mrb[0].mxu0
    %v3721 = vadd.f32 %v3464, %v3720
    %v3722 = vpop.f32.mrb[0].mxu0
    %v3723 = vadd.f32 %v3466, %v3722
    %3724 = vmatprep.mubr.f32.mxu0 0.0
    %3725 = vmatmul.mubr.f32.gmra.mrb[0].mxu0 %v2301
    %v3726 = vpop.f32.mrb[0].mxu0
    %v3727 = vadd.f32 %v3470, %v3726
    %v3728 = vpop.f32.mrb[0].mxu0
    %v3729 = vadd.f32 %v3472, %v3728
    %3730 = vmatprep.mubr.f32.mxu0 0.0
    %3731 = vmatmul.mubr.f32.gmra.mrb[0].mxu0 %v2304
    %v3732 = vpop.f32.mrb[0].mxu0
    %v3733 = vadd.f32 %v3476, %v3732
    %v3734 = vpop.f32.mrb[0].mxu0
    %v3735 = vadd.f32 %v3478, %v3734
    %3736 = vmatprep.mubr.f32.mxu0 0.0
    %3737 = vmatmul.mubr.f32.gmra.mrb[0].mxu0 %v2307
    %v3738 = vpop.f32.mrb[0].mxu0
    %v3739 = vadd.f32 %v3482, %v3738
    %v3740 = vpop.f32.mrb[0].mxu0
    %v3741 = vadd.f32 %v3484, %v3740
    %3742 = vmatprep.mubr.f32.mxu0 0.0
    %3743 = vmatmul.mubr.f32.gmra.mrb[0].mxu0 %v2310
    %v3744 = vpop.f32.mrb[0].mxu0
    %v3745 = vadd.f32 %v3488, %v3744
    %v3746 = vpop.f32.mrb[0].mxu0
    %v3747 = vadd.f32 %v3490, %v3746
    %3748 = vmatprep.mubr.f32.mxu0 0.0
    %3749 = vmatmul.mubr.f32.gmra.mrb[0].mxu0 %v2313
    %v3750 = vpop.f32.mrb[0].mxu0
    %v3751 = vadd.f32 %v3494, %v3750
    %v3752 = vpop.f32.mrb[0].mxu0
    %v3753 = vadd.f32 %v3496, %v3752
    %3754 = vmatprep.mubr.f32.mxu0 0.0
    %3755 = vmatmul.mubr.f32.gmra.mrb[0].mxu0 %v2316
    %v3756 = vpop.f32.mrb[0].mxu0
    %v3757 = vadd.f32 %v3500, %v3756
    %v3758 = vpop.f32.mrb[0].mxu0
    %v3759 = vadd.f32 %v3502, %v3758
    %3760 = vmatprep.mubr.f32.mxu0 0.0
    %3761 = vmatmul.mubr.f32.gmra.mrb[0].mxu0 %v2319
    %v3762 = vpop.f32.mrb[0].mxu0
    %v3763 = vadd.f32 %v3506, %v3762
    %v3764 = vpop.f32.mrb[0].mxu0
    %v3765 = vadd.f32 %v3508, %v3764
    %3766 = vmatprep.mubr.f32.mxu0 0.0
    %3767 = vmatmul.mubr.f32.gmra.mrb[0].mxu0 %v2322
    %v3768 = vpop.f32.mrb[0].mxu0
    %v3769 = vadd.f32 %v3512, %v3768
    %v3770 = vpop.f32.mrb[0].mxu0
    %v3771 = vadd.f32 %v3514, %v3770
    %3772 = vmatprep.mubr.f32.mxu0 0.0
    %3773 = vmatmul.mubr.f32.gmra.mrb[0].mxu0 %v2325
    %v3774 = vpop.f32.mrb[0].mxu0
    %v3775 = vadd.f32 %v3518, %v3774
    %v3776 = vpop.f32.mrb[0].mxu0
    %v3777 = vadd.f32 %v3520, %v3776
    %3778 = vmatprep.mubr.f32.mxu0 0.0
    %3779 = vmatmul.mubr.f32.gmra.mrb[0].mxu0 %v2328
    %v3780 = vpop.f32.mrb[0].mxu0
    %v3781 = vadd.f32 %v3524, %v3780
    %v3782 = vpop.f32.mrb[0].mxu0
    %v3783 = vadd.f32 %v3526, %v3782
    %3784 = vmatprep.mubr.f32.mxu0 0.0
    %3785 = vmatmul.mubr.f32.gmra.mrb[0].mxu0 %v2331
    %v3786 = vpop.f32.mrb[0].mxu0
    %v3787 = vadd.f32 %v3530, %v3786
    %v3788 = vpop.f32.mrb[0].mxu0
    %v3789 = vadd.f32 %v3532, %v3788
    %3790 = vmatprep.mubr.f32.mxu0 0.0
    %3791 = vmatmul.mubr.f32.gmra.mrb[0].mxu0 %v2334
    %v3792 = vpop.f32.mrb[0].mxu0
    %v3793 = vadd.f32 %v3536, %v3792
    %v3794 = vpop.f32.mrb[0].mxu0
    %v3795 = vadd.f32 %v3538, %v3794
    %3796 = vdwg.mxu0
    %s3797 = scalar_lea.vmem [#allocation2], 256
    %v3798 = vld [vmem:[%s3797] sm:$0xff]
    %v3799 = vld [vmem:[%s3797 + $0x8] sm:$0xff]
    %v3800 = vld [vmem:[%s3797 + $0x10] sm:$0xff]
    %v3801 = vld [vmem:[%s3797 + $0x18] sm:$0xff]
    %v3802 = vld [vmem:[%s3797 + $0x20] sm:$0xff]
    %v3803 = vld [vmem:[%s3797 + $0x28] sm:$0xff]
    %v3804 = vld [vmem:[%s3797 + $0x30] sm:$0xff]
    %v3805 = vld [vmem:[%s3797 + $0x38] sm:$0xff]
    %v3806 = vld [vmem:[%s3797 + $0x40] sm:$0xff]
    %v3807 = vld [vmem:[%s3797 + $0x48] sm:$0xff]
    %v3808 = vld [vmem:[%s3797 + $0x50] sm:$0xff]
    %v3809 = vld [vmem:[%s3797 + $0x58] sm:$0xff]
    %v3810 = vld [vmem:[%s3797 + $0x60] sm:$0xff]
    %v3811 = vld [vmem:[%s3797 + $0x68] sm:$0xff]
    %v3812 = vld [vmem:[%s3797 + $0x70] sm:$0xff]
    %v3813 = vld [vmem:[%s3797 + $0x78] sm:$0xff]
    %3814 = vmatprep.subr.mxu0 %v3799
    %3815 = vmatpush1.msra.mxu0 %v3798
    %3816 = vmatprep.subr.mxu0 %v3801
    %3817 = vmatpush1.msra.mxu0 %v3800
    %3818 = vmatprep.subr.mxu0 %v3803
    %3819 = vmatpush1.msra.mxu0 %v3802
    %3820 = vmatprep.subr.mxu0 %v3805
    %3821 = vmatpush1.msra.mxu0 %v3804
    %3822 = vmatprep.subr.mxu0 %v3807
    %3823 = vmatpush1.msra.mxu0 %v3806
    %3824 = vmatprep.subr.mxu0 %v3809
    %3825 = vmatpush1.msra.mxu0 %v3808
    %3826 = vmatprep.subr.mxu0 %v3811
    %3827 = vmatpush1.msra.mxu0 %v3810
    %3828 = vmatprep.subr.mxu0 %v3813
    %3829 = vmatpush1.msra.mxu0 %v3812
    %3830 = vmatprep.subr.mxu0 0.0
    %3831 = vmatpush1.msra.mxu0 0.0
    %3832 = vmatprep.subr.mxu0 0.0
    %3833 = vmatpush1.msra.mxu0 0.0
    %3834 = vmatprep.subr.mxu0 0.0
    %3835 = vmatpush1.msra.mxu0 0.0
    %3836 = vmatprep.subr.mxu0 0.0
    %3837 = vmatpush1.msra.mxu0 0.0
    %3838 = vmatprep.subr.mxu0 0.0
    %3839 = vmatpush1.msra.mxu0 0.0
    %3840 = vmatprep.subr.mxu0 0.0
    %3841 = vmatpush1.msra.mxu0 0.0
    %3842 = vmatprep.subr.mxu0 0.0
    %3843 = vmatpush1.msra.mxu0 0.0
    %3844 = vmatprep.subr.mxu0 0.0
    %3845 = vmatpush1.msra.mxu0 0.0
    %3846 = vmatprep.subr.mxu0 0.0
    %3847 = vmatpush1.msra.mxu0 0.0
    %3848 = vmatprep.subr.mxu0 0.0
    %3849 = vmatpush1.msra.mxu0 0.0
    %3850 = vmatprep.subr.mxu0 0.0
    %3851 = vmatpush1.msra.mxu0 0.0
    %3852 = vmatprep.subr.mxu0 0.0
    %3853 = vmatpush1.msra.mxu0 0.0
    %3854 = vmatprep.subr.mxu0 0.0
    %3855 = vmatpush1.msra.mxu0 0.0
    %3856 = vmatprep.subr.mxu0 0.0
    %3857 = vmatpush1.msra.mxu0 0.0
    %3858 = vmatprep.subr.mxu0 0.0
    %3859 = vmatpush1.msra.mxu0 0.0
    %3860 = vmatprep.subr.mxu0 0.0
    %3861 = vmatpush1.msra.mxu0 0.0
    %3862 = vmatprep.subr.mxu0 0.0
    %3863 = vmatpush1.msra.mxu0 0.0
    %3864 = vmatprep.subr.mxu0 0.0
    %3865 = vmatpush1.msra.mxu0 0.0
    %3866 = vmatprep.subr.mxu0 0.0
    %3867 = vmatpush1.msra.mxu0 0.0
    %3868 = vmatprep.subr.mxu0 0.0
    %3869 = vmatpush1.msra.mxu0 0.0
    %3870 = vmatprep.subr.mxu0 0.0
    %3871 = vmatpush1.msra.mxu0 0.0
    %3872 = vmatprep.subr.mxu0 0.0
    %3873 = vmatpush1.msra.mxu0 0.0
    %3874 = vmatprep.subr.mxu0 0.0
    %3875 = vmatpush1.msra.mxu0 0.0
    %3876 = vmatprep.subr.mxu0 0.0
    %3877 = vmatpush1.msra.mxu0 0.0
    %3878 = vmatprep.mubr.f32.mxu0 0.0
    %3879 = vmatmul.mubr.f32.gmra.mrb[0].mxu0 %v2571
    %v3880 = vpop.f32.mrb[0].mxu0
    %v3881 = vadd.f32 0.0, %v3880
    %v3882 = vpop.f32.mrb[0].mxu0
    %v3883 = vadd.f32 0.0, %v3882
    %3884 = vmatprep.mubr.f32.mxu0 0.0
    %3885 = vmatmul.mubr.f32.gmra.mrb[0].mxu0 %v2574
    %v3886 = vpop.f32.mrb[0].mxu0
    %v3887 = vadd.f32 0.0, %v3886
    %v3888 = vpop.f32.mrb[0].mxu0
    %v3889 = vadd.f32 0.0, %v3888
    %3890 = vmatprep.mubr.f32.mxu0 0.0
    %3891 = vmatmul.mubr.f32.gmra.mrb[0].mxu0 %v2577
    %v3892 = vpop.f32.mrb[0].mxu0
    %v3893 = vadd.f32 0.0, %v3892
    %v3894 = vpop.f32.mrb[0].mxu0
    %v3895 = vadd.f32 0.0, %v3894
    %3896 = vmatprep.mubr.f32.mxu0 0.0
    %3897 = vmatmul.mubr.f32.gmra.mrb[0].mxu0 %v2580
    %v3898 = vpop.f32.mrb[0].mxu0
    %v3899 = vadd.f32 0.0, %v3898
    %v3900 = vpop.f32.mrb[0].mxu0
    %v3901 = vadd.f32 0.0, %v3900
    %3902 = vmatprep.mubr.f32.mxu0 0.0
    %3903 = vmatmul.mubr.f32.gmra.mrb[0].mxu0 %v2583
    %v3904 = vpop.f32.mrb[0].mxu0
    %v3905 = vadd.f32 0.0, %v3904
    %v3906 = vpop.f32.mrb[0].mxu0
    %v3907 = vadd.f32 0.0, %v3906
    %3908 = vmatprep.mubr.f32.mxu0 0.0
    %3909 = vmatmul.mubr.f32.gmra.mrb[0].mxu0 %v2586
    %v3910 = vpop.f32.mrb[0].mxu0
    %v3911 = vadd.f32 0.0, %v3910
    %v3912 = vpop.f32.mrb[0].mxu0
    %v3913 = vadd.f32 0.0, %v3912
    %3914 = vmatprep.mubr.f32.mxu0 0.0
    %3915 = vmatmul.mubr.f32.gmra.mrb[0].mxu0 %v2589
    %v3916 = vpop.f32.mrb[0].mxu0
    %v3917 = vadd.f32 0.0, %v3916
    %v3918 = vpop.f32.mrb[0].mxu0
    %v3919 = vadd.f32 0.0, %v3918
    %3920 = vmatprep.mubr.f32.mxu0 0.0
    %3921 = vmatmul.mubr.f32.gmra.mrb[0].mxu0 %v2592
    %v3922 = vpop.f32.mrb[0].mxu0
    %v3923 = vadd.f32 0.0, %v3922
    %v3924 = vpop.f32.mrb[0].mxu0
    %v3925 = vadd.f32 0.0, %v3924
    %3926 = vmatprep.mubr.f32.mxu0 0.0
    %3927 = vmatmul.mubr.f32.gmra.mrb[0].mxu0 %v2595
    %v3928 = vpop.f32.mrb[0].mxu0
    %v3929 = vadd.f32 0.0, %v3928
    %v3930 = vpop.f32.mrb[0].mxu0
    %v3931 = vadd.f32 0.0, %v3930
    %3932 = vmatprep.mubr.f32.mxu0 0.0
    %3933 = vmatmul.mubr.f32.gmra.mrb[0].mxu0 %v2598
    %v3934 = vpop.f32.mrb[0].mxu0
    %v3935 = vadd.f32 0.0, %v3934
    %v3936 = vpop.f32.mrb[0].mxu0
    %v3937 = vadd.f32 0.0, %v3936
    %3938 = vmatprep.mubr.f32.mxu0 0.0
    %3939 = vmatmul.mubr.f32.gmra.mrb[0].mxu0 %v2601
    %v3940 = vpop.f32.mrb[0].mxu0
    %v3941 = vadd.f32 0.0, %v3940
    %v3942 = vpop.f32.mrb[0].mxu0
    %v3943 = vadd.f32 0.0, %v3942
    %3944 = vmatprep.mubr.f32.mxu0 0.0
    %3945 = vmatmul.mubr.f32.gmra.mrb[0].mxu0 %v2604
    %v3946 = vpop.f32.mrb[0].mxu0
    %v3947 = vadd.f32 0.0, %v3946
    %v3948 = vpop.f32.mrb[0].mxu0
    %v3949 = vadd.f32 0.0, %v3948
    %3950 = vmatprep.mubr.f32.mxu0 0.0
    %3951 = vmatmul.mubr.f32.gmra.mrb[0].mxu0 %v2607
    %v3952 = vpop.f32.mrb[0].mxu0
    %v3953 = vadd.f32 0.0, %v3952
    %v3954 = vpop.f32.mrb[0].mxu0
    %v3955 = vadd.f32 0.0, %v3954
    %3956 = vmatprep.mubr.f32.mxu0 0.0
    %3957 = vmatmul.mubr.f32.gmra.mrb[0].mxu0 %v2610
    %v3958 = vpop.f32.mrb[0].mxu0
    %v3959 = vadd.f32 0.0, %v3958
    %v3960 = vpop.f32.mrb[0].mxu0
    %v3961 = vadd.f32 0.0, %v3960
    %3962 = vmatprep.mubr.f32.mxu0 0.0
    %3963 = vmatmul.mubr.f32.gmra.mrb[0].mxu0 %v2613
    %v3964 = vpop.f32.mrb[0].mxu0
    %v3965 = vadd.f32 0.0, %v3964
    %v3966 = vpop.f32.mrb[0].mxu0
    %v3967 = vadd.f32 0.0, %v3966
    %3968 = vmatprep.mubr.f32.mxu0 0.0
    %3969 = vmatmul.mubr.f32.gmra.mrb[0].mxu0 %v2616
    %v3970 = vpop.f32.mrb[0].mxu0
    %v3971 = vadd.f32 0.0, %v3970
    %v3972 = vpop.f32.mrb[0].mxu0
    %v3973 = vadd.f32 0.0, %v3972
    %3974 = vmatprep.mubr.f32.mxu0 0.0
    %3975 = vmatmul.mubr.f32.gmra.mrb[0].mxu0 %v2619
    %v3976 = vpop.f32.mrb[0].mxu0
    %v3977 = vadd.f32 0.0, %v3976
    %v3978 = vpop.f32.mrb[0].mxu0
    %v3979 = vadd.f32 0.0, %v3978
    %3980 = vmatprep.mubr.f32.mxu0 0.0
    %3981 = vmatmul.mubr.f32.gmra.mrb[0].mxu0 %v2622
    %v3982 = vpop.f32.mrb[0].mxu0
    %v3983 = vadd.f32 0.0, %v3982
    %v3984 = vpop.f32.mrb[0].mxu0
    %v3985 = vadd.f32 0.0, %v3984
    %3986 = vmatprep.mubr.f32.mxu0 0.0
    %3987 = vmatmul.mubr.f32.gmra.mrb[0].mxu0 %v2625
    %v3988 = vpop.f32.mrb[0].mxu0
    %v3989 = vadd.f32 0.0, %v3988
    %v3990 = vpop.f32.mrb[0].mxu0
    %v3991 = vadd.f32 0.0, %v3990
    %3992 = vmatprep.mubr.f32.mxu0 0.0
    %3993 = vmatmul.mubr.f32.gmra.mrb[0].mxu0 %v2628
    %v3994 = vpop.f32.mrb[0].mxu0
    %v3995 = vadd.f32 0.0, %v3994
    %v3996 = vpop.f32.mrb[0].mxu0
    %v3997 = vadd.f32 0.0, %v3996
    %3998 = vmatprep.mubr.f32.mxu0 0.0
    %3999 = vmatmul.mubr.f32.gmra.mrb[0].mxu0 %v2631
    %v4000 = vpop.f32.mrb[0].mxu0
    %v4001 = vadd.f32 0.0, %v4000
    %v4002 = vpop.f32.mrb[0].mxu0
    %v4003 = vadd.f32 0.0, %v4002
    %4004 = vmatprep.mubr.f32.mxu0 0.0
    %4005 = vmatmul.mubr.f32.gmra.mrb[0].mxu0 %v2634
    %v4006 = vpop.f32.mrb[0].mxu0
    %v4007 = vadd.f32 0.0, %v4006
    %v4008 = vpop.f32.mrb[0].mxu0
    %v4009 = vadd.f32 0.0, %v4008
    %4010 = vmatprep.mubr.f32.mxu0 0.0
    %4011 = vmatmul.mubr.f32.gmra.mrb[0].mxu0 %v2637
    %v4012 = vpop.f32.mrb[0].mxu0
    %v4013 = vadd.f32 0.0, %v4012
    %v4014 = vpop.f32.mrb[0].mxu0
    %v4015 = vadd.f32 0.0, %v4014
    %4016 = vmatprep.mubr.f32.mxu0 0.0
    %4017 = vmatmul.mubr.f32.gmra.mrb[0].mxu0 %v2640
    %v4018 = vpop.f32.mrb[0].mxu0
    %v4019 = vadd.f32 0.0, %v4018
    %v4020 = vpop.f32.mrb[0].mxu0
    %v4021 = vadd.f32 0.0, %v4020
    %4022 = vmatprep.mubr.f32.mxu0 0.0
    %4023 = vmatmul.mubr.f32.gmra.mrb[0].mxu0 %v2643
    %v4024 = vpop.f32.mrb[0].mxu0
    %v4025 = vadd.f32 0.0, %v4024
    %v4026 = vpop.f32.mrb[0].mxu0
    %v4027 = vadd.f32 0.0, %v4026
    %4028 = vmatprep.mubr.f32.mxu0 0.0
    %4029 = vmatmul.mubr.f32.gmra.mrb[0].mxu0 %v2646
    %v4030 = vpop.f32.mrb[0].mxu0
    %v4031 = vadd.f32 0.0, %v4030
    %v4032 = vpop.f32.mrb[0].mxu0
    %v4033 = vadd.f32 0.0, %v4032
    %4034 = vmatprep.mubr.f32.mxu0 0.0
    %4035 = vmatmul.mubr.f32.gmra.mrb[0].mxu0 %v2649
    %v4036 = vpop.f32.mrb[0].mxu0
    %v4037 = vadd.f32 0.0, %v4036
    %v4038 = vpop.f32.mrb[0].mxu0
    %v4039 = vadd.f32 0.0, %v4038
    %4040 = vmatprep.mubr.f32.mxu0 0.0
    %4041 = vmatmul.mubr.f32.gmra.mrb[0].mxu0 %v2652
    %v4042 = vpop.f32.mrb[0].mxu0
    %v4043 = vadd.f32 0.0, %v4042
    %v4044 = vpop.f32.mrb[0].mxu0
    %v4045 = vadd.f32 0.0, %v4044
    %4046 = vmatprep.mubr.f32.mxu0 0.0
    %4047 = vmatmul.mubr.f32.gmra.mrb[0].mxu0 %v2655
    %v4048 = vpop.f32.mrb[0].mxu0
    %v4049 = vadd.f32 0.0, %v4048
    %v4050 = vpop.f32.mrb[0].mxu0
    %v4051 = vadd.f32 0.0, %v4050
    %4052 = vmatprep.mubr.f32.mxu0 0.0
    %4053 = vmatmul.mubr.f32.gmra.mrb[0].mxu0 %v2658
    %v4054 = vpop.f32.mrb[0].mxu0
    %v4055 = vadd.f32 0.0, %v4054
    %v4056 = vpop.f32.mrb[0].mxu0
    %v4057 = vadd.f32 0.0, %v4056
    %4058 = vmatprep.mubr.f32.mxu0 0.0
    %4059 = vmatmul.mubr.f32.gmra.mrb[0].mxu0 %v2661
    %v4060 = vpop.f32.mrb[0].mxu0
    %v4061 = vadd.f32 0.0, %v4060
    %v4062 = vpop.f32.mrb[0].mxu0
    %v4063 = vadd.f32 0.0, %v4062
    %4064 = vmatprep.mubr.f32.mxu0 0.0
    %4065 = vmatmul.mubr.f32.gmra.mrb[0].mxu0 %v2664
    %v4066 = vpop.f32.mrb[0].mxu0
    %v4067 = vadd.f32 0.0, %v4066
    %v4068 = vpop.f32.mrb[0].mxu0
    %v4069 = vadd.f32 0.0, %v4068
    %4070 = vdwg.mxu0
    %v4071 = vadd.f32 %v3607, %v3881
    %v4072 = vadd.f32 %v3609, %v3883
    %v4073 = vadd.f32 %v3613, %v3887
    %v4074 = vadd.f32 %v3615, %v3889
    %v4075 = vadd.f32 %v3619, %v3893
    %v4076 = vadd.f32 %v3621, %v3895
    %v4077 = vadd.f32 %v3625, %v3899
    %v4078 = vadd.f32 %v3627, %v3901
    %v4079 = vadd.f32 %v3631, %v3905
    %v4080 = vadd.f32 %v3633, %v3907
    %v4081 = vadd.f32 %v3637, %v3911
    %v4082 = vadd.f32 %v3639, %v3913
    %v4083 = vadd.f32 %v3643, %v3917
    %v4084 = vadd.f32 %v3645, %v3919
    %v4085 = vadd.f32 %v3649, %v3923
    %v4086 = vadd.f32 %v3651, %v3925
    %v4087 = vadd.f32 %v3655, %v3929
    %v4088 = vadd.f32 %v3657, %v3931
    %v4089 = vadd.f32 %v3661, %v3935
    %v4090 = vadd.f32 %v3663, %v3937
    %v4091 = vadd.f32 %v3667, %v3941
    %v4092 = vadd.f32 %v3669, %v3943
    %v4093 = vadd.f32 %v3673, %v3947
    %v4094 = vadd.f32 %v3675, %v3949
    %v4095 = vadd.f32 %v3679, %v3953
    %v4096 = vadd.f32 %v3681, %v3955
    %v4097 = vadd.f32 %v3685, %v3959
    %v4098 = vadd.f32 %v3687, %v3961
    %v4099 = vadd.f32 %v3691, %v3965
    %v4100 = vadd.f32 %v3693, %v3967
    %v4101 = vadd.f32 %v3697, %v3971
    %v4102 = vadd.f32 %v3699, %v3973
    %v4103 = vadd.f32 %v3703, %v3977
    %v4104 = vadd.f32 %v3705, %v3979
    %v4105 = vadd.f32 %v3709, %v3983
    %v4106 = vadd.f32 %v3711, %v3985
    %v4107 = vadd.f32 %v3715, %v3989
    %v4108 = vadd.f32 %v3717, %v3991
    %v4109 = vadd.f32 %v3721, %v3995
    %v4110 = vadd.f32 %v3723, %v3997
    %v4111 = vadd.f32 %v3727, %v4001
    %v4112 = vadd.f32 %v3729, %v4003
    %v4113 = vadd.f32 %v3733, %v4007
    %v4114 = vadd.f32 %v3735, %v4009
    %v4115 = vadd.f32 %v3739, %v4013
    %v4116 = vadd.f32 %v3741, %v4015
    %v4117 = vadd.f32 %v3745, %v4019
    %v4118 = vadd.f32 %v3747, %v4021
    %v4119 = vadd.f32 %v3751, %v4025
    %v4120 = vadd.f32 %v3753, %v4027
    %v4121 = vadd.f32 %v3757, %v4031
    %v4122 = vadd.f32 %v3759, %v4033
    %v4123 = vadd.f32 %v3763, %v4037
    %v4124 = vadd.f32 %v3765, %v4039
    %v4125 = vadd.f32 %v3769, %v4043
    %v4126 = vadd.f32 %v3771, %v4045
    %v4127 = vadd.f32 %v3775, %v4049
    %v4128 = vadd.f32 %v3777, %v4051
    %v4129 = vadd.f32 %v3781, %v4055
    %v4130 = vadd.f32 %v3783, %v4057
    %v4131 = vadd.f32 %v3787, %v4061
    %v4132 = vadd.f32 %v3789, %v4063
    %v4133 = vadd.f32 %v3793, %v4067
    %v4134 = vadd.f32 %v3795, %v4069
    %v4135 = vld [vmem:[#allocation5] sm:$0xff]
    %v4136 = vld [vmem:[#allocation5 + $0x8] sm:$0xff]
    %v4137 = vld [vmem:[#allocation5 + $0x10] sm:$0xff]
    %v4138 = vld [vmem:[#allocation5 + $0x18] sm:$0xff]
    %v4139 = vld [vmem:[#allocation5 + $0x20] sm:$0xff]
    %v4140 = vld [vmem:[#allocation5 + $0x28] sm:$0xff]
    %v4141 = vld [vmem:[#allocation5 + $0x30] sm:$0xff]
    %v4142 = vld [vmem:[#allocation5 + $0x38] sm:$0xff]
    %v4143 = vld [vmem:[#allocation5 + $0x40] sm:$0xff]
    %v4144 = vld [vmem:[#allocation5 + $0x48] sm:$0xff]
    %v4145 = vld [vmem:[#allocation5 + $0x50] sm:$0xff]
    %v4146 = vld [vmem:[#allocation5 + $0x58] sm:$0xff]
    %v4147 = vld [vmem:[#allocation5 + $0x60] sm:$0xff]
    %v4148 = vld [vmem:[#allocation5 + $0x68] sm:$0xff]
    %v4149 = vld [vmem:[#allocation5 + $0x70] sm:$0xff]
    %v4150 = vld [vmem:[#allocation5 + $0x78] sm:$0xff]
    %v4151 = vld [vmem:[#allocation5 + $0x80] sm:$0xff]
    %v4152 = vld [vmem:[#allocation5 + $0x88] sm:$0xff]
    %v4153 = vld [vmem:[#allocation5 + $0x90] sm:$0xff]
    %v4154 = vld [vmem:[#allocation5 + $0x98] sm:$0xff]
    %v4155 = vld [vmem:[#allocation5 + $0xa0] sm:$0xff]
    %v4156 = vld [vmem:[#allocation5 + $0xa8] sm:$0xff]
    %v4157 = vld [vmem:[#allocation5 + $0xb0] sm:$0xff]
    %v4158 = vld [vmem:[#allocation5 + $0xb8] sm:$0xff]
    %v4159 = vld [vmem:[#allocation5 + $0xc0] sm:$0xff]
    %v4160 = vld [vmem:[#allocation5 + $0xc8] sm:$0xff]
    %v4161 = vld [vmem:[#allocation5 + $0xd0] sm:$0xff]
    %v4162 = vld [vmem:[#allocation5 + $0xd8] sm:$0xff]
    %v4163 = vld [vmem:[#allocation5 + $0xe0] sm:$0xff]
    %v4164 = vld [vmem:[#allocation5 + $0xe8] sm:$0xff]
    %v4165 = vld [vmem:[#allocation5 + $0xf0] sm:$0xff]
    %v4166 = vld [vmem:[#allocation5 + $0xf8] sm:$0xff]
    %s4167 = scalar_lea.vmem [#allocation5], 256
    %v4168 = vld [vmem:[%s4167] sm:$0xff]
    %v4169 = vld [vmem:[%s4167 + $0x8] sm:$0xff]
    %v4170 = vld [vmem:[%s4167 + $0x10] sm:$0xff]
    %v4171 = vld [vmem:[%s4167 + $0x18] sm:$0xff]
    %v4172 = vld [vmem:[%s4167 + $0x20] sm:$0xff]
    %v4173 = vld [vmem:[%s4167 + $0x28] sm:$0xff]
    %v4174 = vld [vmem:[%s4167 + $0x30] sm:$0xff]
    %v4175 = vld [vmem:[%s4167 + $0x38] sm:$0xff]
    %v4176 = vld [vmem:[%s4167 + $0x40] sm:$0xff]
    %v4177 = vld [vmem:[%s4167 + $0x48] sm:$0xff]
    %v4178 = vld [vmem:[%s4167 + $0x50] sm:$0xff]
    %v4179 = vld [vmem:[%s4167 + $0x58] sm:$0xff]
    %v4180 = vld [vmem:[%s4167 + $0x60] sm:$0xff]
    %v4181 = vld [vmem:[%s4167 + $0x68] sm:$0xff]
    %v4182 = vld [vmem:[%s4167 + $0x70] sm:$0xff]
    %v4183 = vld [vmem:[%s4167 + $0x78] sm:$0xff]
    %v4184 = vld [vmem:[%s4167 + $0x80] sm:$0xff]
    %v4185 = vld [vmem:[%s4167 + $0x88] sm:$0xff]
    %v4186 = vld [vmem:[%s4167 + $0x90] sm:$0xff]
    %v4187 = vld [vmem:[%s4167 + $0x98] sm:$0xff]
    %v4188 = vld [vmem:[%s4167 + $0xa0] sm:$0xff]
    %v4189 = vld [vmem:[%s4167 + $0xa8] sm:$0xff]
    %v4190 = vld [vmem:[%s4167 + $0xb0] sm:$0xff]
    %v4191 = vld [vmem:[%s4167 + $0xb8] sm:$0xff]
    %v4192 = vld [vmem:[%s4167 + $0xc0] sm:$0xff]
    %v4193 = vld [vmem:[%s4167 + $0xc8] sm:$0xff]
    %v4194 = vld [vmem:[%s4167 + $0xd0] sm:$0xff]
    %v4195 = vld [vmem:[%s4167 + $0xd8] sm:$0xff]
    %v4196 = vld [vmem:[%s4167 + $0xe0] sm:$0xff]
    %v4197 = vld [vmem:[%s4167 + $0xe8] sm:$0xff]
    %v4198 = vld [vmem:[%s4167 + $0xf0] sm:$0xff]
    %v4199 = vld [vmem:[%s4167 + $0xf8] sm:$0xff]
    %4200 = vmatprep.subr.mxu0 %v4169
    %4201 = vmatpush1.msra.mxu0 %v4168
    %4202 = vmatprep.subr.mxu0 %v4171
    %4203 = vmatpush1.msra.mxu0 %v4170
    %4204 = vmatprep.subr.mxu0 %v4173
    %4205 = vmatpush1.msra.mxu0 %v4172
    %4206 = vmatprep.subr.mxu0 %v4175
    %4207 = vmatpush1.msra.mxu0 %v4174
    %4208 = vmatprep.subr.mxu0 %v4177
    %4209 = vmatpush1.msra.mxu0 %v4176
    %4210 = vmatprep.subr.mxu0 %v4179
    %4211 = vmatpush1.msra.mxu0 %v4178
    %4212 = vmatprep.subr.mxu0 %v4181
    %4213 = vmatpush1.msra.mxu0 %v4180
    %4214 = vmatprep.subr.mxu0 %v4183
    %4215 = vmatpush1.msra.mxu0 %v4182
    %4216 = vmatprep.subr.mxu0 %v4185
    %4217 = vmatpush1.msra.mxu0 %v4184
    %4218 = vmatprep.subr.mxu0 %v4187
    %4219 = vmatpush1.msra.mxu0 %v4186
    %4220 = vmatprep.subr.mxu0 %v4189
    %4221 = vmatpush1.msra.mxu0 %v4188
    %4222 = vmatprep.subr.mxu0 %v4191
    %4223 = vmatpush1.msra.mxu0 %v4190
    %4224 = vmatprep.subr.mxu0 %v4193
    %4225 = vmatpush1.msra.mxu0 %v4192
    %4226 = vmatprep.subr.mxu0 %v4195
    %4227 = vmatpush1.msra.mxu0 %v4194
    %4228 = vmatprep.subr.mxu0 %v4197
    %4229 = vmatpush1.msra.mxu0 %v4196
    %4230 = vmatprep.subr.mxu0 %v4199
    %4231 = vmatpush1.msra.mxu0 %v4198
    %4232 = vmatprep.subr.mxu0 0.0
    %4233 = vmatpush1.msra.mxu0 0.0
    %4234 = vmatprep.subr.mxu0 0.0
    %4235 = vmatpush1.msra.mxu0 0.0
    %4236 = vmatprep.subr.mxu0 0.0
    %4237 = vmatpush1.msra.mxu0 0.0
    %4238 = vmatprep.subr.mxu0 0.0
    %4239 = vmatpush1.msra.mxu0 0.0
    %4240 = vmatprep.subr.mxu0 0.0
    %4241 = vmatpush1.msra.mxu0 0.0
    %4242 = vmatprep.subr.mxu0 0.0
    %4243 = vmatpush1.msra.mxu0 0.0
    %4244 = vmatprep.subr.mxu0 0.0
    %4245 = vmatpush1.msra.mxu0 0.0
    %4246 = vmatprep.subr.mxu0 0.0
    %4247 = vmatpush1.msra.mxu0 0.0
    %4248 = vmatprep.subr.mxu0 0.0
    %4249 = vmatpush1.msra.mxu0 0.0
    %4250 = vmatprep.subr.mxu0 0.0
    %4251 = vmatpush1.msra.mxu0 0.0
    %4252 = vmatprep.subr.mxu0 0.0
    %4253 = vmatpush1.msra.mxu0 0.0
    %4254 = vmatprep.subr.mxu0 0.0
    %4255 = vmatpush1.msra.mxu0 0.0
    %4256 = vmatprep.subr.mxu0 0.0
    %4257 = vmatpush1.msra.mxu0 0.0
    %4258 = vmatprep.subr.mxu0 0.0
    %4259 = vmatpush1.msra.mxu0 0.0
    %4260 = vmatprep.subr.mxu0 0.0
    %4261 = vmatpush1.msra.mxu0 0.0
    %4262 = vmatprep.subr.mxu0 0.0
    %4263 = vmatpush1.msra.mxu0 0.0
    %4264 = vmatprep.mubr.f32.mxu0 0.0
    %4265 = vmatmul.mubr.f32.gmra.mrb[0].mxu0 %v3026
    %v4266 = vpop.f32.mrb[0].mxu0
    %v4267 = vadd.f32 0.0, %v4266
    %v4268 = vpop.f32.mrb[0].mxu0
    %v4269 = vadd.f32 0.0, %v4268
    %4270 = vmatprep.mubr.f32.mxu0 0.0
    %4271 = vmatmul.mubr.f32.gmra.mrb[0].mxu0 %v3027
    %v4272 = vpop.f32.mrb[0].mxu0
    %v4273 = vadd.f32 0.0, %v4272
    %v4274 = vpop.f32.mrb[0].mxu0
    %v4275 = vadd.f32 0.0, %v4274
    %4276 = vmatprep.mubr.f32.mxu0 0.0
    %4277 = vmatmul.mubr.f32.gmra.mrb[0].mxu0 %v3028
    %v4278 = vpop.f32.mrb[0].mxu0
    %v4279 = vadd.f32 0.0, %v4278
    %v4280 = vpop.f32.mrb[0].mxu0
    %v4281 = vadd.f32 0.0, %v4280
    %4282 = vmatprep.mubr.f32.mxu0 0.0
    %4283 = vmatmul.mubr.f32.gmra.mrb[0].mxu0 %v3029
    %v4284 = vpop.f32.mrb[0].mxu0
    %v4285 = vadd.f32 0.0, %v4284
    %v4286 = vpop.f32.mrb[0].mxu0
    %v4287 = vadd.f32 0.0, %v4286
    %4288 = vmatprep.mubr.f32.mxu0 0.0
    %4289 = vmatmul.mubr.f32.gmra.mrb[0].mxu0 %v3030
    %v4290 = vpop.f32.mrb[0].mxu0
    %v4291 = vadd.f32 0.0, %v4290
    %v4292 = vpop.f32.mrb[0].mxu0
    %v4293 = vadd.f32 0.0, %v4292
    %4294 = vmatprep.mubr.f32.mxu0 0.0
    %4295 = vmatmul.mubr.f32.gmra.mrb[0].mxu0 %v3031
    %v4296 = vpop.f32.mrb[0].mxu0
    %v4297 = vadd.f32 0.0, %v4296
    %v4298 = vpop.f32.mrb[0].mxu0
    %v4299 = vadd.f32 0.0, %v4298
    %4300 = vmatprep.mubr.f32.mxu0 0.0
    %4301 = vmatmul.mubr.f32.gmra.mrb[0].mxu0 %v3032
    %v4302 = vpop.f32.mrb[0].mxu0
    %v4303 = vadd.f32 0.0, %v4302
    %v4304 = vpop.f32.mrb[0].mxu0
    %v4305 = vadd.f32 0.0, %v4304
    %4306 = vmatprep.mubr.f32.mxu0 0.0
    %4307 = vmatmul.mubr.f32.gmra.mrb[0].mxu0 %v3033
    %v4308 = vpop.f32.mrb[0].mxu0
    %v4309 = vadd.f32 0.0, %v4308
    %v4310 = vpop.f32.mrb[0].mxu0
    %v4311 = vadd.f32 0.0, %v4310
    %4312 = vmatprep.mubr.f32.mxu0 0.0
    %4313 = vmatmul.mubr.f32.gmra.mrb[0].mxu0 %v3034
    %v4314 = vpop.f32.mrb[0].mxu0
    %v4315 = vadd.f32 0.0, %v4314
    %v4316 = vpop.f32.mrb[0].mxu0
    %v4317 = vadd.f32 0.0, %v4316
    %4318 = vmatprep.mubr.f32.mxu0 0.0
    %4319 = vmatmul.mubr.f32.gmra.mrb[0].mxu0 %v3035
    %v4320 = vpop.f32.mrb[0].mxu0
    %v4321 = vadd.f32 0.0, %v4320
    %v4322 = vpop.f32.mrb[0].mxu0
    %v4323 = vadd.f32 0.0, %v4322
    %4324 = vmatprep.mubr.f32.mxu0 0.0
    %4325 = vmatmul.mubr.f32.gmra.mrb[0].mxu0 %v3036
    %v4326 = vpop.f32.mrb[0].mxu0
    %v4327 = vadd.f32 0.0, %v4326
    %v4328 = vpop.f32.mrb[0].mxu0
    %v4329 = vadd.f32 0.0, %v4328
    %4330 = vmatprep.mubr.f32.mxu0 0.0
    %4331 = vmatmul.mubr.f32.gmra.mrb[0].mxu0 %v3037
    %v4332 = vpop.f32.mrb[0].mxu0
    %v4333 = vadd.f32 0.0, %v4332
    %v4334 = vpop.f32.mrb[0].mxu0
    %v4335 = vadd.f32 0.0, %v4334
    %4336 = vmatprep.mubr.f32.mxu0 0.0
    %4337 = vmatmul.mubr.f32.gmra.mrb[0].mxu0 %v3038
    %v4338 = vpop.f32.mrb[0].mxu0
    %v4339 = vadd.f32 0.0, %v4338
    %v4340 = vpop.f32.mrb[0].mxu0
    %v4341 = vadd.f32 0.0, %v4340
    %4342 = vmatprep.mubr.f32.mxu0 0.0
    %4343 = vmatmul.mubr.f32.gmra.mrb[0].mxu0 %v3039
    %v4344 = vpop.f32.mrb[0].mxu0
    %v4345 = vadd.f32 0.0, %v4344
    %v4346 = vpop.f32.mrb[0].mxu0
    %v4347 = vadd.f32 0.0, %v4346
    %4348 = vmatprep.mubr.f32.mxu0 0.0
    %4349 = vmatmul.mubr.f32.gmra.mrb[0].mxu0 %v3040
    %v4350 = vpop.f32.mrb[0].mxu0
    %v4351 = vadd.f32 0.0, %v4350
    %v4352 = vpop.f32.mrb[0].mxu0
    %v4353 = vadd.f32 0.0, %v4352
    %4354 = vmatprep.mubr.f32.mxu0 0.0
    %4355 = vmatmul.mubr.f32.gmra.mrb[0].mxu0 %v3041
    %v4356 = vpop.f32.mrb[0].mxu0
    %v4357 = vadd.f32 0.0, %v4356
    %v4358 = vpop.f32.mrb[0].mxu0
    %v4359 = vadd.f32 0.0, %v4358
    %4360 = vmatprep.mubr.f32.mxu0 0.0
    %4361 = vmatmul.mubr.f32.gmra.mrb[0].mxu0 %v3042
    %v4362 = vpop.f32.mrb[0].mxu0
    %v4363 = vadd.f32 0.0, %v4362
    %v4364 = vpop.f32.mrb[0].mxu0
    %v4365 = vadd.f32 0.0, %v4364
    %4366 = vmatprep.mubr.f32.mxu0 0.0
    %4367 = vmatmul.mubr.f32.gmra.mrb[0].mxu0 %v3043
    %v4368 = vpop.f32.mrb[0].mxu0
    %v4369 = vadd.f32 0.0, %v4368
    %v4370 = vpop.f32.mrb[0].mxu0
    %v4371 = vadd.f32 0.0, %v4370
    %4372 = vmatprep.mubr.f32.mxu0 0.0
    %4373 = vmatmul.mubr.f32.gmra.mrb[0].mxu0 %v3044
    %v4374 = vpop.f32.mrb[0].mxu0
    %v4375 = vadd.f32 0.0, %v4374
    %v4376 = vpop.f32.mrb[0].mxu0
    %v4377 = vadd.f32 0.0, %v4376
    %4378 = vmatprep.mubr.f32.mxu0 0.0
    %4379 = vmatmul.mubr.f32.gmra.mrb[0].mxu0 %v3045
    %v4380 = vpop.f32.mrb[0].mxu0
    %v4381 = vadd.f32 0.0, %v4380
    %v4382 = vpop.f32.mrb[0].mxu0
    %v4383 = vadd.f32 0.0, %v4382
    %4384 = vmatprep.mubr.f32.mxu0 0.0
    %4385 = vmatmul.mubr.f32.gmra.mrb[0].mxu0 %v3046
    %v4386 = vpop.f32.mrb[0].mxu0
    %v4387 = vadd.f32 0.0, %v4386
    %v4388 = vpop.f32.mrb[0].mxu0
    %v4389 = vadd.f32 0.0, %v4388
    %4390 = vmatprep.mubr.f32.mxu0 0.0
    %4391 = vmatmul.mubr.f32.gmra.mrb[0].mxu0 %v3047
    %v4392 = vpop.f32.mrb[0].mxu0
    %v4393 = vadd.f32 0.0, %v4392
    %v4394 = vpop.f32.mrb[0].mxu0
    %v4395 = vadd.f32 0.0, %v4394
    %4396 = vmatprep.mubr.f32.mxu0 0.0
    %4397 = vmatmul.mubr.f32.gmra.mrb[0].mxu0 %v3048
    %v4398 = vpop.f32.mrb[0].mxu0
    %v4399 = vadd.f32 0.0, %v4398
    %v4400 = vpop.f32.mrb[0].mxu0
    %v4401 = vadd.f32 0.0, %v4400
    %4402 = vmatprep.mubr.f32.mxu0 0.0
    %4403 = vmatmul.mubr.f32.gmra.mrb[0].mxu0 %v3049
    %v4404 = vpop.f32.mrb[0].mxu0
    %v4405 = vadd.f32 0.0, %v4404
    %v4406 = vpop.f32.mrb[0].mxu0
    %v4407 = vadd.f32 0.0, %v4406
    %4408 = vmatprep.mubr.f32.mxu0 0.0
    %4409 = vmatmul.mubr.f32.gmra.mrb[0].mxu0 %v3050
    %v4410 = vpop.f32.mrb[0].mxu0
    %v4411 = vadd.f32 0.0, %v4410
    %v4412 = vpop.f32.mrb[0].mxu0
    %v4413 = vadd.f32 0.0, %v4412
    %4414 = vmatprep.mubr.f32.mxu0 0.0
    %4415 = vmatmul.mubr.f32.gmra.mrb[0].mxu0 %v3051
    %v4416 = vpop.f32.mrb[0].mxu0
    %v4417 = vadd.f32 0.0, %v4416
    %v4418 = vpop.f32.mrb[0].mxu0
    %v4419 = vadd.f32 0.0, %v4418
    %4420 = vmatprep.mubr.f32.mxu0 0.0
    %4421 = vmatmul.mubr.f32.gmra.mrb[0].mxu0 %v3052
    %v4422 = vpop.f32.mrb[0].mxu0
    %v4423 = vadd.f32 0.0, %v4422
    %v4424 = vpop.f32.mrb[0].mxu0
    %v4425 = vadd.f32 0.0, %v4424
    %4426 = vmatprep.mubr.f32.mxu0 0.0
    %4427 = vmatmul.mubr.f32.gmra.mrb[0].mxu0 %v3053
    %v4428 = vpop.f32.mrb[0].mxu0
    %v4429 = vadd.f32 0.0, %v4428
    %v4430 = vpop.f32.mrb[0].mxu0
    %v4431 = vadd.f32 0.0, %v4430
    %4432 = vmatprep.mubr.f32.mxu0 0.0
    %4433 = vmatmul.mubr.f32.gmra.mrb[0].mxu0 %v3054
    %v4434 = vpop.f32.mrb[0].mxu0
    %v4435 = vadd.f32 0.0, %v4434
    %v4436 = vpop.f32.mrb[0].mxu0
    %v4437 = vadd.f32 0.0, %v4436
    %4438 = vmatprep.mubr.f32.mxu0 0.0
    %4439 = vmatmul.mubr.f32.gmra.mrb[0].mxu0 %v3055
    %v4440 = vpop.f32.mrb[0].mxu0
    %v4441 = vadd.f32 0.0, %v4440
    %v4442 = vpop.f32.mrb[0].mxu0
    %v4443 = vadd.f32 0.0, %v4442
    %4444 = vmatprep.mubr.f32.mxu0 0.0
    %4445 = vmatmul.mubr.f32.gmra.mrb[0].mxu0 %v3056
    %v4446 = vpop.f32.mrb[0].mxu0
    %v4447 = vadd.f32 0.0, %v4446
    %v4448 = vpop.f32.mrb[0].mxu0
    %v4449 = vadd.f32 0.0, %v4448
    %4450 = vmatprep.mubr.f32.mxu0 0.0
    %4451 = vmatmul.mubr.f32.gmra.mrb[0].mxu0 %v3057
    %v4452 = vpop.f32.mrb[0].mxu0
    %v4453 = vadd.f32 0.0, %v4452
    %v4454 = vpop.f32.mrb[0].mxu0
    %v4455 = vadd.f32 0.0, %v4454
    %4456 = vdwg.mxu0
    %4457 = vmatprep.subr.mxu0 %v4136
    %4458 = vmatpush1.msra.mxu0 %v4135
    %4459 = vmatprep.subr.mxu0 %v4138
    %4460 = vmatpush1.msra.mxu0 %v4137
    %4461 = vmatprep.subr.mxu0 %v4140
    %4462 = vmatpush1.msra.mxu0 %v4139
    %4463 = vmatprep.subr.mxu0 %v4142
    %4464 = vmatpush1.msra.mxu0 %v4141
    %4465 = vmatprep.subr.mxu0 %v4144
    %4466 = vmatpush1.msra.mxu0 %v4143
    %4467 = vmatprep.subr.mxu0 %v4146
    %4468 = vmatpush1.msra.mxu0 %v4145
    %4469 = vmatprep.subr.mxu0 %v4148
    %4470 = vmatpush1.msra.mxu0 %v4147
    %4471 = vmatprep.subr.mxu0 %v4150
    %4472 = vmatpush1.msra.mxu0 %v4149
    %4473 = vmatprep.subr.mxu0 %v4152
    %4474 = vmatpush1.msra.mxu0 %v4151
    %4475 = vmatprep.subr.mxu0 %v4154
    %4476 = vmatpush1.msra.mxu0 %v4153
    %4477 = vmatprep.subr.mxu0 %v4156
    %4478 = vmatpush1.msra.mxu0 %v4155
    %4479 = vmatprep.subr.mxu0 %v4158
    %4480 = vmatpush1.msra.mxu0 %v4157
    %4481 = vmatprep.subr.mxu0 %v4160
    %4482 = vmatpush1.msra.mxu0 %v4159
    %4483 = vmatprep.subr.mxu0 %v4162
    %4484 = vmatpush1.msra.mxu0 %v4161
    %4485 = vmatprep.subr.mxu0 %v4164
    %4486 = vmatpush1.msra.mxu0 %v4163
    %4487 = vmatprep.subr.mxu0 %v4166
    %4488 = vmatpush1.msra.mxu0 %v4165
    %4489 = vmatprep.subr.mxu0 0.0
    %4490 = vmatpush1.msra.mxu0 0.0
    %4491 = vmatprep.subr.mxu0 0.0
    %4492 = vmatpush1.msra.mxu0 0.0
    %4493 = vmatprep.subr.mxu0 0.0
    %4494 = vmatpush1.msra.mxu0 0.0
    %4495 = vmatprep.subr.mxu0 0.0
    %4496 = vmatpush1.msra.mxu0 0.0
    %4497 = vmatprep.subr.mxu0 0.0
    %4498 = vmatpush1.msra.mxu0 0.0
    %4499 = vmatprep.subr.mxu0 0.0
    %4500 = vmatpush1.msra.mxu0 0.0
    %4501 = vmatprep.subr.mxu0 0.0
    %4502 = vmatpush1.msra.mxu0 0.0
    %4503 = vmatprep.subr.mxu0 0.0
    %4504 = vmatpush1.msra.mxu0 0.0
    %4505 = vmatprep.subr.mxu0 0.0
    %4506 = vmatpush1.msra.mxu0 0.0
    %4507 = vmatprep.subr.mxu0 0.0
    %4508 = vmatpush1.msra.mxu0 0.0
    %4509 = vmatprep.subr.mxu0 0.0
    %4510 = vmatpush1.msra.mxu0 0.0
    %4511 = vmatprep.subr.mxu0 0.0
    %4512 = vmatpush1.msra.mxu0 0.0
    %4513 = vmatprep.subr.mxu0 0.0
    %4514 = vmatpush1.msra.mxu0 0.0
    %4515 = vmatprep.subr.mxu0 0.0
    %4516 = vmatpush1.msra.mxu0 0.0
    %4517 = vmatprep.subr.mxu0 0.0
    %4518 = vmatpush1.msra.mxu0 0.0
    %4519 = vmatprep.subr.mxu0 0.0
    %4520 = vmatpush1.msra.mxu0 0.0
    %4521 = vmatprep.mubr.f32.mxu0 0.0
    %4522 = vmatmul.mubr.f32.gmra.mrb[0].mxu0 %v3122
    %v4523 = vpop.f32.mrb[0].mxu0
    %v4524 = vadd.f32 %v4267, %v4523
    %v4525 = vpop.f32.mrb[0].mxu0
    %v4526 = vadd.f32 %v4269, %v4525
    %4527 = vmatprep.mubr.f32.mxu0 0.0
    %4528 = vmatmul.mubr.f32.gmra.mrb[0].mxu0 %v3123
    %v4529 = vpop.f32.mrb[0].mxu0
    %v4530 = vadd.f32 %v4273, %v4529
    %v4531 = vpop.f32.mrb[0].mxu0
    %v4532 = vadd.f32 %v4275, %v4531
    %4533 = vmatprep.mubr.f32.mxu0 0.0
    %4534 = vmatmul.mubr.f32.gmra.mrb[0].mxu0 %v3124
    %v4535 = vpop.f32.mrb[0].mxu0
    %v4536 = vadd.f32 %v4279, %v4535
    %v4537 = vpop.f32.mrb[0].mxu0
    %v4538 = vadd.f32 %v4281, %v4537
    %4539 = vmatprep.mubr.f32.mxu0 0.0
    %4540 = vmatmul.mubr.f32.gmra.mrb[0].mxu0 %v3125
    %v4541 = vpop.f32.mrb[0].mxu0
    %v4542 = vadd.f32 %v4285, %v4541
    %v4543 = vpop.f32.mrb[0].mxu0
    %v4544 = vadd.f32 %v4287, %v4543
    %4545 = vmatprep.mubr.f32.mxu0 0.0
    %4546 = vmatmul.mubr.f32.gmra.mrb[0].mxu0 %v3126
    %v4547 = vpop.f32.mrb[0].mxu0
    %v4548 = vadd.f32 %v4291, %v4547
    %v4549 = vpop.f32.mrb[0].mxu0
    %v4550 = vadd.f32 %v4293, %v4549
    %4551 = vmatprep.mubr.f32.mxu0 0.0
    %4552 = vmatmul.mubr.f32.gmra.mrb[0].mxu0 %v3127
    %v4553 = vpop.f32.mrb[0].mxu0
    %v4554 = vadd.f32 %v4297, %v4553
    %v4555 = vpop.f32.mrb[0].mxu0
    %v4556 = vadd.f32 %v4299, %v4555
    %4557 = vmatprep.mubr.f32.mxu0 0.0
    %4558 = vmatmul.mubr.f32.gmra.mrb[0].mxu0 %v3128
    %v4559 = vpop.f32.mrb[0].mxu0
    %v4560 = vadd.f32 %v4303, %v4559
    %v4561 = vpop.f32.mrb[0].mxu0
    %v4562 = vadd.f32 %v4305, %v4561
    %4563 = vmatprep.mubr.f32.mxu0 0.0
    %4564 = vmatmul.mubr.f32.gmra.mrb[0].mxu0 %v3129
    %v4565 = vpop.f32.mrb[0].mxu0
    %v4566 = vadd.f32 %v4309, %v4565
    %v4567 = vpop.f32.mrb[0].mxu0
    %v4568 = vadd.f32 %v4311, %v4567
    %4569 = vmatprep.mubr.f32.mxu0 0.0
    %4570 = vmatmul.mubr.f32.gmra.mrb[0].mxu0 %v3130
    %v4571 = vpop.f32.mrb[0].mxu0
    %v4572 = vadd.f32 %v4315, %v4571
    %v4573 = vpop.f32.mrb[0].mxu0
    %v4574 = vadd.f32 %v4317, %v4573
    %4575 = vmatprep.mubr.f32.mxu0 0.0
    %4576 = vmatmul.mubr.f32.gmra.mrb[0].mxu0 %v3131
    %v4577 = vpop.f32.mrb[0].mxu0
    %v4578 = vadd.f32 %v4321, %v4577
    %v4579 = vpop.f32.mrb[0].mxu0
    %v4580 = vadd.f32 %v4323, %v4579
    %4581 = vmatprep.mubr.f32.mxu0 0.0
    %4582 = vmatmul.mubr.f32.gmra.mrb[0].mxu0 %v3132
    %v4583 = vpop.f32.mrb[0].mxu0
    %v4584 = vadd.f32 %v4327, %v4583
    %v4585 = vpop.f32.mrb[0].mxu0
    %v4586 = vadd.f32 %v4329, %v4585
    %4587 = vmatprep.mubr.f32.mxu0 0.0
    %4588 = vmatmul.mubr.f32.gmra.mrb[0].mxu0 %v3133
    %v4589 = vpop.f32.mrb[0].mxu0
    %v4590 = vadd.f32 %v4333, %v4589
    %v4591 = vpop.f32.mrb[0].mxu0
    %v4592 = vadd.f32 %v4335, %v4591
    %4593 = vmatprep.mubr.f32.mxu0 0.0
    %4594 = vmatmul.mubr.f32.gmra.mrb[0].mxu0 %v3134
    %v4595 = vpop.f32.mrb[0].mxu0
    %v4596 = vadd.f32 %v4339, %v4595
    %v4597 = vpop.f32.mrb[0].mxu0
    %v4598 = vadd.f32 %v4341, %v4597
    %4599 = vmatprep.mubr.f32.mxu0 0.0
    %4600 = vmatmul.mubr.f32.gmra.mrb[0].mxu0 %v3135
    %v4601 = vpop.f32.mrb[0].mxu0
    %v4602 = vadd.f32 %v4345, %v4601
    %v4603 = vpop.f32.mrb[0].mxu0
    %v4604 = vadd.f32 %v4347, %v4603
    %4605 = vmatprep.mubr.f32.mxu0 0.0
    %4606 = vmatmul.mubr.f32.gmra.mrb[0].mxu0 %v3136
    %v4607 = vpop.f32.mrb[0].mxu0
    %v4608 = vadd.f32 %v4351, %v4607
    %v4609 = vpop.f32.mrb[0].mxu0
    %v4610 = vadd.f32 %v4353, %v4609
    %4611 = vmatprep.mubr.f32.mxu0 0.0
    %4612 = vmatmul.mubr.f32.gmra.mrb[0].mxu0 %v3137
    %v4613 = vpop.f32.mrb[0].mxu0
    %v4614 = vadd.f32 %v4357, %v4613
    %v4615 = vpop.f32.mrb[0].mxu0
    %v4616 = vadd.f32 %v4359, %v4615
    %4617 = vmatprep.mubr.f32.mxu0 0.0
    %4618 = vmatmul.mubr.f32.gmra.mrb[0].mxu0 %v3138
    %v4619 = vpop.f32.mrb[0].mxu0
    %v4620 = vadd.f32 %v4363, %v4619
    %v4621 = vpop.f32.mrb[0].mxu0
    %v4622 = vadd.f32 %v4365, %v4621
    %4623 = vmatprep.mubr.f32.mxu0 0.0
    %4624 = vmatmul.mubr.f32.gmra.mrb[0].mxu0 %v3139
    %v4625 = vpop.f32.mrb[0].mxu0
    %v4626 = vadd.f32 %v4369, %v4625
    %v4627 = vpop.f32.mrb[0].mxu0
    %v4628 = vadd.f32 %v4371, %v4627
    %4629 = vmatprep.mubr.f32.mxu0 0.0
    %4630 = vmatmul.mubr.f32.gmra.mrb[0].mxu0 %v3140
    %v4631 = vpop.f32.mrb[0].mxu0
    %v4632 = vadd.f32 %v4375, %v4631
    %v4633 = vpop.f32.mrb[0].mxu0
    %v4634 = vadd.f32 %v4377, %v4633
    %4635 = vmatprep.mubr.f32.mxu0 0.0
    %4636 = vmatmul.mubr.f32.gmra.mrb[0].mxu0 %v3141
    %v4637 = vpop.f32.mrb[0].mxu0
    %v4638 = vadd.f32 %v4381, %v4637
    %v4639 = vpop.f32.mrb[0].mxu0
    %v4640 = vadd.f32 %v4383, %v4639
    %4641 = vmatprep.mubr.f32.mxu0 0.0
    %4642 = vmatmul.mubr.f32.gmra.mrb[0].mxu0 %v3142
    %v4643 = vpop.f32.mrb[0].mxu0
    %v4644 = vadd.f32 %v4387, %v4643
    %v4645 = vpop.f32.mrb[0].mxu0
    %v4646 = vadd.f32 %v4389, %v4645
    %4647 = vmatprep.mubr.f32.mxu0 0.0
    %4648 = vmatmul.mubr.f32.gmra.mrb[0].mxu0 %v3143
    %v4649 = vpop.f32.mrb[0].mxu0
    %v4650 = vadd.f32 %v4393, %v4649
    %v4651 = vpop.f32.mrb[0].mxu0
    %v4652 = vadd.f32 %v4395, %v4651
    %4653 = vmatprep.mubr.f32.mxu0 0.0
    %4654 = vmatmul.mubr.f32.gmra.mrb[0].mxu0 %v3144
    %v4655 = vpop.f32.mrb[0].mxu0
    %v4656 = vadd.f32 %v4399, %v4655
    %v4657 = vpop.f32.mrb[0].mxu0
    %v4658 = vadd.f32 %v4401, %v4657
    %4659 = vmatprep.mubr.f32.mxu0 0.0
    %4660 = vmatmul.mubr.f32.gmra.mrb[0].mxu0 %v3145
    %v4661 = vpop.f32.mrb[0].mxu0
    %v4662 = vadd.f32 %v4405, %v4661
    %v4663 = vpop.f32.mrb[0].mxu0
    %v4664 = vadd.f32 %v4407, %v4663
    %4665 = vmatprep.mubr.f32.mxu0 0.0
    %4666 = vmatmul.mubr.f32.gmra.mrb[0].mxu0 %v3146
    %v4667 = vpop.f32.mrb[0].mxu0
    %v4668 = vadd.f32 %v4411, %v4667
    %v4669 = vpop.f32.mrb[0].mxu0
    %v4670 = vadd.f32 %v4413, %v4669
    %4671 = vmatprep.mubr.f32.mxu0 0.0
    %4672 = vmatmul.mubr.f32.gmra.mrb[0].mxu0 %v3147
    %v4673 = vpop.f32.mrb[0].mxu0
    %v4674 = vadd.f32 %v4417, %v4673
    %v4675 = vpop.f32.mrb[0].mxu0
    %v4676 = vadd.f32 %v4419, %v4675
    %4677 = vmatprep.mubr.f32.mxu0 0.0
    %4678 = vmatmul.mubr.f32.gmra.mrb[0].mxu0 %v3148
    %v4679 = vpop.f32.mrb[0].mxu0
    %v4680 = vadd.f32 %v4423, %v4679
    %v4681 = vpop.f32.mrb[0].mxu0
    %v4682 = vadd.f32 %v4425, %v4681
    %4683 = vmatprep.mubr.f32.mxu0 0.0
    %4684 = vmatmul.mubr.f32.gmra.mrb[0].mxu0 %v3149
    %v4685 = vpop.f32.mrb[0].mxu0
    %v4686 = vadd.f32 %v4429, %v4685
    %v4687 = vpop.f32.mrb[0].mxu0
    %v4688 = vadd.f32 %v4431, %v4687
    %4689 = vmatprep.mubr.f32.mxu0 0.0
    %4690 = vmatmul.mubr.f32.gmra.mrb[0].mxu0 %v3150
    %v4691 = vpop.f32.mrb[0].mxu0
    %v4692 = vadd.f32 %v4435, %v4691
    %v4693 = vpop.f32.mrb[0].mxu0
    %v4694 = vadd.f32 %v4437, %v4693
    %4695 = vmatprep.mubr.f32.mxu0 0.0
    %4696 = vmatmul.mubr.f32.gmra.mrb[0].mxu0 %v3151
    %v4697 = vpop.f32.mrb[0].mxu0
    %v4698 = vadd.f32 %v4441, %v4697
    %v4699 = vpop.f32.mrb[0].mxu0
    %v4700 = vadd.f32 %v4443, %v4699
    %4701 = vmatprep.mubr.f32.mxu0 0.0
    %4702 = vmatmul.mubr.f32.gmra.mrb[0].mxu0 %v3152
    %v4703 = vpop.f32.mrb[0].mxu0
    %v4704 = vadd.f32 %v4447, %v4703
    %v4705 = vpop.f32.mrb[0].mxu0
    %v4706 = vadd.f32 %v4449, %v4705
    %4707 = vmatprep.mubr.f32.mxu0 0.0
    %4708 = vmatmul.mubr.f32.gmra.mrb[0].mxu0 %v3153
    %v4709 = vpop.f32.mrb[0].mxu0
    %v4710 = vadd.f32 %v4453, %v4709
    %v4711 = vpop.f32.mrb[0].mxu0
    %v4712 = vadd.f32 %v4455, %v4711
    %4713 = vdwg.mxu0
    %s4714 = scalar_lea.vmem [#allocation5], 512
    %v4715 = vld [vmem:[%s4714] sm:$0xff]
    %v4716 = vld [vmem:[%s4714 + $0x8] sm:$0xff]
    %v4717 = vld [vmem:[%s4714 + $0x10] sm:$0xff]
    %v4718 = vld [vmem:[%s4714 + $0x18] sm:$0xff]
    %v4719 = vld [vmem:[%s4714 + $0x20] sm:$0xff]
    %v4720 = vld [vmem:[%s4714 + $0x28] sm:$0xff]
    %v4721 = vld [vmem:[%s4714 + $0x30] sm:$0xff]
    %v4722 = vld [vmem:[%s4714 + $0x38] sm:$0xff]
    %v4723 = vld [vmem:[%s4714 + $0x40] sm:$0xff]
    %v4724 = vld [vmem:[%s4714 + $0x48] sm:$0xff]
    %v4725 = vld [vmem:[%s4714 + $0x50] sm:$0xff]
    %v4726 = vld [vmem:[%s4714 + $0x58] sm:$0xff]
    %v4727 = vld [vmem:[%s4714 + $0x60] sm:$0xff]
    %v4728 = vld [vmem:[%s4714 + $0x68] sm:$0xff]
    %v4729 = vld [vmem:[%s4714 + $0x70] sm:$0xff]
    %v4730 = vld [vmem:[%s4714 + $0x78] sm:$0xff]
    %v4731 = vld [vmem:[%s4714 + $0x80] sm:$0xff]
    %v4732 = vld [vmem:[%s4714 + $0x88] sm:$0xff]
    %v4733 = vld [vmem:[%s4714 + $0x90] sm:$0xff]
    %v4734 = vld [vmem:[%s4714 + $0x98] sm:$0xff]
    %v4735 = vld [vmem:[%s4714 + $0xa0] sm:$0xff]
    %v4736 = vld [vmem:[%s4714 + $0xa8] sm:$0xff]
    %v4737 = vld [vmem:[%s4714 + $0xb0] sm:$0xff]
    %v4738 = vld [vmem:[%s4714 + $0xb8] sm:$0xff]
    %v4739 = vld [vmem:[%s4714 + $0xc0] sm:$0xff]
    %v4740 = vld [vmem:[%s4714 + $0xc8] sm:$0xff]
    %v4741 = vld [vmem:[%s4714 + $0xd0] sm:$0xff]
    %v4742 = vld [vmem:[%s4714 + $0xd8] sm:$0xff]
    %v4743 = vld [vmem:[%s4714 + $0xe0] sm:$0xff]
    %v4744 = vld [vmem:[%s4714 + $0xe8] sm:$0xff]
    %v4745 = vld [vmem:[%s4714 + $0xf0] sm:$0xff]
    %v4746 = vld [vmem:[%s4714 + $0xf8] sm:$0xff]
    %4747 = vmatprep.subr.mxu0 %v4716
    %4748 = vmatpush1.msra.mxu0 %v4715
    %4749 = vmatprep.subr.mxu0 %v4718
    %4750 = vmatpush1.msra.mxu0 %v4717
    %4751 = vmatprep.subr.mxu0 %v4720
    %4752 = vmatpush1.msra.mxu0 %v4719
    %4753 = vmatprep.subr.mxu0 %v4722
    %4754 = vmatpush1.msra.mxu0 %v4721
    %4755 = vmatprep.subr.mxu0 %v4724
    %4756 = vmatpush1.msra.mxu0 %v4723
    %4757 = vmatprep.subr.mxu0 %v4726
    %4758 = vmatpush1.msra.mxu0 %v4725
    %4759 = vmatprep.subr.mxu0 %v4728
    %4760 = vmatpush1.msra.mxu0 %v4727
    %4761 = vmatprep.subr.mxu0 %v4730
    %4762 = vmatpush1.msra.mxu0 %v4729
    %4763 = vmatprep.subr.mxu0 %v4732
    %4764 = vmatpush1.msra.mxu0 %v4731
    %4765 = vmatprep.subr.mxu0 %v4734
    %4766 = vmatpush1.msra.mxu0 %v4733
    %4767 = vmatprep.subr.mxu0 %v4736
    %4768 = vmatpush1.msra.mxu0 %v4735
    %4769 = vmatprep.subr.mxu0 %v4738
    %4770 = vmatpush1.msra.mxu0 %v4737
    %4771 = vmatprep.subr.mxu0 %v4740
    %4772 = vmatpush1.msra.mxu0 %v4739
    %4773 = vmatprep.subr.mxu0 %v4742
    %4774 = vmatpush1.msra.mxu0 %v4741
    %4775 = vmatprep.subr.mxu0 %v4744
    %4776 = vmatpush1.msra.mxu0 %v4743
    %4777 = vmatprep.subr.mxu0 %v4746
    %4778 = vmatpush1.msra.mxu0 %v4745
    %4779 = vmatprep.subr.mxu0 0.0
    %4780 = vmatpush1.msra.mxu0 0.0
    %4781 = vmatprep.subr.mxu0 0.0
    %4782 = vmatpush1.msra.mxu0 0.0
    %4783 = vmatprep.subr.mxu0 0.0
    %4784 = vmatpush1.msra.mxu0 0.0
    %4785 = vmatprep.subr.mxu0 0.0
    %4786 = vmatpush1.msra.mxu0 0.0
    %4787 = vmatprep.subr.mxu0 0.0
    %4788 = vmatpush1.msra.mxu0 0.0
    %4789 = vmatprep.subr.mxu0 0.0
    %4790 = vmatpush1.msra.mxu0 0.0
    %4791 = vmatprep.subr.mxu0 0.0
    %4792 = vmatpush1.msra.mxu0 0.0
    %4793 = vmatprep.subr.mxu0 0.0
    %4794 = vmatpush1.msra.mxu0 0.0
    %4795 = vmatprep.subr.mxu0 0.0
    %4796 = vmatpush1.msra.mxu0 0.0
    %4797 = vmatprep.subr.mxu0 0.0
    %4798 = vmatpush1.msra.mxu0 0.0
    %4799 = vmatprep.subr.mxu0 0.0
    %4800 = vmatpush1.msra.mxu0 0.0
    %4801 = vmatprep.subr.mxu0 0.0
    %4802 = vmatpush1.msra.mxu0 0.0
    %4803 = vmatprep.subr.mxu0 0.0
    %4804 = vmatpush1.msra.mxu0 0.0
    %4805 = vmatprep.subr.mxu0 0.0
    %4806 = vmatpush1.msra.mxu0 0.0
    %4807 = vmatprep.subr.mxu0 0.0
    %4808 = vmatpush1.msra.mxu0 0.0
    %4809 = vmatprep.subr.mxu0 0.0
    %4810 = vmatpush1.msra.mxu0 0.0
    %4811 = vmatprep.mubr.f32.mxu0 0.0
    %4812 = vmatmul.mubr.f32.gmra.mrb[0].mxu0 %v3218
    %v4813 = vpop.f32.mrb[0].mxu0
    %v4814 = vadd.f32 0.0, %v4813
    %v4815 = vpop.f32.mrb[0].mxu0
    %v4816 = vadd.f32 0.0, %v4815
    %4817 = vmatprep.mubr.f32.mxu0 0.0
    %4818 = vmatmul.mubr.f32.gmra.mrb[0].mxu0 %v3219
    %v4819 = vpop.f32.mrb[0].mxu0
    %v4820 = vadd.f32 0.0, %v4819
    %v4821 = vpop.f32.mrb[0].mxu0
    %v4822 = vadd.f32 0.0, %v4821
    %4823 = vmatprep.mubr.f32.mxu0 0.0
    %4824 = vmatmul.mubr.f32.gmra.mrb[0].mxu0 %v3220
    %v4825 = vpop.f32.mrb[0].mxu0
    %v4826 = vadd.f32 0.0, %v4825
    %v4827 = vpop.f32.mrb[0].mxu0
    %v4828 = vadd.f32 0.0, %v4827
    %4829 = vmatprep.mubr.f32.mxu0 0.0
    %4830 = vmatmul.mubr.f32.gmra.mrb[0].mxu0 %v3221
    %v4831 = vpop.f32.mrb[0].mxu0
    %v4832 = vadd.f32 0.0, %v4831
    %v4833 = vpop.f32.mrb[0].mxu0
    %v4834 = vadd.f32 0.0, %v4833
    %4835 = vmatprep.mubr.f32.mxu0 0.0
    %4836 = vmatmul.mubr.f32.gmra.mrb[0].mxu0 %v3222
    %v4837 = vpop.f32.mrb[0].mxu0
    %v4838 = vadd.f32 0.0, %v4837
    %v4839 = vpop.f32.mrb[0].mxu0
    %v4840 = vadd.f32 0.0, %v4839
    %4841 = vmatprep.mubr.f32.mxu0 0.0
    %4842 = vmatmul.mubr.f32.gmra.mrb[0].mxu0 %v3223
    %v4843 = vpop.f32.mrb[0].mxu0
    %v4844 = vadd.f32 0.0, %v4843
    %v4845 = vpop.f32.mrb[0].mxu0
    %v4846 = vadd.f32 0.0, %v4845
    %4847 = vmatprep.mubr.f32.mxu0 0.0
    %4848 = vmatmul.mubr.f32.gmra.mrb[0].mxu0 %v3224
    %v4849 = vpop.f32.mrb[0].mxu0
    %v4850 = vadd.f32 0.0, %v4849
    %v4851 = vpop.f32.mrb[0].mxu0
    %v4852 = vadd.f32 0.0, %v4851
    %4853 = vmatprep.mubr.f32.mxu0 0.0
    %4854 = vmatmul.mubr.f32.gmra.mrb[0].mxu0 %v3225
    %v4855 = vpop.f32.mrb[0].mxu0
    %v4856 = vadd.f32 0.0, %v4855
    %v4857 = vpop.f32.mrb[0].mxu0
    %v4858 = vadd.f32 0.0, %v4857
    %4859 = vmatprep.mubr.f32.mxu0 0.0
    %4860 = vmatmul.mubr.f32.gmra.mrb[0].mxu0 %v3226
    %v4861 = vpop.f32.mrb[0].mxu0
    %v4862 = vadd.f32 0.0, %v4861
    %v4863 = vpop.f32.mrb[0].mxu0
    %v4864 = vadd.f32 0.0, %v4863
    %4865 = vmatprep.mubr.f32.mxu0 0.0
    %4866 = vmatmul.mubr.f32.gmra.mrb[0].mxu0 %v3227
    %v4867 = vpop.f32.mrb[0].mxu0
    %v4868 = vadd.f32 0.0, %v4867
    %v4869 = vpop.f32.mrb[0].mxu0
    %v4870 = vadd.f32 0.0, %v4869
    %4871 = vmatprep.mubr.f32.mxu0 0.0
    %4872 = vmatmul.mubr.f32.gmra.mrb[0].mxu0 %v3228
    %v4873 = vpop.f32.mrb[0].mxu0
    %v4874 = vadd.f32 0.0, %v4873
    %v4875 = vpop.f32.mrb[0].mxu0
    %v4876 = vadd.f32 0.0, %v4875
    %4877 = vmatprep.mubr.f32.mxu0 0.0
    %4878 = vmatmul.mubr.f32.gmra.mrb[0].mxu0 %v3229
    %v4879 = vpop.f32.mrb[0].mxu0
    %v4880 = vadd.f32 0.0, %v4879
    %v4881 = vpop.f32.mrb[0].mxu0
    %v4882 = vadd.f32 0.0, %v4881
    %4883 = vmatprep.mubr.f32.mxu0 0.0
    %4884 = vmatmul.mubr.f32.gmra.mrb[0].mxu0 %v3230
    %v4885 = vpop.f32.mrb[0].mxu0
    %v4886 = vadd.f32 0.0, %v4885
    %v4887 = vpop.f32.mrb[0].mxu0
    %v4888 = vadd.f32 0.0, %v4887
    %4889 = vmatprep.mubr.f32.mxu0 0.0
    %4890 = vmatmul.mubr.f32.gmra.mrb[0].mxu0 %v3231
    %v4891 = vpop.f32.mrb[0].mxu0
    %v4892 = vadd.f32 0.0, %v4891
    %v4893 = vpop.f32.mrb[0].mxu0
    %v4894 = vadd.f32 0.0, %v4893
    %4895 = vmatprep.mubr.f32.mxu0 0.0
    %4896 = vmatmul.mubr.f32.gmra.mrb[0].mxu0 %v3232
    %v4897 = vpop.f32.mrb[0].mxu0
    %v4898 = vadd.f32 0.0, %v4897
    %v4899 = vpop.f32.mrb[0].mxu0
    %v4900 = vadd.f32 0.0, %v4899
    %4901 = vmatprep.mubr.f32.mxu0 0.0
    %4902 = vmatmul.mubr.f32.gmra.mrb[0].mxu0 %v3233
    %v4903 = vpop.f32.mrb[0].mxu0
    %v4904 = vadd.f32 0.0, %v4903
    %v4905 = vpop.f32.mrb[0].mxu0
    %v4906 = vadd.f32 0.0, %v4905
    %4907 = vmatprep.mubr.f32.mxu0 0.0
    %4908 = vmatmul.mubr.f32.gmra.mrb[0].mxu0 %v3234
    %v4909 = vpop.f32.mrb[0].mxu0
    %v4910 = vadd.f32 0.0, %v4909
    %v4911 = vpop.f32.mrb[0].mxu0
    %v4912 = vadd.f32 0.0, %v4911
    %4913 = vmatprep.mubr.f32.mxu0 0.0
    %4914 = vmatmul.mubr.f32.gmra.mrb[0].mxu0 %v3235
    %v4915 = vpop.f32.mrb[0].mxu0
    %v4916 = vadd.f32 0.0, %v4915
    %v4917 = vpop.f32.mrb[0].mxu0
    %v4918 = vadd.f32 0.0, %v4917
    %4919 = vmatprep.mubr.f32.mxu0 0.0
    %4920 = vmatmul.mubr.f32.gmra.mrb[0].mxu0 %v3236
    %v4921 = vpop.f32.mrb[0].mxu0
    %v4922 = vadd.f32 0.0, %v4921
    %v4923 = vpop.f32.mrb[0].mxu0
    %v4924 = vadd.f32 0.0, %v4923
    %4925 = vmatprep.mubr.f32.mxu0 0.0
    %4926 = vmatmul.mubr.f32.gmra.mrb[0].mxu0 %v3237
    %v4927 = vpop.f32.mrb[0].mxu0
    %v4928 = vadd.f32 0.0, %v4927
    %v4929 = vpop.f32.mrb[0].mxu0
    %v4930 = vadd.f32 0.0, %v4929
    %4931 = vmatprep.mubr.f32.mxu0 0.0
    %4932 = vmatmul.mubr.f32.gmra.mrb[0].mxu0 %v3238
    %v4933 = vpop.f32.mrb[0].mxu0
    %v4934 = vadd.f32 0.0, %v4933
    %v4935 = vpop.f32.mrb[0].mxu0
    %v4936 = vadd.f32 0.0, %v4935
    %4937 = vmatprep.mubr.f32.mxu0 0.0
    %4938 = vmatmul.mubr.f32.gmra.mrb[0].mxu0 %v3239
    %v4939 = vpop.f32.mrb[0].mxu0
    %v4940 = vadd.f32 0.0, %v4939
    %v4941 = vpop.f32.mrb[0].mxu0
    %v4942 = vadd.f32 0.0, %v4941
    %4943 = vmatprep.mubr.f32.mxu0 0.0
    %4944 = vmatmul.mubr.f32.gmra.mrb[0].mxu0 %v3240
    %v4945 = vpop.f32.mrb[0].mxu0
    %v4946 = vadd.f32 0.0, %v4945
    %v4947 = vpop.f32.mrb[0].mxu0
    %v4948 = vadd.f32 0.0, %v4947
    %4949 = vmatprep.mubr.f32.mxu0 0.0
    %4950 = vmatmul.mubr.f32.gmra.mrb[0].mxu0 %v3241
    %v4951 = vpop.f32.mrb[0].mxu0
    %v4952 = vadd.f32 0.0, %v4951
    %v4953 = vpop.f32.mrb[0].mxu0
    %v4954 = vadd.f32 0.0, %v4953
    %4955 = vmatprep.mubr.f32.mxu0 0.0
    %4956 = vmatmul.mubr.f32.gmra.mrb[0].mxu0 %v3242
    %v4957 = vpop.f32.mrb[0].mxu0
    %v4958 = vadd.f32 0.0, %v4957
    %v4959 = vpop.f32.mrb[0].mxu0
    %v4960 = vadd.f32 0.0, %v4959
    %4961 = vmatprep.mubr.f32.mxu0 0.0
    %4962 = vmatmul.mubr.f32.gmra.mrb[0].mxu0 %v3243
    %v4963 = vpop.f32.mrb[0].mxu0
    %v4964 = vadd.f32 0.0, %v4963
    %v4965 = vpop.f32.mrb[0].mxu0
    %v4966 = vadd.f32 0.0, %v4965
    %4967 = vmatprep.mubr.f32.mxu0 0.0
    %4968 = vmatmul.mubr.f32.gmra.mrb[0].mxu0 %v3244
    %v4969 = vpop.f32.mrb[0].mxu0
    %v4970 = vadd.f32 0.0, %v4969
    %v4971 = vpop.f32.mrb[0].mxu0
    %v4972 = vadd.f32 0.0, %v4971
    %4973 = vmatprep.mubr.f32.mxu0 0.0
    %4974 = vmatmul.mubr.f32.gmra.mrb[0].mxu0 %v3245
    %v4975 = vpop.f32.mrb[0].mxu0
    %v4976 = vadd.f32 0.0, %v4975
    %v4977 = vpop.f32.mrb[0].mxu0
    %v4978 = vadd.f32 0.0, %v4977
    %4979 = vmatprep.mubr.f32.mxu0 0.0
    %4980 = vmatmul.mubr.f32.gmra.mrb[0].mxu0 %v3246
    %v4981 = vpop.f32.mrb[0].mxu0
    %v4982 = vadd.f32 0.0, %v4981
    %v4983 = vpop.f32.mrb[0].mxu0
    %v4984 = vadd.f32 0.0, %v4983
    %4985 = vmatprep.mubr.f32.mxu0 0.0
    %4986 = vmatmul.mubr.f32.gmra.mrb[0].mxu0 %v3247
    %v4987 = vpop.f32.mrb[0].mxu0
    %v4988 = vadd.f32 0.0, %v4987
    %v4989 = vpop.f32.mrb[0].mxu0
    %v4990 = vadd.f32 0.0, %v4989
    %4991 = vmatprep.mubr.f32.mxu0 0.0
    %4992 = vmatmul.mubr.f32.gmra.mrb[0].mxu0 %v3248
    %v4993 = vpop.f32.mrb[0].mxu0
    %v4994 = vadd.f32 0.0, %v4993
    %v4995 = vpop.f32.mrb[0].mxu0
    %v4996 = vadd.f32 0.0, %v4995
    %4997 = vmatprep.mubr.f32.mxu0 0.0
    %4998 = vmatmul.mubr.f32.gmra.mrb[0].mxu0 %v3249
    %v4999 = vpop.f32.mrb[0].mxu0
    %v5000 = vadd.f32 0.0, %v4999
    %v5001 = vpop.f32.mrb[0].mxu0
    %v5002 = vadd.f32 0.0, %v5001
    %5003 = vdwg.mxu0
    %v5004 = vadd.f32 %v4524, %v4814
    %v5005 = vadd.f32 %v4526, %v4816
    %v5006 = vadd.f32 %v4530, %v4820
    %v5007 = vadd.f32 %v4532, %v4822
    %v5008 = vadd.f32 %v4536, %v4826
    %v5009 = vadd.f32 %v4538, %v4828
    %v5010 = vadd.f32 %v4542, %v4832
    %v5011 = vadd.f32 %v4544, %v4834
    %v5012 = vadd.f32 %v4548, %v4838
    %v5013 = vadd.f32 %v4550, %v4840
    %v5014 = vadd.f32 %v4554, %v4844
    %v5015 = vadd.f32 %v4556, %v4846
    %v5016 = vadd.f32 %v4560, %v4850
    %v5017 = vadd.f32 %v4562, %v4852
    %v5018 = vadd.f32 %v4566, %v4856
    %v5019 = vadd.f32 %v4568, %v4858
    %v5020 = vadd.f32 %v4572, %v4862
    %v5021 = vadd.f32 %v4574, %v4864
    %v5022 = vadd.f32 %v4578, %v4868
    %v5023 = vadd.f32 %v4580, %v4870
    %v5024 = vadd.f32 %v4584, %v4874
    %v5025 = vadd.f32 %v4586, %v4876
    %v5026 = vadd.f32 %v4590, %v4880
    %v5027 = vadd.f32 %v4592, %v4882
    %v5028 = vadd.f32 %v4596, %v4886
    %v5029 = vadd.f32 %v4598, %v4888
    %v5030 = vadd.f32 %v4602, %v4892
    %v5031 = vadd.f32 %v4604, %v4894
    %v5032 = vadd.f32 %v4608, %v4898
    %v5033 = vadd.f32 %v4610, %v4900
    %v5034 = vadd.f32 %v4614, %v4904
    %v5035 = vadd.f32 %v4616, %v4906
    %v5036 = vadd.f32 %v4620, %v4910
    %v5037 = vadd.f32 %v4622, %v4912
    %v5038 = vadd.f32 %v4626, %v4916
    %v5039 = vadd.f32 %v4628, %v4918
    %v5040 = vadd.f32 %v4632, %v4922
    %v5041 = vadd.f32 %v4634, %v4924
    %v5042 = vadd.f32 %v4638, %v4928
    %v5043 = vadd.f32 %v4640, %v4930
    %v5044 = vadd.f32 %v4644, %v4934
    %v5045 = vadd.f32 %v4646, %v4936
    %v5046 = vadd.f32 %v4650, %v4940
    %v5047 = vadd.f32 %v4652, %v4942
    %v5048 = vadd.f32 %v4656, %v4946
    %v5049 = vadd.f32 %v4658, %v4948
    %v5050 = vadd.f32 %v4662, %v4952
    %v5051 = vadd.f32 %v4664, %v4954
    %v5052 = vadd.f32 %v4668, %v4958
    %v5053 = vadd.f32 %v4670, %v4960
    %v5054 = vadd.f32 %v4674, %v4964
    %v5055 = vadd.f32 %v4676, %v4966
    %v5056 = vadd.f32 %v4680, %v4970
    %v5057 = vadd.f32 %v4682, %v4972
    %v5058 = vadd.f32 %v4686, %v4976
    %v5059 = vadd.f32 %v4688, %v4978
    %v5060 = vadd.f32 %v4692, %v4982
    %v5061 = vadd.f32 %v4694, %v4984
    %v5062 = vadd.f32 %v4698, %v4988
    %v5063 = vadd.f32 %v4700, %v4990
    %v5064 = vadd.f32 %v4704, %v4994
    %v5065 = vadd.f32 %v4706, %v4996
    %v5066 = vadd.f32 %v4710, %v5000
    %v5067 = vadd.f32 %v4712, %v5002
    %v5068 = vadd.f32 %v4071, %v5004
    %v5069 = vadd.f32 %v4072, %v5005
    %v5070 = vadd.f32 %v4073, %v5006
    %v5071 = vadd.f32 %v4074, %v5007
    %v5072 = vadd.f32 %v4075, %v5008
    %v5073 = vadd.f32 %v4076, %v5009
    %v5074 = vadd.f32 %v4077, %v5010
    %v5075 = vadd.f32 %v4078, %v5011
    %v5076 = vadd.f32 %v4079, %v5012
    %v5077 = vadd.f32 %v4080, %v5013
    %v5078 = vadd.f32 %v4081, %v5014
    %v5079 = vadd.f32 %v4082, %v5015
    %v5080 = vadd.f32 %v4083, %v5016
    %v5081 = vadd.f32 %v4084, %v5017
    %v5082 = vadd.f32 %v4085, %v5018
    %v5083 = vadd.f32 %v4086, %v5019
    %v5084 = vadd.f32 %v4087, %v5020
    %v5085 = vadd.f32 %v4088, %v5021
    %v5086 = vadd.f32 %v4089, %v5022
    %v5087 = vadd.f32 %v4090, %v5023
    %v5088 = vadd.f32 %v4091, %v5024
    %v5089 = vadd.f32 %v4092, %v5025
    %v5090 = vadd.f32 %v4093, %v5026
    %v5091 = vadd.f32 %v4094, %v5027
    %v5092 = vadd.f32 %v4095, %v5028
    %v5093 = vadd.f32 %v4096, %v5029
    %v5094 = vadd.f32 %v4097, %v5030
    %v5095 = vadd.f32 %v4098, %v5031
    %v5096 = vadd.f32 %v4099, %v5032
    %v5097 = vadd.f32 %v4100, %v5033
    %v5098 = vadd.f32 %v4101, %v5034
    %v5099 = vadd.f32 %v4102, %v5035
    %v5100 = vadd.f32 %v4103, %v5036
    %v5101 = vadd.f32 %v4104, %v5037
    %v5102 = vadd.f32 %v4105, %v5038
    %v5103 = vadd.f32 %v4106, %v5039
    %v5104 = vadd.f32 %v4107, %v5040
    %v5105 = vadd.f32 %v4108, %v5041
    %v5106 = vadd.f32 %v4109, %v5042
    %v5107 = vadd.f32 %v4110, %v5043
    %v5108 = vadd.f32 %v4111, %v5044
    %v5109 = vadd.f32 %v4112, %v5045
    %v5110 = vadd.f32 %v4113, %v5046
    %v5111 = vadd.f32 %v4114, %v5047
    %v5112 = vadd.f32 %v4115, %v5048
    %v5113 = vadd.f32 %v4116, %v5049
    %v5114 = vadd.f32 %v4117, %v5050
    %v5115 = vadd.f32 %v4118, %v5051
    %v5116 = vadd.f32 %v4119, %v5052
    %v5117 = vadd.f32 %v4120, %v5053
    %v5118 = vadd.f32 %v4121, %v5054
    %v5119 = vadd.f32 %v4122, %v5055
    %v5120 = vadd.f32 %v4123, %v5056
    %v5121 = vadd.f32 %v4124, %v5057
    %v5122 = vadd.f32 %v4125, %v5058
    %v5123 = vadd.f32 %v4126, %v5059
    %v5124 = vadd.f32 %v4127, %v5060
    %v5125 = vadd.f32 %v4128, %v5061
    %v5126 = vadd.f32 %v4129, %v5062
    %v5127 = vadd.f32 %v4130, %v5063
    %v5128 = vadd.f32 %v4131, %v5064
    %v5129 = vadd.f32 %v4132, %v5065
    %v5130 = vadd.f32 %v4133, %v5066
    %v5131 = vadd.f32 %v4134, %v5067
    %v5132 = vld [vmem:[%s7] sm:$0x3]
    %v5134 = vlaneseq
    %v5135 = vshrl.u32 %v5134, 7
    %v5136 = vsub.s32 0, %v5135
    %v5137 = vrot.slane %v5132, %v5136
    %v5138 = vlaneseq
    %v5139 = vshrl.u32 %v5138, 7
    %v5140 = vsub.s32 1, %v5139
    %v5141 = vrot.slane %v5132, %v5140
    %v5144 = vadd.f32 %v5068, %v5137
    %v5145 = vadd.f32 %v5069, %v5141
    %v5146 = vadd.f32 %v5070, %v5137
    %v5147 = vadd.f32 %v5071, %v5141
    %v5148 = vadd.f32 %v5072, %v5137
    %v5149 = vadd.f32 %v5073, %v5141
    %v5150 = vadd.f32 %v5074, %v5137
    %v5151 = vadd.f32 %v5075, %v5141
    %v5152 = vadd.f32 %v5076, %v5137
    %v5153 = vadd.f32 %v5077, %v5141
    %v5154 = vadd.f32 %v5078, %v5137
    %v5155 = vadd.f32 %v5079, %v5141
    %v5156 = vadd.f32 %v5080, %v5137
    %v5157 = vadd.f32 %v5081, %v5141
    %v5158 = vadd.f32 %v5082, %v5137
    %v5159 = vadd.f32 %v5083, %v5141
    %v5160 = vadd.f32 %v5084, %v5137
    %v5161 = vadd.f32 %v5085, %v5141
    %v5162 = vadd.f32 %v5086, %v5137
    %v5163 = vadd.f32 %v5087, %v5141
    %v5164 = vadd.f32 %v5088, %v5137
    %v5165 = vadd.f32 %v5089, %v5141
    %v5166 = vadd.f32 %v5090, %v5137
    %v5167 = vadd.f32 %v5091, %v5141
    %v5168 = vadd.f32 %v5092, %v5137
    %v5169 = vadd.f32 %v5093, %v5141
    %v5170 = vadd.f32 %v5094, %v5137
    %v5171 = vadd.f32 %v5095, %v5141
    %v5172 = vadd.f32 %v5096, %v5137
    %v5173 = vadd.f32 %v5097, %v5141
    %v5174 = vadd.f32 %v5098, %v5137
    %v5175 = vadd.f32 %v5099, %v5141
    %v5176 = vadd.f32 %v5100, %v5137
    %v5177 = vadd.f32 %v5101, %v5141
    %v5178 = vadd.f32 %v5102, %v5137
    %v5179 = vadd.f32 %v5103, %v5141
    %v5180 = vadd.f32 %v5104, %v5137
    %v5181 = vadd.f32 %v5105, %v5141
    %v5182 = vadd.f32 %v5106, %v5137
    %v5183 = vadd.f32 %v5107, %v5141
    %v5184 = vadd.f32 %v5108, %v5137
    %v5185 = vadd.f32 %v5109, %v5141
    %v5186 = vadd.f32 %v5110, %v5137
    %v5187 = vadd.f32 %v5111, %v5141
    %v5188 = vadd.f32 %v5112, %v5137
    %v5189 = vadd.f32 %v5113, %v5141
    %v5190 = vadd.f32 %v5114, %v5137
    %v5191 = vadd.f32 %v5115, %v5141
    %v5192 = vadd.f32 %v5116, %v5137
    %v5193 = vadd.f32 %v5117, %v5141
    %v5194 = vadd.f32 %v5118, %v5137
    %v5195 = vadd.f32 %v5119, %v5141
    %v5196 = vadd.f32 %v5120, %v5137
    %v5197 = vadd.f32 %v5121, %v5141
    %v5198 = vadd.f32 %v5122, %v5137
    %v5199 = vadd.f32 %v5123, %v5141
    %v5200 = vadd.f32 %v5124, %v5137
    %v5201 = vadd.f32 %v5125, %v5141
    %v5202 = vadd.f32 %v5126, %v5137
    %v5203 = vadd.f32 %v5127, %v5141
    %v5204 = vadd.f32 %v5128, %v5137
    %v5205 = vadd.f32 %v5129, %v5141
    %v5206 = vadd.f32 %v5130, %v5137
    %v5207 = vadd.f32 %v5131, %v5141
    %vm5208 = vcmp.gt.f32.partialorder %v5144, 0.0
    %vm5209 = vcmp.gt.f32.partialorder %v5145, 0.0
    %vm5210 = vcmp.gt.f32.partialorder %v5146, 0.0
    %vm5211 = vcmp.gt.f32.partialorder %v5147, 0.0
    %vm5212 = vcmp.gt.f32.partialorder %v5148, 0.0
    %vm5213 = vcmp.gt.f32.partialorder %v5149, 0.0
    %vm5214 = vcmp.gt.f32.partialorder %v5150, 0.0
    %vm5215 = vcmp.gt.f32.partialorder %v5151, 0.0
    %vm5216 = vcmp.gt.f32.partialorder %v5152, 0.0
    %vm5217 = vcmp.gt.f32.partialorder %v5153, 0.0
    %vm5218 = vcmp.gt.f32.partialorder %v5154, 0.0
    %vm5219 = vcmp.gt.f32.partialorder %v5155, 0.0
    %vm5220 = vcmp.gt.f32.partialorder %v5156, 0.0
    %vm5221 = vcmp.gt.f32.partialorder %v5157, 0.0
    %vm5222 = vcmp.gt.f32.partialorder %v5158, 0.0
    %vm5223 = vcmp.gt.f32.partialorder %v5159, 0.0
    %vm5224 = vcmp.gt.f32.partialorder %v5160, 0.0
    %vm5225 = vcmp.gt.f32.partialorder %v5161, 0.0
    %vm5226 = vcmp.gt.f32.partialorder %v5162, 0.0
    %vm5227 = vcmp.gt.f32.partialorder %v5163, 0.0
    %vm5228 = vcmp.gt.f32.partialorder %v5164, 0.0
    %vm5229 = vcmp.gt.f32.partialorder %v5165, 0.0
    %vm5230 = vcmp.gt.f32.partialorder %v5166, 0.0
    %vm5231 = vcmp.gt.f32.partialorder %v5167, 0.0
    %vm5232 = vcmp.gt.f32.partialorder %v5168, 0.0
    %vm5233 = vcmp.gt.f32.partialorder %v5169, 0.0
    %vm5234 = vcmp.gt.f32.partialorder %v5170, 0.0
    %vm5235 = vcmp.gt.f32.partialorder %v5171, 0.0
    %vm5236 = vcmp.gt.f32.partialorder %v5172, 0.0
    %vm5237 = vcmp.gt.f32.partialorder %v5173, 0.0
    %vm5238 = vcmp.gt.f32.partialorder %v5174, 0.0
    %vm5239 = vcmp.gt.f32.partialorder %v5175, 0.0
    %vm5240 = vcmp.gt.f32.partialorder %v5176, 0.0
    %vm5241 = vcmp.gt.f32.partialorder %v5177, 0.0
    %vm5242 = vcmp.gt.f32.partialorder %v5178, 0.0
    %vm5243 = vcmp.gt.f32.partialorder %v5179, 0.0
    %vm5244 = vcmp.gt.f32.partialorder %v5180, 0.0
    %vm5245 = vcmp.gt.f32.partialorder %v5181, 0.0
    %vm5246 = vcmp.gt.f32.partialorder %v5182, 0.0
    %vm5247 = vcmp.gt.f32.partialorder %v5183, 0.0
    %vm5248 = vcmp.gt.f32.partialorder %v5184, 0.0
    %vm5249 = vcmp.gt.f32.partialorder %v5185, 0.0
    %vm5250 = vcmp.gt.f32.partialorder %v5186, 0.0
    %vm5251 = vcmp.gt.f32.partialorder %v5187, 0.0
    %vm5252 = vcmp.gt.f32.partialorder %v5188, 0.0
    %vm5253 = vcmp.gt.f32.partialorder %v5189, 0.0
    %vm5254 = vcmp.gt.f32.partialorder %v5190, 0.0
    %vm5255 = vcmp.gt.f32.partialorder %v5191, 0.0
    %vm5256 = vcmp.gt.f32.partialorder %v5192, 0.0
    %vm5257 = vcmp.gt.f32.partialorder %v5193, 0.0
    %vm5258 = vcmp.gt.f32.partialorder %v5194, 0.0
    %vm5259 = vcmp.gt.f32.partialorder %v5195, 0.0
    %vm5260 = vcmp.gt.f32.partialorder %v5196, 0.0
    %vm5261 = vcmp.gt.f32.partialorder %v5197, 0.0
    %vm5262 = vcmp.gt.f32.partialorder %v5198, 0.0
    %vm5263 = vcmp.gt.f32.partialorder %v5199, 0.0
    %vm5264 = vcmp.gt.f32.partialorder %v5200, 0.0
    %vm5265 = vcmp.gt.f32.partialorder %v5201, 0.0
    %vm5266 = vcmp.gt.f32.partialorder %v5202, 0.0
    %vm5267 = vcmp.gt.f32.partialorder %v5203, 0.0
    %vm5268 = vcmp.gt.f32.partialorder %v5204, 0.0
    %vm5269 = vcmp.gt.f32.partialorder %v5205, 0.0
    %vm5270 = vcmp.gt.f32.partialorder %v5206, 0.0
    %vm5271 = vcmp.gt.f32.partialorder %v5207, 0.0
    %v5272 = vmul.f32 %v5144, 0.01
    %v5273 = vmul.f32 %v5145, 0.01
    %v5274 = vmul.f32 %v5146, 0.01
    %v5275 = vmul.f32 %v5147, 0.01
    %v5276 = vmul.f32 %v5148, 0.01
    %v5277 = vmul.f32 %v5149, 0.01
    %v5278 = vmul.f32 %v5150, 0.01
    %v5279 = vmul.f32 %v5151, 0.01
    %v5280 = vmul.f32 %v5152, 0.01
    %v5281 = vmul.f32 %v5153, 0.01
    %v5282 = vmul.f32 %v5154, 0.01
    %v5283 = vmul.f32 %v5155, 0.01
    %v5284 = vmul.f32 %v5156, 0.01
    %v5285 = vmul.f32 %v5157, 0.01
    %v5286 = vmul.f32 %v5158, 0.01
    %v5287 = vmul.f32 %v5159, 0.01
    %v5288 = vmul.f32 %v5160, 0.01
    %v5289 = vmul.f32 %v5161, 0.01
    %v5290 = vmul.f32 %v5162, 0.01
    %v5291 = vmul.f32 %v5163, 0.01
    %v5292 = vmul.f32 %v5164, 0.01
    %v5293 = vmul.f32 %v5165, 0.01
    %v5294 = vmul.f32 %v5166, 0.01
    %v5295 = vmul.f32 %v5167, 0.01
    %v5296 = vmul.f32 %v5168, 0.01
    %v5297 = vmul.f32 %v5169, 0.01
    %v5298 = vmul.f32 %v5170, 0.01
    %v5299 = vmul.f32 %v5171, 0.01
    %v5300 = vmul.f32 %v5172, 0.01
    %v5301 = vmul.f32 %v5173, 0.01
    %v5302 = vmul.f32 %v5174, 0.01
    %v5303 = vmul.f32 %v5175, 0.01
    %v5304 = vmul.f32 %v5176, 0.01
    %v5305 = vmul.f32 %v5177, 0.01
    %v5306 = vmul.f32 %v5178, 0.01
    %v5307 = vmul.f32 %v5179, 0.01
    %v5308 = vmul.f32 %v5180, 0.01
    %v5309 = vmul.f32 %v5181, 0.01
    %v5310 = vmul.f32 %v5182, 0.01
    %v5311 = vmul.f32 %v5183, 0.01
    %v5312 = vmul.f32 %v5184, 0.01
    %v5313 = vmul.f32 %v5185, 0.01
    %v5314 = vmul.f32 %v5186, 0.01
    %v5315 = vmul.f32 %v5187, 0.01
    %v5316 = vmul.f32 %v5188, 0.01
    %v5317 = vmul.f32 %v5189, 0.01
    %v5318 = vmul.f32 %v5190, 0.01
    %v5319 = vmul.f32 %v5191, 0.01
    %v5320 = vmul.f32 %v5192, 0.01
    %v5321 = vmul.f32 %v5193, 0.01
    %v5322 = vmul.f32 %v5194, 0.01
    %v5323 = vmul.f32 %v5195, 0.01
    %v5324 = vmul.f32 %v5196, 0.01
    %v5325 = vmul.f32 %v5197, 0.01
    %v5326 = vmul.f32 %v5198, 0.01
    %v5327 = vmul.f32 %v5199, 0.01
    %v5328 = vmul.f32 %v5200, 0.01
    %v5329 = vmul.f32 %v5201, 0.01
    %v5330 = vmul.f32 %v5202, 0.01
    %v5331 = vmul.f32 %v5203, 0.01
    %v5332 = vmul.f32 %v5204, 0.01
    %v5333 = vmul.f32 %v5205, 0.01
    %v5334 = vmul.f32 %v5206, 0.01
    %v5335 = vmul.f32 %v5207, 0.01
    %v5336 = vsel %vm5208, %v5144, %v5272
    %v5337 = vsel %vm5209, %v5145, %v5273
    %v5338 = vsel %vm5210, %v5146, %v5274
    %v5339 = vsel %vm5211, %v5147, %v5275
    %v5340 = vsel %vm5212, %v5148, %v5276
    %v5341 = vsel %vm5213, %v5149, %v5277
    %v5342 = vsel %vm5214, %v5150, %v5278
    %v5343 = vsel %vm5215, %v5151, %v5279
    %v5344 = vsel %vm5216, %v5152, %v5280
    %v5345 = vsel %vm5217, %v5153, %v5281
    %v5346 = vsel %vm5218, %v5154, %v5282
    %v5347 = vsel %vm5219, %v5155, %v5283
    %v5348 = vsel %vm5220, %v5156, %v5284
    %v5349 = vsel %vm5221, %v5157, %v5285
    %v5350 = vsel %vm5222, %v5158, %v5286
    %v5351 = vsel %vm5223, %v5159, %v5287
    %v5352 = vsel %vm5224, %v5160, %v5288
    %v5353 = vsel %vm5225, %v5161, %v5289
    %v5354 = vsel %vm5226, %v5162, %v5290
    %v5355 = vsel %vm5227, %v5163, %v5291
    %v5356 = vsel %vm5228, %v5164, %v5292
    %v5357 = vsel %vm5229, %v5165, %v5293
    %v5358 = vsel %vm5230, %v5166, %v5294
    %v5359 = vsel %vm5231, %v5167, %v5295
    %v5360 = vsel %vm5232, %v5168, %v5296
    %v5361 = vsel %vm5233, %v5169, %v5297
    %v5362 = vsel %vm5234, %v5170, %v5298
    %v5363 = vsel %vm5235, %v5171, %v5299
    %v5364 = vsel %vm5236, %v5172, %v5300
    %v5365 = vsel %vm5237, %v5173, %v5301
    %v5366 = vsel %vm5238, %v5174, %v5302
    %v5367 = vsel %vm5239, %v5175, %v5303
    %v5368 = vsel %vm5240, %v5176, %v5304
    %v5369 = vsel %vm5241, %v5177, %v5305
    %v5370 = vsel %vm5242, %v5178, %v5306
    %v5371 = vsel %vm5243, %v5179, %v5307
    %v5372 = vsel %vm5244, %v5180, %v5308
    %v5373 = vsel %vm5245, %v5181, %v5309
    %v5374 = vsel %vm5246, %v5182, %v5310
    %v5375 = vsel %vm5247, %v5183, %v5311
    %v5376 = vsel %vm5248, %v5184, %v5312
    %v5377 = vsel %vm5249, %v5185, %v5313
    %v5378 = vsel %vm5250, %v5186, %v5314
    %v5379 = vsel %vm5251, %v5187, %v5315
    %v5380 = vsel %vm5252, %v5188, %v5316
    %v5381 = vsel %vm5253, %v5189, %v5317
    %v5382 = vsel %vm5254, %v5190, %v5318
    %v5383 = vsel %vm5255, %v5191, %v5319
    %v5384 = vsel %vm5256, %v5192, %v5320
    %v5385 = vsel %vm5257, %v5193, %v5321
    %v5386 = vsel %vm5258, %v5194, %v5322
    %v5387 = vsel %vm5259, %v5195, %v5323
    %v5388 = vsel %vm5260, %v5196, %v5324
    %v5389 = vsel %vm5261, %v5197, %v5325
    %v5390 = vsel %vm5262, %v5198, %v5326
    %v5391 = vsel %vm5263, %v5199, %v5327
    %v5392 = vsel %vm5264, %v5200, %v5328
    %v5393 = vsel %vm5265, %v5201, %v5329
    %v5394 = vsel %vm5266, %v5202, %v5330
    %v5395 = vsel %vm5267, %v5203, %v5331
    %v5396 = vsel %vm5268, %v5204, %v5332
    %v5397 = vsel %vm5269, %v5205, %v5333
    %v5398 = vsel %vm5270, %v5206, %v5334
    %v5399 = vsel %vm5271, %v5207, %v5335
    %5400 = vxpose.xlu0.b32.start [1/16] %v5336, 128
    %5401 = vxpose.xlu0.b32.cont [2/16] %v5338, 128
    %5402 = vxpose.xlu0.b32.cont [3/16] %v5340, 128
    %5403 = vxpose.xlu0.b32.cont [4/16] %v5342, 128
    %5404 = vxpose.xlu0.b32.cont [5/16] %v5344, 128
    %5405 = vxpose.xlu0.b32.cont [6/16] %v5346, 128
    %5406 = vxpose.xlu0.b32.cont [7/16] %v5348, 128
    %5407 = vxpose.xlu0.b32.cont [8/16] %v5350, 128
    %5408 = vxpose.xlu0.b32.cont [9/16] %v5352, 128
    %5409 = vxpose.xlu0.b32.cont [10/16] %v5354, 128
    %5410 = vxpose.xlu0.b32.cont [11/16] %v5356, 128
    %5411 = vxpose.xlu0.b32.cont [12/16] %v5358, 128
    %5412 = vxpose.xlu0.b32.cont [13/16] %v5360, 128
    %5413 = vxpose.xlu0.b32.cont [14/16] %v5362, 128
    %5414 = vxpose.xlu0.b32.cont [15/16] %v5364, 128
    %5415 = vxpose.xlu0.b32.end [16/16] %v5366, 128
    %v5416 = vpop.trf.xlu0
    %v5417 = vpop.trf.xlu0
    %v5418 = vpop.trf.xlu0
    %v5419 = vpop.trf.xlu0
    %v5420 = vpop.trf.xlu0
    %v5421 = vpop.trf.xlu0
    %v5422 = vpop.trf.xlu0
    %v5423 = vpop.trf.xlu0
    %v5424 = vpop.trf.xlu0
    %v5425 = vpop.trf.xlu0
    %v5426 = vpop.trf.xlu0
    %v5427 = vpop.trf.xlu0
    %v5428 = vpop.trf.xlu0
    %v5429 = vpop.trf.xlu0
    %v5430 = vpop.trf.xlu0
    %v5431 = vpop.trf.xlu0
    %5432 = vxpose.xlu0.b32.start [1/16] %v5337, 128
    %5433 = vxpose.xlu0.b32.cont [2/16] %v5339, 128
    %5434 = vxpose.xlu0.b32.cont [3/16] %v5341, 128
    %5435 = vxpose.xlu0.b32.cont [4/16] %v5343, 128
    %5436 = vxpose.xlu0.b32.cont [5/16] %v5345, 128
    %5437 = vxpose.xlu0.b32.cont [6/16] %v5347, 128
    %5438 = vxpose.xlu0.b32.cont [7/16] %v5349, 128
    %5439 = vxpose.xlu0.b32.cont [8/16] %v5351, 128
    %5440 = vxpose.xlu0.b32.cont [9/16] %v5353, 128
    %5441 = vxpose.xlu0.b32.cont [10/16] %v5355, 128
    %5442 = vxpose.xlu0.b32.cont [11/16] %v5357, 128
    %5443 = vxpose.xlu0.b32.cont [12/16] %v5359, 128
    %5444 = vxpose.xlu0.b32.cont [13/16] %v5361, 128
    %5445 = vxpose.xlu0.b32.cont [14/16] %v5363, 128
    %5446 = vxpose.xlu0.b32.cont [15/16] %v5365, 128
    %5447 = vxpose.xlu0.b32.end [16/16] %v5367, 128
    %v5448 = vpop.trf.xlu0
    %v5449 = vpop.trf.xlu0
    %v5450 = vpop.trf.xlu0
    %v5451 = vpop.trf.xlu0
    %v5452 = vpop.trf.xlu0
    %v5453 = vpop.trf.xlu0
    %v5454 = vpop.trf.xlu0
    %v5455 = vpop.trf.xlu0
    %v5456 = vpop.trf.xlu0
    %v5457 = vpop.trf.xlu0
    %v5458 = vpop.trf.xlu0
    %v5459 = vpop.trf.xlu0
    %v5460 = vpop.trf.xlu0
    %v5461 = vpop.trf.xlu0
    %v5462 = vpop.trf.xlu0
    %v5463 = vpop.trf.xlu0
    %5464 = vst [vmem:[#allocation7] sm:$0xff] %v5416
    %5465 = vst [vmem:[#allocation7 + $0x8] sm:$0xff] %v5417
    %5466 = vst [vmem:[#allocation7 + $0x10] sm:$0xff] %v5418
    %5467 = vst [vmem:[#allocation7 + $0x18] sm:$0xff] %v5419
    %5468 = vst [vmem:[#allocation7 + $0x20] sm:$0xff] %v5420
    %5469 = vst [vmem:[#allocation7 + $0x28] sm:$0xff] %v5421
    %5470 = vst [vmem:[#allocation7 + $0x30] sm:$0xff] %v5422
    %5471 = vst [vmem:[#allocation7 + $0x38] sm:$0xff] %v5423
    %5472 = vst [vmem:[#allocation7 + $0x40] sm:$0xff] %v5424
    %5473 = vst [vmem:[#allocation7 + $0x48] sm:$0xff] %v5425
    %5474 = vst [vmem:[#allocation7 + $0x50] sm:$0xff] %v5426
    %5475 = vst [vmem:[#allocation7 + $0x58] sm:$0xff] %v5427
    %5476 = vst [vmem:[#allocation7 + $0x60] sm:$0xff] %v5428
    %5477 = vst [vmem:[#allocation7 + $0x68] sm:$0xff] %v5429
    %5478 = vst [vmem:[#allocation7 + $0x70] sm:$0xff] %v5430
    %5479 = vst [vmem:[#allocation7 + $0x78] sm:$0xff] %v5431
    %5480 = vst [vmem:[#allocation7 + $0x80] sm:$0xff] %v5448
    %5481 = vst [vmem:[#allocation7 + $0x88] sm:$0xff] %v5449
    %5482 = vst [vmem:[#allocation7 + $0x90] sm:$0xff] %v5450
    %5483 = vst [vmem:[#allocation7 + $0x98] sm:$0xff] %v5451
    %5484 = vst [vmem:[#allocation7 + $0xa0] sm:$0xff] %v5452
    %5485 = vst [vmem:[#allocation7 + $0xa8] sm:$0xff] %v5453
    %5486 = vst [vmem:[#allocation7 + $0xb0] sm:$0xff] %v5454
    %5487 = vst [vmem:[#allocation7 + $0xb8] sm:$0xff] %v5455
    %5488 = vst [vmem:[#allocation7 + $0xc0] sm:$0xff] %v5456
    %5489 = vst [vmem:[#allocation7 + $0xc8] sm:$0xff] %v5457
    %5490 = vst [vmem:[#allocation7 + $0xd0] sm:$0xff] %v5458
    %5491 = vst [vmem:[#allocation7 + $0xd8] sm:$0xff] %v5459
    %5492 = vst [vmem:[#allocation7 + $0xe0] sm:$0xff] %v5460
    %5493 = vst [vmem:[#allocation7 + $0xe8] sm:$0xff] %v5461
    %5494 = vst [vmem:[#allocation7 + $0xf0] sm:$0xff] %v5462
    %5495 = vst [vmem:[#allocation7 + $0xf8] sm:$0xff] %v5463
    %5496 = vxpose.xlu0.b32.start [1/16] %v5368, 128
    %5497 = vxpose.xlu0.b32.cont [2/16] %v5370, 128
    %5498 = vxpose.xlu0.b32.cont [3/16] %v5372, 128
    %5499 = vxpose.xlu0.b32.cont [4/16] %v5374, 128
    %5500 = vxpose.xlu0.b32.cont [5/16] %v5376, 128
    %5501 = vxpose.xlu0.b32.cont [6/16] %v5378, 128
    %5502 = vxpose.xlu0.b32.cont [7/16] %v5380, 128
    %5503 = vxpose.xlu0.b32.cont [8/16] %v5382, 128
    %5504 = vxpose.xlu0.b32.cont [9/16] %v5384, 128
    %5505 = vxpose.xlu0.b32.cont [10/16] %v5386, 128
    %5506 = vxpose.xlu0.b32.cont [11/16] %v5388, 128
    %5507 = vxpose.xlu0.b32.cont [12/16] %v5390, 128
    %5508 = vxpose.xlu0.b32.cont [13/16] %v5392, 128
    %5509 = vxpose.xlu0.b32.cont [14/16] %v5394, 128
    %5510 = vxpose.xlu0.b32.cont [15/16] %v5396, 128
    %5511 = vxpose.xlu0.b32.end [16/16] %v5398, 128
    %v5512 = vpop.trf.xlu0
    %v5513 = vpop.trf.xlu0
    %v5514 = vpop.trf.xlu0
    %v5515 = vpop.trf.xlu0
    %v5516 = vpop.trf.xlu0
    %v5517 = vpop.trf.xlu0
    %v5518 = vpop.trf.xlu0
    %v5519 = vpop.trf.xlu0
    %v5520 = vpop.trf.xlu0
    %v5521 = vpop.trf.xlu0
    %v5522 = vpop.trf.xlu0
    %v5523 = vpop.trf.xlu0
    %v5524 = vpop.trf.xlu0
    %v5525 = vpop.trf.xlu0
    %v5526 = vpop.trf.xlu0
    %v5527 = vpop.trf.xlu0
    %5528 = vxpose.xlu0.b32.start [1/16] %v5369, 128
    %5529 = vxpose.xlu0.b32.cont [2/16] %v5371, 128
    %5530 = vxpose.xlu0.b32.cont [3/16] %v5373, 128
    %5531 = vxpose.xlu0.b32.cont [4/16] %v5375, 128
    %5532 = vxpose.xlu0.b32.cont [5/16] %v5377, 128
    %5533 = vxpose.xlu0.b32.cont [6/16] %v5379, 128
    %5534 = vxpose.xlu0.b32.cont [7/16] %v5381, 128
    %5535 = vxpose.xlu0.b32.cont [8/16] %v5383, 128
    %5536 = vxpose.xlu0.b32.cont [9/16] %v5385, 128
    %5537 = vxpose.xlu0.b32.cont [10/16] %v5387, 128
    %5538 = vxpose.xlu0.b32.cont [11/16] %v5389, 128
    %5539 = vxpose.xlu0.b32.cont [12/16] %v5391, 128
    %5540 = vxpose.xlu0.b32.cont [13/16] %v5393, 128
    %5541 = vxpose.xlu0.b32.cont [14/16] %v5395, 128
    %5542 = vxpose.xlu0.b32.cont [15/16] %v5397, 128
    %5543 = vxpose.xlu0.b32.end [16/16] %v5399, 128
    %v5544 = vpop.trf.xlu0
    %v5545 = vpop.trf.xlu0
    %v5546 = vpop.trf.xlu0
    %v5547 = vpop.trf.xlu0
    %v5548 = vpop.trf.xlu0
    %v5549 = vpop.trf.xlu0
    %v5550 = vpop.trf.xlu0
    %v5551 = vpop.trf.xlu0
    %v5552 = vpop.trf.xlu0
    %v5553 = vpop.trf.xlu0
    %v5554 = vpop.trf.xlu0
    %v5555 = vpop.trf.xlu0
    %v5556 = vpop.trf.xlu0
    %v5557 = vpop.trf.xlu0
    %v5558 = vpop.trf.xlu0
    %v5559 = vpop.trf.xlu0
    %s5560 = scalar_lea.vmem [#allocation7], 256
    %5561 = vst [vmem:[%s5560] sm:$0xff] %v5512
    %5562 = vst [vmem:[%s5560 + $0x8] sm:$0xff] %v5513
    %5563 = vst [vmem:[%s5560 + $0x10] sm:$0xff] %v5514
    %5564 = vst [vmem:[%s5560 + $0x18] sm:$0xff] %v5515
    %5565 = vst [vmem:[%s5560 + $0x20] sm:$0xff] %v5516
    %5566 = vst [vmem:[%s5560 + $0x28] sm:$0xff] %v5517
    %5567 = vst [vmem:[%s5560 + $0x30] sm:$0xff] %v5518
    %5568 = vst [vmem:[%s5560 + $0x38] sm:$0xff] %v5519
    %5569 = vst [vmem:[%s5560 + $0x40] sm:$0xff] %v5520
    %5570 = vst [vmem:[%s5560 + $0x48] sm:$0xff] %v5521
    %5571 = vst [vmem:[%s5560 + $0x50] sm:$0xff] %v5522
    %5572 = vst [vmem:[%s5560 + $0x58] sm:$0xff] %v5523
    %5573 = vst [vmem:[%s5560 + $0x60] sm:$0xff] %v5524
    %5574 = vst [vmem:[%s5560 + $0x68] sm:$0xff] %v5525
    %5575 = vst [vmem:[%s5560 + $0x70] sm:$0xff] %v5526
    %5576 = vst [vmem:[%s5560 + $0x78] sm:$0xff] %v5527
    %5577 = vst [vmem:[%s5560 + $0x80] sm:$0xff] %v5544
    %5578 = vst [vmem:[%s5560 + $0x88] sm:$0xff] %v5545
    %5579 = vst [vmem:[%s5560 + $0x90] sm:$0xff] %v5546
    %5580 = vst [vmem:[%s5560 + $0x98] sm:$0xff] %v5547
    %5581 = vst [vmem:[%s5560 + $0xa0] sm:$0xff] %v5548
    %5582 = vst [vmem:[%s5560 + $0xa8] sm:$0xff] %v5549
    %5583 = vst [vmem:[%s5560 + $0xb0] sm:$0xff] %v5550
    %5584 = vst [vmem:[%s5560 + $0xb8] sm:$0xff] %v5551
    %5585 = vst [vmem:[%s5560 + $0xc0] sm:$0xff] %v5552
    %5586 = vst [vmem:[%s5560 + $0xc8] sm:$0xff] %v5553
    %5587 = vst [vmem:[%s5560 + $0xd0] sm:$0xff] %v5554
    %5588 = vst [vmem:[%s5560 + $0xd8] sm:$0xff] %v5555
    %5589 = vst [vmem:[%s5560 + $0xe0] sm:$0xff] %v5556
    %5590 = vst [vmem:[%s5560 + $0xe8] sm:$0xff] %v5557
    %5591 = vst [vmem:[%s5560 + $0xf0] sm:$0xff] %v5558
    %5592 = vst [vmem:[%s5560 + $0xf8] sm:$0xff] %v5559
    // Predicated region
    $region42: #{tpu_custom_call.1} parent=1 // pred_check
      _
    $region43: #{tpu_custom_call.1} parent=1 // pred_check_branch
      %5594 = sbr.rel (0) target = $region45
    $region44: #{tpu_custom_call.1} parent=1 // pred_region
      %s5596 = ssub.s32 8192, 8192
      %5597 = vsyncadd [#allocation4], %s5596
      %s5598 = sshll.u32 [#allocation7], 4
      %s5599 = int_to_ptr.vmem [resolvable:$true] %s5598
      %5604 = dma.vmem_to_hbm [thread:$0]  %s5599, 8192, %s8, [#allocation4], 128, 128, 8
    $region45: #{tpu_custom_call.1} parent=1 // pred_fallthru
      _
    // Predicated region
    $region46: #{tpu_custom_call.1} parent=1 // pred_check
      _
    $region47: #{tpu_custom_call.1} parent=1 // pred_check_branch
      %5606 = sbr.rel (0) target = $region49
    $region48: #{tpu_custom_call.1} parent=1 // pred_region
      %5607 = dma.done [#allocation4], 8192
    $region49: #{tpu_custom_call.1} parent=1 // pred_fallthru
      _
    %5608 = vsyncpa [#allocation3], 1
    %5609 = vsyncpa [#allocation6], 1
    %5610 = vsyncpa [#allocation4], 1

</llo_original>
